<compile_context>
chip_gen: v7x
topology: tpu7x:2x2x1
jax: 0.10.0
libtpu: 0.0.40
codegen_flags: <defaults>
</compile_context>

<pallas_src>
import functools

import jax
import jax.numpy as jnp
from jax.experimental import pallas as pl
from jax.experimental.pallas import tpu as pltpu


# ------------------------------ fused kernel ------------------------------ #
def _decoder_kernel(xht_ref,
                    wg1_ref, bg1_ref, wg2_ref, bg2_ref, wg3_ref, bg3_ref,
                    wl1x_ref, wl1c_ref, bl1_ref, wl2_ref, bl2_ref, wl3_ref, bl3_ref,
                    o_ref):
    """One tile of TILE series, all H horizons at once (block-diagonal weights).

    Layout: activations are (features, TILE) -> series on lanes (MXU N dim).
      xht_ref: (H*F + E, TILE)  rows [0,H*F) = flatten(xf), rows [H*F,H*F+E) = ht
      o_ref  : (H*Q, TILE)      row h*Q + q  = y[:, h, q]
    """
    f32 = jnp.float32
    x = xht_ref[...]

    # --- GlobalMLP over all horizons (dropout = identity in eval mode) ------
    g1 = jnp.maximum(jnp.dot(wg1_ref[...], x, preferred_element_type=f32)
                     + bg1_ref[...], 0.0)                                  # (H*64, T)
    g2 = jnp.maximum(jnp.dot(wg2_ref[...], g1, preferred_element_type=f32)
                     + bg2_ref[...], 0.0)                                  # (H*32, T)
    ctx = jnp.dot(wg3_ref[...], g2, preferred_element_type=f32) + bg3_ref[...]  # (H*F, T)

    # --- LocalMLP over all horizons -----------------------------------------
    # wl1x picks xf_h per block (zero cols on ht); wl1c = blockdiag(ctx_h term)
    # + tiled flatten(ctx) term, so one dot covers both concat branches.
    l1 = jnp.maximum(jnp.dot(wl1x_ref[...], x, preferred_element_type=f32)
                     + jnp.dot(wl1c_ref[...], ctx, preferred_element_type=f32)
                     + bl1_ref[...], 0.0)                                  # (H*10, T)
    l2 = jnp.maximum(jnp.dot(wl2_ref[...], l1, preferred_element_type=f32)
                     + bl2_ref[...], 0.0)                                  # (H*5, T)
    o_ref[...] = jnp.dot(wl3_ref[...], l2, preferred_element_type=f32) + bl3_ref[...]


# ------------------------------ decoder glue ------------------------------ #
def decoder_forward(ht, xf, p, tile_n: int = 1024):
    """ht: (N, E), xf: (N, H, F) -> y: (N, H, Q). Params in PyTorch (out, in) layout."""
    assert tile_n % 128 == 0, "tile_n must be a multiple of 128"
    N, H, F = xf.shape
    E = ht.shape[1]
    Q = p['l_w3'].shape[0]
    HF = H * F
    f32 = jnp.float32

    eye = jnp.eye(H, dtype=f32)
    bd = lambda w: jnp.kron(eye, w.astype(f32))                # (o,i) -> (H*o, H*i)
    rep = lambda b: jnp.tile(b.astype(f32), (H,)).reshape(-1, 1)

    # Split the concat-matmuls' weights (no concatenation of activations anywhere).
    wg1x, wg1h = p['g_w1'][:, :F], p['g_w1'][:, F:]            # (64,F), (64,E)
    wl1 = p['l_w1']                                            # (10, F*(2+H))
    wl1x, wl1c, wl1a = wl1[:, :F], wl1[:, F:2 * F], wl1[:, 2 * F:]
    LH = wl1.shape[0]                                          # local hidden = 10

    # Block-diagonal / repeated weights built once per call (tiny).
    Wg1 = jnp.concatenate([bd(wg1x), jnp.tile(wg1h, (H, 1))], axis=1)        # (H*64, HF+E)
    Wg2, Wg3 = bd(p['g_w2']), bd(p['g_w3'])                                  # (H*32,H*64), (HF,H*32)
    Wl1x = jnp.concatenate([bd(wl1x), jnp.zeros((H * LH, E), f32)], axis=1)  # (H*10, HF+E)
    Wl1c = bd(wl1c) + jnp.tile(wl1a, (H, 1))                                 # (H*10, HF)
    Wl2, Wl3 = bd(p['l_w2']), bd(p['l_w3'])                                  # (H*5,H*10), (H*Q,H*5)
    Bg1, Bg2, Bg3 = rep(p['g_b1']), rep(p['g_b2']), rep(p['g_b3'])
    Bl1, Bl2, Bl3 = rep(p['l_b1']), rep(p['l_b2']), rep(p['l_b3'])

    # Pad the series axis to the lane tile and transpose so series is minor
    # (lane-dense loads, matmuls and stores).
    TILE = min(tile_n, ((N + 127) // 128) * 128)               # clamp for tiny batches
    Np = ((N + TILE - 1) // TILE) * TILE
    xht = jnp.concatenate([xf.reshape(N, HF), ht], axis=1)     # (N, HF+E)
    xht_t = jnp.pad(xht, ((0, Np - N), (0, 0))).T              # (HF+E, Np)

    weights = [Wg1, Bg1, Wg2, Bg2, Wg3, Bg3, Wl1x, Wl1c, Bl1, Wl2, Bl2, Wl3, Bl3]

    def full_spec(a):
        nd = a.ndim
        return pl.BlockSpec(a.shape, lambda i, _nd=nd: (0,) * _nd)

    y_t = pl.pallas_call(
        _decoder_kernel,
        out_shape=jax.ShapeDtypeStruct((H * Q, Np), f32),
        grid_spec=pltpu.PrefetchScalarGridSpec(
            num_scalar_prefetch=0,
            grid=(Np // TILE,),
            in_specs=[pl.BlockSpec((HF + E, TILE), lambda i: (0, i))]
                     + [full_spec(w) for w in weights],
            out_specs=pl.BlockSpec((H * Q, TILE), lambda i: (0, i)),
        ),
        compiler_params=pltpu.CompilerParams(
            dimension_semantics=("parallel",),
            vmem_limit_bytes=32 * 1024 * 1024),
    )(xht_t, *weights)

    # Layout plumbing back to (N, H, Q), drop series padding.
    return y_t.T.reshape(Np, H, Q)[:N]


# ----------------------------- parameter init ----------------------------- #
def _linear_init(key, fan_in, fan_out):
    # PyTorch-like uniform(-1/sqrt(fan_in), 1/sqrt(fan_in)); W stored (out, in).
    kw, kb = jax.random.split(key)
    bound = 1.0 / jnp.sqrt(jnp.float32(fan_in))
    w = jax.random.uniform(kw, (fan_out, fan_in), jnp.float32, -bound, bound)
    b = jax.random.uniform(kb, (fan_out,), jnp.float32, -bound, bound)
    return w, b


def init_decoder_params(key, encoder_hidden_size, output_horizon, xf_feature_num,
                        num_quantiles):
    E, H, F, Q = encoder_hidden_size, output_horizon, xf_feature_num, num_quantiles
    keys = jax.random.split(key, 6)
    # GlobalMLP(E, F, num_quantiles=F, hidden=64): (E+F) -> 64 -> 32 -> F
    g_w1, g_b1 = _linear_init(keys[0], E + F, 64)
    g_w2, g_b2 = _linear_init(keys[1], 64, 32)
    g_w3, g_b3 = _linear_init(keys[2], 32, F)
    # LocalMLP(F, H, Q, hidden=10): F*(2+H) -> 10 -> 5 -> Q
    l_w1, l_b1 = _linear_init(keys[3], F * (2 + H), 10)
    l_w2, l_b2 = _linear_init(keys[4], 10, 5)
    l_w3, l_b3 = _linear_init(keys[5], 5, Q)
    return dict(g_w1=g_w1, g_b1=g_b1, g_w2=g_w2, g_b2=g_b2, g_w3=g_w3, g_b3=g_b3,
                l_w1=l_w1, l_b1=l_b1, l_w2=l_w2, l_b2=l_b2, l_w3=l_w3, l_b3=l_b3)


# ------------------------------ pure-JAX ref ------------------------------ #
def _ref_mlp(x, w1, b1, w2, b2, w3, b3):
    h1 = jnp.maximum(x @ w1.T + b1, 0.0)
    h2 = jnp.maximum(h1 @ w2.T + b2, 0.0)
    return h2 @ w3.T + b3


def decoder_forward_ref(ht, xf, p):
    N, H, F = xf.shape
    E = ht.shape[1]
    ht_exp = jnp.broadcast_to(ht[:, None, :], (N, H, E))
    g_inp = jnp.concatenate([xf, ht_exp], axis=2).reshape(N * H, F + E)
    contexts = _ref_mlp(g_inp, p['g_w1'], p['g_b1'], p['g_w2'], p['g_b2'],
                        p['g_w3'], p['g_b3']).reshape(N, H, F)
    ys = []
    for i in range(H):
        loc = jnp.concatenate([xf[:, i, :], contexts[:, i, :],
                               contexts.reshape(N, H * F)], axis=-1)
        ys.append(_ref_mlp(loc, p['l_w1'], p['l_b1'], p['l_w2'], p['l_b2'],
                           p['l_w3'], p['l_b3']))
    return jnp.stack(ys, axis=1)


# --------------------------------- main ------------------------------------ #
if __name__ == "__main__":
    encoder_hidden_size = 10
    output_horizon = 8
    xf_feature_num = 4
    num_quantiles = 3

    key = jax.random.PRNGKey(0)
    k_par, k_case1, k_case2 = jax.random.split(key, 3)
    params = init_decoder_params(k_par, encoder_hidden_size, output_horizon,
                                 xf_feature_num, num_quantiles)

    def run_case(k, num_ts, tile_n):
        ka, kb = jax.random.split(k)
        ht = jax.random.normal(ka, (num_ts, encoder_hidden_size), jnp.float32)
        xf = jax.random.normal(kb, (num_ts, output_horizon, xf_feature_num), jnp.float32)
        fwd = jax.jit(functools.partial(decoder_forward, tile_n=tile_n))
        y = fwd(ht, xf, params)
        jax.block_until_ready(y)
        y_ref = decoder_forward_ref(ht, xf, params)
        assert y.shape == (num_ts, output_horizon, num_quantiles), y.shape
        err = jnp.max(jnp.abs(y - y_ref))
        assert jnp.allclose(y, y_ref, atol=5e-4, rtol=5e-4), \
            f"mismatch vs reference (N={num_ts}, max abs err {err})"

    # Small shape from the module spec (single 128-lane tile).
    run_case(k_case1, 2, 1024)
    # Multi-tile coverage: N > tile and not a multiple of 128 (3 grid steps).
    run_case(k_case2, 300, 128)

    print("KERNEL_OK")
</pallas_src>

<mosaic_0001>
module attributes {stable_mosaic.version = 11 : i64} {
  func.func @_decoder_kernel(%arg0: i32, %arg1: memref<42x128xf32, #tpu.memory_space<vmem>>, %arg2: memref<512x42xf32, #tpu.memory_space<vmem>>, %arg3: memref<512x1xf32, #tpu.memory_space<vmem>>, %arg4: memref<256x512xf32, #tpu.memory_space<vmem>>, %arg5: memref<256x1xf32, #tpu.memory_space<vmem>>, %arg6: memref<32x256xf32, #tpu.memory_space<vmem>>, %arg7: memref<32x1xf32, #tpu.memory_space<vmem>>, %arg8: memref<80x42xf32, #tpu.memory_space<vmem>>, %arg9: memref<80x32xf32, #tpu.memory_space<vmem>>, %arg10: memref<80x1xf32, #tpu.memory_space<vmem>>, %arg11: memref<40x80xf32, #tpu.memory_space<vmem>>, %arg12: memref<40x1xf32, #tpu.memory_space<vmem>>, %arg13: memref<24x40xf32, #tpu.memory_space<vmem>>, %arg14: memref<24x1xf32, #tpu.memory_space<vmem>>, %arg15: memref<24x128xf32, #tpu.memory_space<vmem>>) attributes {dimension_semantics = [#tpu.dimension_semantics<parallel>], iteration_bounds = array<i64: 1>, scalar_prefetch = 0 : i64, scratch_operands = 0 : i64, tpu.core_type = #tpu.core_type<tc>, window_params = [{transform_indices = @transform_0, window_bounds = array<i64: 42, 128>}, {pipeline_mode = #tpu.pipeline_mode<synchronous>, transform_indices = @transform_1, window_bounds = array<i64: 512, 42>}, {pipeline_mode = #tpu.pipeline_mode<synchronous>, transform_indices = @transform_2, window_bounds = array<i64: 512, 1>}, {pipeline_mode = #tpu.pipeline_mode<synchronous>, transform_indices = @transform_3, window_bounds = array<i64: 256, 512>}, {pipeline_mode = #tpu.pipeline_mode<synchronous>, transform_indices = @transform_4, window_bounds = array<i64: 256, 1>}, {pipeline_mode = #tpu.pipeline_mode<synchronous>, transform_indices = @transform_5, window_bounds = array<i64: 32, 256>}, {pipeline_mode = #tpu.pipeline_mode<synchronous>, transform_indices = @transform_6, window_bounds = array<i64: 32, 1>}, {pipeline_mode = #tpu.pipeline_mode<synchronous>, transform_indices = @transform_7, window_bounds = array<i64: 80, 42>}, {pipeline_mode = #tpu.pipeline_mode<synchronous>, transform_indices = @transform_8, window_bounds = array<i64: 80, 32>}, {pipeline_mode = #tpu.pipeline_mode<synchronous>, transform_indices = @transform_9, window_bounds = array<i64: 80, 1>}, {pipeline_mode = #tpu.pipeline_mode<synchronous>, transform_indices = @transform_10, window_bounds = array<i64: 40, 80>}, {pipeline_mode = #tpu.pipeline_mode<synchronous>, transform_indices = @transform_11, window_bounds = array<i64: 40, 1>}, {pipeline_mode = #tpu.pipeline_mode<synchronous>, transform_indices = @transform_12, window_bounds = array<i64: 24, 40>}, {pipeline_mode = #tpu.pipeline_mode<synchronous>, transform_indices = @transform_13, window_bounds = array<i64: 24, 1>}, {transform_indices = @transform_14, window_bounds = array<i64: 24, 128>}]} {
    %c0 = arith.constant 0 : index
    %c0_0 = arith.constant 0 : index
    %0 = vector.load %arg1[%c0, %c0_0] : memref<42x128xf32, #tpu.memory_space<vmem>>, vector<42x128xf32>
    %c0_1 = arith.constant 0 : index
    %c0_2 = arith.constant 0 : index
    %1 = vector.load %arg2[%c0_1, %c0_2] : memref<512x42xf32, #tpu.memory_space<vmem>>, vector<512x42xf32>
    %cst = arith.constant dense<0.000000e+00> : vector<512x128xf32>
    %2 = tpu.matmul %1, %0, %cst {dimension_numbers = #tpu.dot_dimension_numbers<[1], [0], [0], [1], [0, 0, 1, 1], [], []>} : vector<512x42xf32>, vector<42x128xf32>, vector<512x128xf32> -> vector<512x128xf32>
    %c0_3 = arith.constant 0 : index
    %c0_4 = arith.constant 0 : index
    %3 = vector.load %arg3[%c0_3, %c0_4] : memref<512x1xf32, #tpu.memory_space<vmem>>, vector<512x1xf32>
    %4 = vector.broadcast %3 : vector<512x1xf32> to vector<512x128xf32>
    %5 = arith.addf %2, %4 : vector<512x128xf32>
    %cst_5 = arith.constant 0.000000e+00 : f32
    %6 = vector.broadcast %cst_5 : f32 to vector<512x128xf32>
    %7 = arith.maximumf %5, %6 : vector<512x128xf32>
    %c0_6 = arith.constant 0 : index
    %c0_7 = arith.constant 0 : index
    %8 = vector.load %arg4[%c0_6, %c0_7] : memref<256x512xf32, #tpu.memory_space<vmem>>, vector<256x512xf32>
    %cst_8 = arith.constant dense<0.000000e+00> : vector<256x128xf32>
    %9 = tpu.matmul %8, %7, %cst_8 {dimension_numbers = #tpu.dot_dimension_numbers<[1], [0], [0], [1], [0, 0, 1, 1], [], []>} : vector<256x512xf32>, vector<512x128xf32>, vector<256x128xf32> -> vector<256x128xf32>
    %c0_9 = arith.constant 0 : index
    %c0_10 = arith.constant 0 : index
    %10 = vector.load %arg5[%c0_9, %c0_10] : memref<256x1xf32, #tpu.memory_space<vmem>>, vector<256x1xf32>
    %11 = vector.broadcast %10 : vector<256x1xf32> to vector<256x128xf32>
    %12 = arith.addf %9, %11 : vector<256x128xf32>
    %cst_11 = arith.constant 0.000000e+00 : f32
    %13 = vector.broadcast %cst_11 : f32 to vector<256x128xf32>
    %14 = arith.maximumf %12, %13 : vector<256x128xf32>
    %c0_12 = arith.constant 0 : index
    %c0_13 = arith.constant 0 : index
    %15 = vector.load %arg6[%c0_12, %c0_13] : memref<32x256xf32, #tpu.memory_space<vmem>>, vector<32x256xf32>
    %cst_14 = arith.constant dense<0.000000e+00> : vector<32x128xf32>
    %16 = tpu.matmul %15, %14, %cst_14 {dimension_numbers = #tpu.dot_dimension_numbers<[1], [0], [0], [1], [0, 0, 1, 1], [], []>} : vector<32x256xf32>, vector<256x128xf32>, vector<32x128xf32> -> vector<32x128xf32>
    %c0_15 = arith.constant 0 : index
    %c0_16 = arith.constant 0 : index
    %17 = vector.load %arg7[%c0_15, %c0_16] : memref<32x1xf32, #tpu.memory_space<vmem>>, vector<32x1xf32>
    %18 = vector.broadcast %17 : vector<32x1xf32> to vector<32x128xf32>
    %19 = arith.addf %16, %18 : vector<32x128xf32>
    %c0_17 = arith.constant 0 : index
    %c0_18 = arith.constant 0 : index
    %20 = vector.load %arg8[%c0_17, %c0_18] : memref<80x42xf32, #tpu.memory_space<vmem>>, vector<80x42xf32>
    %cst_19 = arith.constant dense<0.000000e+00> : vector<80x128xf32>
    %21 = tpu.matmul %20, %0, %cst_19 {dimension_numbers = #tpu.dot_dimension_numbers<[1], [0], [0], [1], [0, 0, 1, 1], [], []>} : vector<80x42xf32>, vector<42x128xf32>, vector<80x128xf32> -> vector<80x128xf32>
    %c0_20 = arith.constant 0 : index
    %c0_21 = arith.constant 0 : index
    %22 = vector.load %arg9[%c0_20, %c0_21] : memref<80x32xf32, #tpu.memory_space<vmem>>, vector<80x32xf32>
    %cst_22 = arith.constant dense<0.000000e+00> : vector<80x128xf32>
    %23 = tpu.matmul %22, %19, %cst_22 {dimension_numbers = #tpu.dot_dimension_numbers<[1], [0], [0], [1], [0, 0, 1, 1], [], []>} : vector<80x32xf32>, vector<32x128xf32>, vector<80x128xf32> -> vector<80x128xf32>
    %24 = arith.addf %21, %23 : vector<80x128xf32>
    %c0_23 = arith.constant 0 : index
    %c0_24 = arith.constant 0 : index
    %25 = vector.load %arg10[%c0_23, %c0_24] : memref<80x1xf32, #tpu.memory_space<vmem>>, vector<80x1xf32>
    %26 = vector.broadcast %25 : vector<80x1xf32> to vector<80x128xf32>
    %27 = arith.addf %24, %26 : vector<80x128xf32>
    %cst_25 = arith.constant 0.000000e+00 : f32
    %28 = vector.broadcast %cst_25 : f32 to vector<80x128xf32>
    %29 = arith.maximumf %27, %28 : vector<80x128xf32>
    %c0_26 = arith.constant 0 : index
    %c0_27 = arith.constant 0 : index
    %30 = vector.load %arg11[%c0_26, %c0_27] : memref<40x80xf32, #tpu.memory_space<vmem>>, vector<40x80xf32>
    %cst_28 = arith.constant dense<0.000000e+00> : vector<40x128xf32>
    %31 = tpu.matmul %30, %29, %cst_28 {dimension_numbers = #tpu.dot_dimension_numbers<[1], [0], [0], [1], [0, 0, 1, 1], [], []>} : vector<40x80xf32>, vector<80x128xf32>, vector<40x128xf32> -> vector<40x128xf32>
    %c0_29 = arith.constant 0 : index
    %c0_30 = arith.constant 0 : index
    %32 = vector.load %arg12[%c0_29, %c0_30] : memref<40x1xf32, #tpu.memory_space<vmem>>, vector<40x1xf32>
    %33 = vector.broadcast %32 : vector<40x1xf32> to vector<40x128xf32>
    %34 = arith.addf %31, %33 : vector<40x128xf32>
    %cst_31 = arith.constant 0.000000e+00 : f32
    %35 = vector.broadcast %cst_31 : f32 to vector<40x128xf32>
    %36 = arith.maximumf %34, %35 : vector<40x128xf32>
    %c0_32 = arith.constant 0 : index
    %c0_33 = arith.constant 0 : index
    %37 = vector.load %arg13[%c0_32, %c0_33] : memref<24x40xf32, #tpu.memory_space<vmem>>, vector<24x40xf32>
    %cst_34 = arith.constant dense<0.000000e+00> : vector<24x128xf32>
    %38 = tpu.matmul %37, %36, %cst_34 {dimension_numbers = #tpu.dot_dimension_numbers<[1], [0], [0], [1], [0, 0, 1, 1], [], []>} : vector<24x40xf32>, vector<40x128xf32>, vector<24x128xf32> -> vector<24x128xf32>
    %c0_35 = arith.constant 0 : index
    %c0_36 = arith.constant 0 : index
    %39 = vector.load %arg14[%c0_35, %c0_36] : memref<24x1xf32, #tpu.memory_space<vmem>>, vector<24x1xf32>
    %40 = vector.broadcast %39 : vector<24x1xf32> to vector<24x128xf32>
    %41 = arith.addf %38, %40 : vector<24x128xf32>
    %c0_37 = arith.constant 0 : index
    %c0_38 = arith.constant 0 : index
    %42 = vector.load %arg15[%c0_37, %c0_38] : memref<24x128xf32, #tpu.memory_space<vmem>>, vector<24x128xf32>
    tpu.vector_store %arg15[%c0_37, %c0_38], %41 {strides = array<i32>} : memref<24x128xf32, #tpu.memory_space<vmem>>, vector<24x128xf32>,
    return
  }
  func.func @transform_0(%arg0: i32) -> (i32, i32) {
    %c0_i32 = arith.constant 0 : i32
    %c0_i32_0 = arith.constant 0 : i32
    return %c0_i32, %arg0 : i32, i32
  }
  func.func @transform_1(%arg0: i32) -> (i32, i32) {
    %c0_i32 = arith.constant 0 : i32
    %c0_i32_0 = arith.constant 0 : i32
    %c0_i32_1 = arith.constant 0 : i32
    return %c0_i32, %c0_i32_0 : i32, i32
  }
  func.func @transform_2(%arg0: i32) -> (i32, i32) {
    %c0_i32 = arith.constant 0 : i32
    %c0_i32_0 = arith.constant 0 : i32
    %c0_i32_1 = arith.constant 0 : i32
    return %c0_i32, %c0_i32_0 : i32, i32
  }
  func.func @transform_3(%arg0: i32) -> (i32, i32) {
    %c0_i32 = arith.constant 0 : i32
    %c0_i32_0 = arith.constant 0 : i32
    %c0_i32_1 = arith.constant 0 : i32
    return %c0_i32, %c0_i32_0 : i32, i32
  }
  func.func @transform_4(%arg0: i32) -> (i32, i32) {
    %c0_i32 = arith.constant 0 : i32
    %c0_i32_0 = arith.constant 0 : i32
    %c0_i32_1 = arith.constant 0 : i32
    return %c0_i32, %c0_i32_0 : i32, i32
  }
  func.func @transform_5(%arg0: i32) -> (i32, i32) {
    %c0_i32 = arith.constant 0 : i32
    %c0_i32_0 = arith.constant 0 : i32
    %c0_i32_1 = arith.constant 0 : i32
    return %c0_i32, %c0_i32_0 : i32, i32
  }
  func.func @transform_6(%arg0: i32) -> (i32, i32) {
    %c0_i32 = arith.constant 0 : i32
    %c0_i32_0 = arith.constant 0 : i32
    %c0_i32_1 = arith.constant 0 : i32
    return %c0_i32, %c0_i32_0 : i32, i32
  }
  func.func @transform_7(%arg0: i32) -> (i32, i32) {
    %c0_i32 = arith.constant 0 : i32
    %c0_i32_0 = arith.constant 0 : i32
    %c0_i32_1 = arith.constant 0 : i32
    return %c0_i32, %c0_i32_0 : i32, i32
  }
  func.func @transform_8(%arg0: i32) -> (i32, i32) {
    %c0_i32 = arith.constant 0 : i32
    %c0_i32_0 = arith.constant 0 : i32
    %c0_i32_1 = arith.constant 0 : i32
    return %c0_i32, %c0_i32_0 : i32, i32
  }
  func.func @transform_9(%arg0: i32) -> (i32, i32) {
    %c0_i32 = arith.constant 0 : i32
    %c0_i32_0 = arith.constant 0 : i32
    %c0_i32_1 = arith.constant 0 : i32
    return %c0_i32, %c0_i32_0 : i32, i32
  }
  func.func @transform_10(%arg0: i32) -> (i32, i32) {
    %c0_i32 = arith.constant 0 : i32
    %c0_i32_0 = arith.constant 0 : i32
    %c0_i32_1 = arith.constant 0 : i32
    return %c0_i32, %c0_i32_0 : i32, i32
  }
  func.func @transform_11(%arg0: i32) -> (i32, i32) {
    %c0_i32 = arith.constant 0 : i32
    %c0_i32_0 = arith.constant 0 : i32
    %c0_i32_1 = arith.constant 0 : i32
    return %c0_i32, %c0_i32_0 : i32, i32
  }
  func.func @transform_12(%arg0: i32) -> (i32, i32) {
    %c0_i32 = arith.constant 0 : i32
    %c0_i32_0 = arith.constant 0 : i32
    %c0_i32_1 = arith.constant 0 : i32
    return %c0_i32, %c0_i32_0 : i32, i32
  }
  func.func @transform_13(%arg0: i32) -> (i32, i32) {
    %c0_i32 = arith.constant 0 : i32
    %c0_i32_0 = arith.constant 0 : i32
    %c0_i32_1 = arith.constant 0 : i32
    return %c0_i32, %c0_i32_0 : i32, i32
  }
  func.func @transform_14(%arg0: i32) -> (i32, i32) {
    %c0_i32 = arith.constant 0 : i32
    %c0_i32_0 = arith.constant 0 : i32
    return %c0_i32, %arg0 : i32, i32
  }
}

</mosaic_0001>

<llo_original>
// kernel: tile.49
$region0: #{tile.49}
  %s0 = inlined_call_operand.vmem [shape: f32[8,10,32], index: 0, kind: input, shape index: {}]
  %s1 = inlined_call_operand.vmem [shape: f32[80,32], index: 1, kind: output, shape index: {}]
  %v2 = vld [vmem:[%s0] sm:$0xff]
  %vm3 = vcmask 261120
  %4 = vst.msk [vmem:[%s1] sm:$0xff] %vm3, %v2
  %s5 = scalar_lea.vmem %s0, 8
  %v6 = vld [vmem:[%s5] sm:$0x3]
  %vm7 = vcmask 261120
  %s8 = scalar_lea.vmem %s1, 8
  %9 = vst.msk [vmem:[%s8] sm:$0x3] %vm7, %v6
  %s10 = scalar_lea.vmem %s0, 16
  %v11 = vld [vmem:[%s10] sm:$0xff]
  %vm12 = vcmask 261120
  %s13 = scalar_lea.vmem %s1, 10
  %14 = vst.msk [vmem:[%s13] sm:$0xff] %vm12, %v11
  %s15 = scalar_lea.vmem %s0, 24
  %v16 = vld [vmem:[%s15] sm:$0x3]
  %vm17 = vcmask 261120
  %s18 = scalar_lea.vmem %s1, 18
  %19 = vst.msk [vmem:[%s18] sm:$0x3] %vm17, %v16
  %s20 = scalar_lea.vmem %s0, 32
  %v21 = vld [vmem:[%s20] sm:$0xff]
  %vm22 = vcmask 261120
  %s23 = scalar_lea.vmem %s1, 20
  %24 = vst.msk [vmem:[%s23] sm:$0xff] %vm22, %v21
  %s25 = scalar_lea.vmem %s0, 40
  %v26 = vld [vmem:[%s25] sm:$0x3]
  %vm27 = vcmask 261120
  %s28 = scalar_lea.vmem %s1, 28
  %29 = vst.msk [vmem:[%s28] sm:$0x3] %vm27, %v26
  %s30 = scalar_lea.vmem %s0, 48
  %v31 = vld [vmem:[%s30] sm:$0xff]
  %vm32 = vcmask 261120
  %s33 = scalar_lea.vmem %s1, 30
  %34 = vst.msk [vmem:[%s33] sm:$0xff] %vm32, %v31
  %s35 = scalar_lea.vmem %s0, 56
  %v36 = vld [vmem:[%s35] sm:$0x3]
  %vm37 = vcmask 261120
  %s38 = scalar_lea.vmem %s1, 38
  %39 = vst.msk [vmem:[%s38] sm:$0x3] %vm37, %v36
  %s40 = scalar_lea.vmem %s0, 64
  %v41 = vld [vmem:[%s40] sm:$0xff]
  %vm42 = vcmask 261120
  %s43 = scalar_lea.vmem %s1, 40
  %44 = vst.msk [vmem:[%s43] sm:$0xff] %vm42, %v41
  %s45 = scalar_lea.vmem %s0, 72
  %v46 = vld [vmem:[%s45] sm:$0x3]
  %vm47 = vcmask 261120
  %s48 = scalar_lea.vmem %s1, 48
  %49 = vst.msk [vmem:[%s48] sm:$0x3] %vm47, %v46
  %s50 = scalar_lea.vmem %s0, 80
  %v51 = vld [vmem:[%s50] sm:$0xff]
  %vm52 = vcmask 261120
  %s53 = scalar_lea.vmem %s1, 50
  %54 = vst.msk [vmem:[%s53] sm:$0xff] %vm52, %v51
  %s55 = scalar_lea.vmem %s0, 88
  %v56 = vld [vmem:[%s55] sm:$0x3]
  %vm57 = vcmask 261120
  %s58 = scalar_lea.vmem %s1, 58
  %59 = vst.msk [vmem:[%s58] sm:$0x3] %vm57, %v56
  %s60 = scalar_lea.vmem %s0, 96
  %v61 = vld [vmem:[%s60] sm:$0xff]
  %vm62 = vcmask 261120
  %s63 = scalar_lea.vmem %s1, 60
  %64 = vst.msk [vmem:[%s63] sm:$0xff] %vm62, %v61
  %s65 = scalar_lea.vmem %s0, 104
  %v66 = vld [vmem:[%s65] sm:$0x3]
  %vm67 = vcmask 261120
  %s68 = scalar_lea.vmem %s1, 68
  %69 = vst.msk [vmem:[%s68] sm:$0x3] %vm67, %v66
  %s70 = scalar_lea.vmem %s0, 112
  %v71 = vld [vmem:[%s70] sm:$0xff]
  %vm72 = vcmask 261120
  %s73 = scalar_lea.vmem %s1, 70
  %74 = vst.msk [vmem:[%s73] sm:$0xff] %vm72, %v71
  %s75 = scalar_lea.vmem %s0, 120
  %v76 = vld [vmem:[%s75] sm:$0x3]
  %vm77 = vcmask 261120
  %s78 = scalar_lea.vmem %s1, 78
  %79 = vst.msk [vmem:[%s78] sm:$0x3] %vm77, %v76

// kernel: tile.44
$region0: #{tile.44}
  %s0 = inlined_call_operand.vmem [shape: f32[8,64,10], index: 0, kind: input, shape index: {}]
  %s1 = inlined_call_operand.vmem [shape: f32[512,10], index: 1, kind: output, shape index: {}]
  %v2 = vld [vmem:[%s0] ss:$2 sm:$0xff]
  %vm3 = vcmask 523264
  %4 = vst.msk [vmem:[%s1] ss:$8 sm:$0xf] %vm3, %v2
  %s5 = scalar_lea.vmem %s1, 4294967265
  %6 = vst.msk [vmem:[%s5] ss:$8 sm:$0xf0] %vm3, %v2
  %s7 = scalar_lea.vmem %s0, 16
  %v8 = vld [vmem:[%s7] ss:$2 sm:$0xff]
  %vm9 = vcmask 523264
  %s10 = scalar_lea.vmem %s1, 2
  %11 = vst.msk [vmem:[%s10] ss:$8 sm:$0xf] %vm9, %v8
  %s12 = scalar_lea.vmem %s1, 4294967267
  %13 = vst.msk [vmem:[%s12] ss:$8 sm:$0xf0] %vm9, %v8
  %s14 = scalar_lea.vmem %s0, 32
  %v15 = vld [vmem:[%s14] ss:$2 sm:$0xff]
  %vm16 = vcmask 523264
  %s17 = scalar_lea.vmem %s1, 4
  %18 = vst.msk [vmem:[%s17] ss:$8 sm:$0xf] %vm16, %v15
  %s19 = scalar_lea.vmem %s1, 4294967269
  %20 = vst.msk [vmem:[%s19] ss:$8 sm:$0xf0] %vm16, %v15
  %s21 = scalar_lea.vmem %s0, 48
  %v22 = vld [vmem:[%s21] ss:$2 sm:$0xff]
  %vm23 = vcmask 523264
  %s24 = scalar_lea.vmem %s1, 6
  %25 = vst.msk [vmem:[%s24] ss:$8 sm:$0xf] %vm23, %v22
  %s26 = scalar_lea.vmem %s1, 4294967271
  %27 = vst.msk [vmem:[%s26] ss:$8 sm:$0xf0] %vm23, %v22
  %s28 = scalar_lea.vmem %s0, 64
  %v29 = vld [vmem:[%s28] ss:$2 sm:$0xff]
  %vm30 = vcmask 523264
  %s31 = scalar_lea.vmem %s1, 32
  %32 = vst.msk [vmem:[%s31] ss:$8 sm:$0xf] %vm30, %v29
  %s33 = scalar_lea.vmem %s1, 1
  %34 = vst.msk [vmem:[%s33] ss:$8 sm:$0xf0] %vm30, %v29
  %s35 = scalar_lea.vmem %s0, 1
  %v36 = vld [vmem:[%s35] ss:$8 sm:$0xf]
  %s37 = scalar_lea.vmem %s0, 1
  %v38 = vld [vmem:[%s37] ss:$8 sm:$0xf0]
  %vm39 = vcmask 1047556
  %v40 = vsel %vm39, %v38, %v36
  %41 = vrot.lane.b32.xlu0 %v40, 64
  %v42 = vpop.permute.xlu0 %41
  %vm43 = vcmask 1048064
  %44 = vst.msk [vmem:[%s1] sm:$0xff] %vm43, %v42
  %s45 = scalar_lea.vmem %s0, 65
  %s46 = smov 3
  %v47 = vld [vmem:[%s45] ss:$8 sm:%s46]
  %s48 = scalar_lea.vmem %s0, 4294967283
  %v49 = vld [vmem:[%s48] ss:$8 sm:$0x3c]
  %vm50 = vcmask 1045506
  %v51 = vsel %vm50, %v49, %v47
  %s52 = scalar_lea.vmem %s0, 4294967283
  %s53 = smov 192
  %v54 = vld [vmem:[%s52] ss:$8 sm:%s53]
  %vm55 = vcmask 1047558
  %v56 = vsel %vm55, %v54, %v51
  %57 = vrot.lane.b32.xlu0 %v56, 64
  %v58 = vpop.permute.xlu0 %57
  %vm59 = vcmask 1048064
  %s60 = scalar_lea.vmem %s1, 32
  %61 = vst.msk [vmem:[%s60] sm:$0x3] %vm59, %v58
  %s62 = scalar_lea.vmem %s1, 6
  %63 = vst.msk [vmem:[%s62] sm:$0xfc] %vm59, %v58
  %s64 = scalar_lea.vmem %s0, 67
  %s65 = smov 3
  %v66 = vld [vmem:[%s64] ss:$8 sm:%s65]
  %s67 = scalar_lea.vmem %s0, 35
  %s68 = smov 12
  %v69 = vld [vmem:[%s67] ss:$8 sm:%s68]
  %vm70 = vcmask 1043458
  %v71 = vsel %vm70, %v69, %v66
  %s72 = scalar_lea.vmem %s0, 4294967269
  %v73 = vld [vmem:[%s72] ss:$8 sm:$0xf0]
  %vm74 = vcmask 1047556
  %v75 = vsel %vm74, %v73, %v71
  %76 = vrot.lane.b32.xlu0 %v75, 64
  %v77 = vpop.permute.xlu0 %76
  %vm78 = vcmask 1048064
  %s79 = scalar_lea.vmem %s1, 40
  %80 = vst.msk [vmem:[%s79] sm:$0x3] %vm78, %v77
  %s81 = scalar_lea.vmem %s1, 12
  %82 = vst.msk [vmem:[%s81] sm:$0xfc] %vm78, %v77
  %s83 = scalar_lea.vmem %s0, 69
  %s84 = smov 3
  %v85 = vld [vmem:[%s83] ss:$8 sm:%s84]
  %s86 = scalar_lea.vmem %s0, 21
  %v87 = vld [vmem:[%s86] ss:$8 sm:$0x3c]
  %vm88 = vcmask 1045506
  %v89 = vsel %vm88, %v87, %v85
  %s90 = scalar_lea.vmem %s0, 4294967255
  %s91 = smov 192
  %v92 = vld [vmem:[%s90] ss:$8 sm:%s91]
  %vm93 = vcmask 1047558
  %v94 = vsel %vm93, %v92, %v89
  %95 = vrot.lane.b32.xlu0 %v94, 64
  %v96 = vpop.permute.xlu0 %95
  %vm97 = vcmask 1048064
  %s98 = scalar_lea.vmem %s1, 48
  %99 = vst.msk [vmem:[%s98] sm:$0x3] %vm97, %v96
  %s100 = scalar_lea.vmem %s1, 18
  %101 = vst.msk [vmem:[%s100] sm:$0xfc] %vm97, %v96
  %s102 = scalar_lea.vmem %s0, 71
  %s103 = smov 3
  %v104 = vld [vmem:[%s102] ss:$8 sm:%s103]
  %s105 = scalar_lea.vmem %s0, 7
  %v106 = vld [vmem:[%s105] ss:$8 sm:$0x3c]
  %vm107 = vcmask 1045506
  %v108 = vsel %vm107, %v106, %v104
  %s109 = scalar_lea.vmem %s0, 7
  %s110 = smov 192
  %v111 = vld [vmem:[%s109] ss:$8 sm:%s110]
  %vm112 = vcmask 1047558
  %v113 = vsel %vm112, %v111, %v108
  %114 = vrot.lane.b32.xlu0 %v113, 64
  %v115 = vpop.permute.xlu0 %114
  %vm116 = vcmask 1048064
  %s117 = scalar_lea.vmem %s1, 56
  %118 = vst.msk [vmem:[%s117] sm:$0x3] %vm116, %v115
  %s119 = scalar_lea.vmem %s1, 24
  %120 = vst.msk [vmem:[%s119] sm:$0xfc] %vm116, %v115

// kernel: tile.53
$region0: #{tile.53}
  #allocation0 [shape = 's32[1]{0}', space=sflag, size = 0x4, scoped, tag = 'scoped memory for tile.53']
  %s0 = inlined_call_operand.vmem [shape: f32[64], index: 0, kind: input, shape index: {}]
  %s1 = inlined_call_operand.vmem [shape: f32[8,64], index: 1, kind: output, shape index: {}]
  // Predicated region
  $region2: #{tile.53} parent=0 // pred_check
    _
  $region3: #{tile.53} parent=0 // pred_check_branch
    %3 = sbr.rel (0) target = $region5
  $region4: #{tile.53} parent=0 // pred_region
    _
  $region5: #{tile.53} parent=0 // pred_fallthru
    _
  %v4 = vld [vmem:[%s0] ss:$0 sm:$0xff]
  %5 = vst [vmem:[%s1] sm:$0xff] %v4

// kernel: tile.58
$region0: #{tile.58}
  #allocation0 [shape = 's32[1]{0}', space=sflag, size = 0x4, scoped, tag = 'scoped memory for tile.58']
  %s0 = inlined_call_operand.vmem [shape: f32[32], index: 0, kind: input, shape index: {}]
  %s1 = inlined_call_operand.vmem [shape: f32[8,32], index: 1, kind: output, shape index: {}]
  // Predicated region
  $region2: #{tile.58} parent=0 // pred_check
    _
  $region3: #{tile.58} parent=0 // pred_check_branch
    %3 = sbr.rel (0) target = $region5
  $region4: #{tile.58} parent=0 // pred_region
    _
  $region5: #{tile.58} parent=0 // pred_fallthru
    _
  %v4 = vld [vmem:[%s0] ss:$0 sm:$0xff]
  %5 = vst [vmem:[%s1] sm:$0xff] %v4

// kernel: tile.0
$region0: #{tile.0}
  %s0 = inlined_call_operand.vmem [shape: f32[8,64], index: 0, kind: input, shape index: {}]
  %s1 = inlined_call_operand.vmem [shape: f32[512,1], index: 1, kind: output, shape index: {}]
  %v2 = vld [vmem:[%s0] sm:$0xff]
  %vm3 = vcmask 7168
  %4 = vst.msk [vmem:[%s1] sm:$0x1] %vm3, %v2
  %s5 = scalar_lea.vmem %s1, 63
  %6 = vst.msk [vmem:[%s5] sm:$0x2] %vm3, %v2
  %s7 = scalar_lea.vmem %s1, 126
  %8 = vst.msk [vmem:[%s7] sm:$0x4] %vm3, %v2
  %s9 = scalar_lea.vmem %s1, 189
  %10 = vst.msk [vmem:[%s9] sm:$0x8] %vm3, %v2
  %s11 = scalar_lea.vmem %s1, 252
  %12 = vst.msk [vmem:[%s11] sm:$0x10] %vm3, %v2
  %s13 = scalar_lea.vmem %s1, 315
  %14 = vst.msk [vmem:[%s13] sm:$0x20] %vm3, %v2
  %s15 = scalar_lea.vmem %s1, 378
  %16 = vst.msk [vmem:[%s15] sm:$0x40] %vm3, %v2
  %s17 = scalar_lea.vmem %s1, 441
  %18 = vst.msk [vmem:[%s17] sm:$0x80] %vm3, %v2
  %v19 = vld [vmem:[%s0] sm:$0xff]
  %20 = vrot.lane.b32.xlu0 %v19, 127
  %v21 = vpop.permute.xlu0 %20
  %vm22 = vcmask 7168
  %s23 = scalar_lea.vmem %s1, 1
  %24 = vst.msk [vmem:[%s23] sm:$0x1] %vm22, %v21
  %s25 = scalar_lea.vmem %s1, 64
  %26 = vst.msk [vmem:[%s25] sm:$0x2] %vm22, %v21
  %s27 = scalar_lea.vmem %s1, 127
  %28 = vst.msk [vmem:[%s27] sm:$0x4] %vm22, %v21
  %s29 = scalar_lea.vmem %s1, 190
  %30 = vst.msk [vmem:[%s29] sm:$0x8] %vm22, %v21
  %s31 = scalar_lea.vmem %s1, 253
  %32 = vst.msk [vmem:[%s31] sm:$0x10] %vm22, %v21
  %s33 = scalar_lea.vmem %s1, 316
  %34 = vst.msk [vmem:[%s33] sm:$0x20] %vm22, %v21
  %s35 = scalar_lea.vmem %s1, 379
  %36 = vst.msk [vmem:[%s35] sm:$0x40] %vm22, %v21
  %s37 = scalar_lea.vmem %s1, 442
  %38 = vst.msk [vmem:[%s37] sm:$0x80] %vm22, %v21
  %v39 = vld [vmem:[%s0] sm:$0xff]
  %40 = vrot.lane.b32.xlu0 %v39, 126
  %v41 = vpop.permute.xlu0 %40
  %vm42 = vcmask 7168
  %s43 = scalar_lea.vmem %s1, 2
  %44 = vst.msk [vmem:[%s43] sm:$0x1] %vm42, %v41
  %s45 = scalar_lea.vmem %s1, 65
  %46 = vst.msk [vmem:[%s45] sm:$0x2] %vm42, %v41
  %s47 = scalar_lea.vmem %s1, 128
  %48 = vst.msk [vmem:[%s47] sm:$0x4] %vm42, %v41
  %s49 = scalar_lea.vmem %s1, 191
  %50 = vst.msk [vmem:[%s49] sm:$0x8] %vm42, %v41
  %s51 = scalar_lea.vmem %s1, 254
  %52 = vst.msk [vmem:[%s51] sm:$0x10] %vm42, %v41
  %s53 = scalar_lea.vmem %s1, 317
  %54 = vst.msk [vmem:[%s53] sm:$0x20] %vm42, %v41
  %s55 = scalar_lea.vmem %s1, 380
  %56 = vst.msk [vmem:[%s55] sm:$0x40] %vm42, %v41
  %s57 = scalar_lea.vmem %s1, 443
  %58 = vst.msk [vmem:[%s57] sm:$0x80] %vm42, %v41
  %v59 = vld [vmem:[%s0] sm:$0xff]
  %60 = vrot.lane.b32.xlu0 %v59, 125
  %v61 = vpop.permute.xlu0 %60
  %vm62 = vcmask 7168
  %s63 = scalar_lea.vmem %s1, 3
  %64 = vst.msk [vmem:[%s63] sm:$0x1] %vm62, %v61
  %s65 = scalar_lea.vmem %s1, 66
  %66 = vst.msk [vmem:[%s65] sm:$0x2] %vm62, %v61
  %s67 = scalar_lea.vmem %s1, 129
  %68 = vst.msk [vmem:[%s67] sm:$0x4] %vm62, %v61
  %s69 = scalar_lea.vmem %s1, 192
  %70 = vst.msk [vmem:[%s69] sm:$0x8] %vm62, %v61
  %s71 = scalar_lea.vmem %s1, 255
  %72 = vst.msk [vmem:[%s71] sm:$0x10] %vm62, %v61
  %s73 = scalar_lea.vmem %s1, 318
  %74 = vst.msk [vmem:[%s73] sm:$0x20] %vm62, %v61
  %s75 = scalar_lea.vmem %s1, 381
  %76 = vst.msk [vmem:[%s75] sm:$0x40] %vm62, %v61
  %s77 = scalar_lea.vmem %s1, 444
  %78 = vst.msk [vmem:[%s77] sm:$0x80] %vm62, %v61
  %v79 = vld [vmem:[%s0] sm:$0xff]
  %80 = vrot.lane.b32.xlu0 %v79, 124
  %v81 = vpop.permute.xlu0 %80
  %vm82 = vcmask 7168
  %s83 = scalar_lea.vmem %s1, 4
  %84 = vst.msk [vmem:[%s83] sm:$0x1] %vm82, %v81
  %s85 = scalar_lea.vmem %s1, 67
  %86 = vst.msk [vmem:[%s85] sm:$0x2] %vm82, %v81
  %s87 = scalar_lea.vmem %s1, 130
  %88 = vst.msk [vmem:[%s87] sm:$0x4] %vm82, %v81
  %s89 = scalar_lea.vmem %s1, 193
  %90 = vst.msk [vmem:[%s89] sm:$0x8] %vm82, %v81
  %s91 = scalar_lea.vmem %s1, 256
  %92 = vst.msk [vmem:[%s91] sm:$0x10] %vm82, %v81
  %s93 = scalar_lea.vmem %s1, 319
  %94 = vst.msk [vmem:[%s93] sm:$0x20] %vm82, %v81
  %s95 = scalar_lea.vmem %s1, 382
  %96 = vst.msk [vmem:[%s95] sm:$0x40] %vm82, %v81
  %s97 = scalar_lea.vmem %s1, 445
  %98 = vst.msk [vmem:[%s97] sm:$0x80] %vm82, %v81
  %v99 = vld [vmem:[%s0] sm:$0xff]
  %100 = vrot.lane.b32.xlu0 %v99, 123
  %v101 = vpop.permute.xlu0 %100
  %vm102 = vcmask 7168
  %s103 = scalar_lea.vmem %s1, 5
  %104 = vst.msk [vmem:[%s103] sm:$0x1] %vm102, %v101
  %s105 = scalar_lea.vmem %s1, 68
  %106 = vst.msk [vmem:[%s105] sm:$0x2] %vm102, %v101
  %s107 = scalar_lea.vmem %s1, 131
  %108 = vst.msk [vmem:[%s107] sm:$0x4] %vm102, %v101
  %s109 = scalar_lea.vmem %s1, 194
  %110 = vst.msk [vmem:[%s109] sm:$0x8] %vm102, %v101
  %s111 = scalar_lea.vmem %s1, 257
  %112 = vst.msk [vmem:[%s111] sm:$0x10] %vm102, %v101
  %s113 = scalar_lea.vmem %s1, 320
  %114 = vst.msk [vmem:[%s113] sm:$0x20] %vm102, %v101
  %s115 = scalar_lea.vmem %s1, 383
  %116 = vst.msk [vmem:[%s115] sm:$0x40] %vm102, %v101
  %s117 = scalar_lea.vmem %s1, 446
  %118 = vst.msk [vmem:[%s117] sm:$0x80] %vm102, %v101
  %v119 = vld [vmem:[%s0] sm:$0xff]
  %120 = vrot.lane.b32.xlu0 %v119, 122
  %v121 = vpop.permute.xlu0 %120
  %vm122 = vcmask 7168
  %s123 = scalar_lea.vmem %s1, 6
  %124 = vst.msk [vmem:[%s123] sm:$0x1] %vm122, %v121
  %s125 = scalar_lea.vmem %s1, 69
  %126 = vst.msk [vmem:[%s125] sm:$0x2] %vm122, %v121
  %s127 = scalar_lea.vmem %s1, 132
  %128 = vst.msk [vmem:[%s127] sm:$0x4] %vm122, %v121
  %s129 = scalar_lea.vmem %s1, 195
  %130 = vst.msk [vmem:[%s129] sm:$0x8] %vm122, %v121
  %s131 = scalar_lea.vmem %s1, 258
  %132 = vst.msk [vmem:[%s131] sm:$0x10] %vm122, %v121
  %s133 = scalar_lea.vmem %s1, 321
  %134 = vst.msk [vmem:[%s133] sm:$0x20] %vm122, %v121
  %s135 = scalar_lea.vmem %s1, 384
  %136 = vst.msk [vmem:[%s135] sm:$0x40] %vm122, %v121
  %s137 = scalar_lea.vmem %s1, 447
  %138 = vst.msk [vmem:[%s137] sm:$0x80] %vm122, %v121
  %v139 = vld [vmem:[%s0] sm:$0xff]
  %140 = vrot.lane.b32.xlu0 %v139, 121
  %v141 = vpop.permute.xlu0 %140
  %vm142 = vcmask 7168
  %s143 = scalar_lea.vmem %s1, 7
  %144 = vst.msk [vmem:[%s143] sm:$0x1] %vm142, %v141
  %s145 = scalar_lea.vmem %s1, 70
  %146 = vst.msk [vmem:[%s145] sm:$0x2] %vm142, %v141
  %s147 = scalar_lea.vmem %s1, 133
  %148 = vst.msk [vmem:[%s147] sm:$0x4] %vm142, %v141
  %s149 = scalar_lea.vmem %s1, 196
  %150 = vst.msk [vmem:[%s149] sm:$0x8] %vm142, %v141
  %s151 = scalar_lea.vmem %s1, 259
  %152 = vst.msk [vmem:[%s151] sm:$0x10] %vm142, %v141
  %s153 = scalar_lea.vmem %s1, 322
  %154 = vst.msk [vmem:[%s153] sm:$0x20] %vm142, %v141
  %s155 = scalar_lea.vmem %s1, 385
  %156 = vst.msk [vmem:[%s155] sm:$0x40] %vm142, %v141
  %s157 = scalar_lea.vmem %s1, 448
  %158 = vst.msk [vmem:[%s157] sm:$0x80] %vm142, %v141
  %v159 = vld [vmem:[%s0] sm:$0xff]
  %160 = vrot.lane.b32.xlu0 %v159, 120
  %v161 = vpop.permute.xlu0 %160
  %vm162 = vcmask 7168
  %s163 = scalar_lea.vmem %s1, 8
  %164 = vst.msk [vmem:[%s163] sm:$0x1] %vm162, %v161
  %s165 = scalar_lea.vmem %s1, 71
  %166 = vst.msk [vmem:[%s165] sm:$0x2] %vm162, %v161
  %s167 = scalar_lea.vmem %s1, 134
  %168 = vst.msk [vmem:[%s167] sm:$0x4] %vm162, %v161
  %s169 = scalar_lea.vmem %s1, 197
  %170 = vst.msk [vmem:[%s169] sm:$0x8] %vm162, %v161
  %s171 = scalar_lea.vmem %s1, 260
  %172 = vst.msk [vmem:[%s171] sm:$0x10] %vm162, %v161
  %s173 = scalar_lea.vmem %s1, 323
  %174 = vst.msk [vmem:[%s173] sm:$0x20] %vm162, %v161
  %s175 = scalar_lea.vmem %s1, 386
  %176 = vst.msk [vmem:[%s175] sm:$0x40] %vm162, %v161
  %s177 = scalar_lea.vmem %s1, 449
  %178 = vst.msk [vmem:[%s177] sm:$0x80] %vm162, %v161
  %v179 = vld [vmem:[%s0] sm:$0xff]
  %180 = vrot.lane.b32.xlu0 %v179, 119
  %v181 = vpop.permute.xlu0 %180
  %vm182 = vcmask 7168
  %s183 = scalar_lea.vmem %s1, 9
  %184 = vst.msk [vmem:[%s183] sm:$0x1] %vm182, %v181
  %s185 = scalar_lea.vmem %s1, 72
  %186 = vst.msk [vmem:[%s185] sm:$0x2] %vm182, %v181
  %s187 = scalar_lea.vmem %s1, 135
  %188 = vst.msk [vmem:[%s187] sm:$0x4] %vm182, %v181
  %s189 = scalar_lea.vmem %s1, 198
  %190 = vst.msk [vmem:[%s189] sm:$0x8] %vm182, %v181
  %s191 = scalar_lea.vmem %s1, 261
  %192 = vst.msk [vmem:[%s191] sm:$0x10] %vm182, %v181
  %s193 = scalar_lea.vmem %s1, 324
  %194 = vst.msk [vmem:[%s193] sm:$0x20] %vm182, %v181
  %s195 = scalar_lea.vmem %s1, 387
  %196 = vst.msk [vmem:[%s195] sm:$0x40] %vm182, %v181
  %s197 = scalar_lea.vmem %s1, 450
  %198 = vst.msk [vmem:[%s197] sm:$0x80] %vm182, %v181
  %v199 = vld [vmem:[%s0] sm:$0xff]
  %200 = vrot.lane.b32.xlu0 %v199, 118
  %v201 = vpop.permute.xlu0 %200
  %vm202 = vcmask 7168
  %s203 = scalar_lea.vmem %s1, 10
  %204 = vst.msk [vmem:[%s203] sm:$0x1] %vm202, %v201
  %s205 = scalar_lea.vmem %s1, 73
  %206 = vst.msk [vmem:[%s205] sm:$0x2] %vm202, %v201
  %s207 = scalar_lea.vmem %s1, 136
  %208 = vst.msk [vmem:[%s207] sm:$0x4] %vm202, %v201
  %s209 = scalar_lea.vmem %s1, 199
  %210 = vst.msk [vmem:[%s209] sm:$0x8] %vm202, %v201
  %s211 = scalar_lea.vmem %s1, 262
  %212 = vst.msk [vmem:[%s211] sm:$0x10] %vm202, %v201
  %s213 = scalar_lea.vmem %s1, 325
  %214 = vst.msk [vmem:[%s213] sm:$0x20] %vm202, %v201
  %s215 = scalar_lea.vmem %s1, 388
  %216 = vst.msk [vmem:[%s215] sm:$0x40] %vm202, %v201
  %s217 = scalar_lea.vmem %s1, 451
  %218 = vst.msk [vmem:[%s217] sm:$0x80] %vm202, %v201
  %v219 = vld [vmem:[%s0] sm:$0xff]
  %220 = vrot.lane.b32.xlu0 %v219, 117
  %v221 = vpop.permute.xlu0 %220
  %vm222 = vcmask 7168
  %s223 = scalar_lea.vmem %s1, 11
  %224 = vst.msk [vmem:[%s223] sm:$0x1] %vm222, %v221
  %s225 = scalar_lea.vmem %s1, 74
  %226 = vst.msk [vmem:[%s225] sm:$0x2] %vm222, %v221
  %s227 = scalar_lea.vmem %s1, 137
  %228 = vst.msk [vmem:[%s227] sm:$0x4] %vm222, %v221
  %s229 = scalar_lea.vmem %s1, 200
  %230 = vst.msk [vmem:[%s229] sm:$0x8] %vm222, %v221
  %s231 = scalar_lea.vmem %s1, 263
  %232 = vst.msk [vmem:[%s231] sm:$0x10] %vm222, %v221
  %s233 = scalar_lea.vmem %s1, 326
  %234 = vst.msk [vmem:[%s233] sm:$0x20] %vm222, %v221
  %s235 = scalar_lea.vmem %s1, 389
  %236 = vst.msk [vmem:[%s235] sm:$0x40] %vm222, %v221
  %s237 = scalar_lea.vmem %s1, 452
  %238 = vst.msk [vmem:[%s237] sm:$0x80] %vm222, %v221
  %v239 = vld [vmem:[%s0] sm:$0xff]
  %240 = vrot.lane.b32.xlu0 %v239, 116
  %v241 = vpop.permute.xlu0 %240
  %vm242 = vcmask 7168
  %s243 = scalar_lea.vmem %s1, 12
  %244 = vst.msk [vmem:[%s243] sm:$0x1] %vm242, %v241
  %s245 = scalar_lea.vmem %s1, 75
  %246 = vst.msk [vmem:[%s245] sm:$0x2] %vm242, %v241
  %s247 = scalar_lea.vmem %s1, 138
  %248 = vst.msk [vmem:[%s247] sm:$0x4] %vm242, %v241
  %s249 = scalar_lea.vmem %s1, 201
  %250 = vst.msk [vmem:[%s249] sm:$0x8] %vm242, %v241
  %s251 = scalar_lea.vmem %s1, 264
  %252 = vst.msk [vmem:[%s251] sm:$0x10] %vm242, %v241
  %s253 = scalar_lea.vmem %s1, 327
  %254 = vst.msk [vmem:[%s253] sm:$0x20] %vm242, %v241
  %s255 = scalar_lea.vmem %s1, 390
  %256 = vst.msk [vmem:[%s255] sm:$0x40] %vm242, %v241
  %s257 = scalar_lea.vmem %s1, 453
  %258 = vst.msk [vmem:[%s257] sm:$0x80] %vm242, %v241
  %v259 = vld [vmem:[%s0] sm:$0xff]
  %260 = vrot.lane.b32.xlu0 %v259, 115
  %v261 = vpop.permute.xlu0 %260
  %vm262 = vcmask 7168
  %s263 = scalar_lea.vmem %s1, 13
  %264 = vst.msk [vmem:[%s263] sm:$0x1] %vm262, %v261
  %s265 = scalar_lea.vmem %s1, 76
  %266 = vst.msk [vmem:[%s265] sm:$0x2] %vm262, %v261
  %s267 = scalar_lea.vmem %s1, 139
  %268 = vst.msk [vmem:[%s267] sm:$0x4] %vm262, %v261
  %s269 = scalar_lea.vmem %s1, 202
  %270 = vst.msk [vmem:[%s269] sm:$0x8] %vm262, %v261
  %s271 = scalar_lea.vmem %s1, 265
  %272 = vst.msk [vmem:[%s271] sm:$0x10] %vm262, %v261
  %s273 = scalar_lea.vmem %s1, 328
  %274 = vst.msk [vmem:[%s273] sm:$0x20] %vm262, %v261
  %s275 = scalar_lea.vmem %s1, 391
  %276 = vst.msk [vmem:[%s275] sm:$0x40] %vm262, %v261
  %s277 = scalar_lea.vmem %s1, 454
  %278 = vst.msk [vmem:[%s277] sm:$0x80] %vm262, %v261
  %v279 = vld [vmem:[%s0] sm:$0xff]
  %280 = vrot.lane.b32.xlu0 %v279, 114
  %v281 = vpop.permute.xlu0 %280
  %vm282 = vcmask 7168
  %s283 = scalar_lea.vmem %s1, 14
  %284 = vst.msk [vmem:[%s283] sm:$0x1] %vm282, %v281
  %s285 = scalar_lea.vmem %s1, 77
  %286 = vst.msk [vmem:[%s285] sm:$0x2] %vm282, %v281
  %s287 = scalar_lea.vmem %s1, 140
  %288 = vst.msk [vmem:[%s287] sm:$0x4] %vm282, %v281
  %s289 = scalar_lea.vmem %s1, 203
  %290 = vst.msk [vmem:[%s289] sm:$0x8] %vm282, %v281
  %s291 = scalar_lea.vmem %s1, 266
  %292 = vst.msk [vmem:[%s291] sm:$0x10] %vm282, %v281
  %s293 = scalar_lea.vmem %s1, 329
  %294 = vst.msk [vmem:[%s293] sm:$0x20] %vm282, %v281
  %s295 = scalar_lea.vmem %s1, 392
  %296 = vst.msk [vmem:[%s295] sm:$0x40] %vm282, %v281
  %s297 = scalar_lea.vmem %s1, 455
  %298 = vst.msk [vmem:[%s297] sm:$0x80] %vm282, %v281
  %v299 = vld [vmem:[%s0] sm:$0xff]
  %300 = vrot.lane.b32.xlu0 %v299, 113
  %v301 = vpop.permute.xlu0 %300
  %vm302 = vcmask 7168
  %s303 = scalar_lea.vmem %s1, 15
  %304 = vst.msk [vmem:[%s303] sm:$0x1] %vm302, %v301
  %s305 = scalar_lea.vmem %s1, 78
  %306 = vst.msk [vmem:[%s305] sm:$0x2] %vm302, %v301
  %s307 = scalar_lea.vmem %s1, 141
  %308 = vst.msk [vmem:[%s307] sm:$0x4] %vm302, %v301
  %s309 = scalar_lea.vmem %s1, 204
  %310 = vst.msk [vmem:[%s309] sm:$0x8] %vm302, %v301
  %s311 = scalar_lea.vmem %s1, 267
  %312 = vst.msk [vmem:[%s311] sm:$0x10] %vm302, %v301
  %s313 = scalar_lea.vmem %s1, 330
  %314 = vst.msk [vmem:[%s313] sm:$0x20] %vm302, %v301
  %s315 = scalar_lea.vmem %s1, 393
  %316 = vst.msk [vmem:[%s315] sm:$0x40] %vm302, %v301
  %s317 = scalar_lea.vmem %s1, 456
  %318 = vst.msk [vmem:[%s317] sm:$0x80] %vm302, %v301
  %v319 = vld [vmem:[%s0] sm:$0xff]
  %320 = vrot.lane.b32.xlu0 %v319, 112
  %v321 = vpop.permute.xlu0 %320
  %vm322 = vcmask 7168
  %s323 = scalar_lea.vmem %s1, 16
  %324 = vst.msk [vmem:[%s323] sm:$0x1] %vm322, %v321
  %s325 = scalar_lea.vmem %s1, 79
  %326 = vst.msk [vmem:[%s325] sm:$0x2] %vm322, %v321
  %s327 = scalar_lea.vmem %s1, 142
  %328 = vst.msk [vmem:[%s327] sm:$0x4] %vm322, %v321
  %s329 = scalar_lea.vmem %s1, 205
  %330 = vst.msk [vmem:[%s329] sm:$0x8] %vm322, %v321
  %s331 = scalar_lea.vmem %s1, 268
  %332 = vst.msk [vmem:[%s331] sm:$0x10] %vm322, %v321
  %s333 = scalar_lea.vmem %s1, 331
  %334 = vst.msk [vmem:[%s333] sm:$0x20] %vm322, %v321
  %s335 = scalar_lea.vmem %s1, 394
  %336 = vst.msk [vmem:[%s335] sm:$0x40] %vm322, %v321
  %s337 = scalar_lea.vmem %s1, 457
  %338 = vst.msk [vmem:[%s337] sm:$0x80] %vm322, %v321
  %v339 = vld [vmem:[%s0] sm:$0xff]
  %340 = vrot.lane.b32.xlu0 %v339, 111
  %v341 = vpop.permute.xlu0 %340
  %vm342 = vcmask 7168
  %s343 = scalar_lea.vmem %s1, 17
  %344 = vst.msk [vmem:[%s343] sm:$0x1] %vm342, %v341
  %s345 = scalar_lea.vmem %s1, 80
  %346 = vst.msk [vmem:[%s345] sm:$0x2] %vm342, %v341
  %s347 = scalar_lea.vmem %s1, 143
  %348 = vst.msk [vmem:[%s347] sm:$0x4] %vm342, %v341
  %s349 = scalar_lea.vmem %s1, 206
  %350 = vst.msk [vmem:[%s349] sm:$0x8] %vm342, %v341
  %s351 = scalar_lea.vmem %s1, 269
  %352 = vst.msk [vmem:[%s351] sm:$0x10] %vm342, %v341
  %s353 = scalar_lea.vmem %s1, 332
  %354 = vst.msk [vmem:[%s353] sm:$0x20] %vm342, %v341
  %s355 = scalar_lea.vmem %s1, 395
  %356 = vst.msk [vmem:[%s355] sm:$0x40] %vm342, %v341
  %s357 = scalar_lea.vmem %s1, 458
  %358 = vst.msk [vmem:[%s357] sm:$0x80] %vm342, %v341
  %v359 = vld [vmem:[%s0] sm:$0xff]
  %360 = vrot.lane.b32.xlu0 %v359, 110
  %v361 = vpop.permute.xlu0 %360
  %vm362 = vcmask 7168
  %s363 = scalar_lea.vmem %s1, 18
  %364 = vst.msk [vmem:[%s363] sm:$0x1] %vm362, %v361
  %s365 = scalar_lea.vmem %s1, 81
  %366 = vst.msk [vmem:[%s365] sm:$0x2] %vm362, %v361
  %s367 = scalar_lea.vmem %s1, 144
  %368 = vst.msk [vmem:[%s367] sm:$0x4] %vm362, %v361
  %s369 = scalar_lea.vmem %s1, 207
  %370 = vst.msk [vmem:[%s369] sm:$0x8] %vm362, %v361
  %s371 = scalar_lea.vmem %s1, 270
  %372 = vst.msk [vmem:[%s371] sm:$0x10] %vm362, %v361
  %s373 = scalar_lea.vmem %s1, 333
  %374 = vst.msk [vmem:[%s373] sm:$0x20] %vm362, %v361
  %s375 = scalar_lea.vmem %s1, 396
  %376 = vst.msk [vmem:[%s375] sm:$0x40] %vm362, %v361
  %s377 = scalar_lea.vmem %s1, 459
  %378 = vst.msk [vmem:[%s377] sm:$0x80] %vm362, %v361
  %v379 = vld [vmem:[%s0] sm:$0xff]
  %380 = vrot.lane.b32.xlu0 %v379, 109
  %v381 = vpop.permute.xlu0 %380
  %vm382 = vcmask 7168
  %s383 = scalar_lea.vmem %s1, 19
  %384 = vst.msk [vmem:[%s383] sm:$0x1] %vm382, %v381
  %s385 = scalar_lea.vmem %s1, 82
  %386 = vst.msk [vmem:[%s385] sm:$0x2] %vm382, %v381
  %s387 = scalar_lea.vmem %s1, 145
  %388 = vst.msk [vmem:[%s387] sm:$0x4] %vm382, %v381
  %s389 = scalar_lea.vmem %s1, 208
  %390 = vst.msk [vmem:[%s389] sm:$0x8] %vm382, %v381
  %s391 = scalar_lea.vmem %s1, 271
  %392 = vst.msk [vmem:[%s391] sm:$0x10] %vm382, %v381
  %s393 = scalar_lea.vmem %s1, 334
  %394 = vst.msk [vmem:[%s393] sm:$0x20] %vm382, %v381
  %s395 = scalar_lea.vmem %s1, 397
  %396 = vst.msk [vmem:[%s395] sm:$0x40] %vm382, %v381
  %s397 = scalar_lea.vmem %s1, 460
  %398 = vst.msk [vmem:[%s397] sm:$0x80] %vm382, %v381
  %v399 = vld [vmem:[%s0] sm:$0xff]
  %400 = vrot.lane.b32.xlu0 %v399, 108
  %v401 = vpop.permute.xlu0 %400
  %vm402 = vcmask 7168
  %s403 = scalar_lea.vmem %s1, 20
  %404 = vst.msk [vmem:[%s403] sm:$0x1] %vm402, %v401
  %s405 = scalar_lea.vmem %s1, 83
  %406 = vst.msk [vmem:[%s405] sm:$0x2] %vm402, %v401
  %s407 = scalar_lea.vmem %s1, 146
  %408 = vst.msk [vmem:[%s407] sm:$0x4] %vm402, %v401
  %s409 = scalar_lea.vmem %s1, 209
  %410 = vst.msk [vmem:[%s409] sm:$0x8] %vm402, %v401
  %s411 = scalar_lea.vmem %s1, 272
  %412 = vst.msk [vmem:[%s411] sm:$0x10] %vm402, %v401
  %s413 = scalar_lea.vmem %s1, 335
  %414 = vst.msk [vmem:[%s413] sm:$0x20] %vm402, %v401
  %s415 = scalar_lea.vmem %s1, 398
  %416 = vst.msk [vmem:[%s415] sm:$0x40] %vm402, %v401
  %s417 = scalar_lea.vmem %s1, 461
  %418 = vst.msk [vmem:[%s417] sm:$0x80] %vm402, %v401
  %v419 = vld [vmem:[%s0] sm:$0xff]
  %420 = vrot.lane.b32.xlu0 %v419, 107
  %v421 = vpop.permute.xlu0 %420
  %vm422 = vcmask 7168
  %s423 = scalar_lea.vmem %s1, 21
  %424 = vst.msk [vmem:[%s423] sm:$0x1] %vm422, %v421
  %s425 = scalar_lea.vmem %s1, 84
  %426 = vst.msk [vmem:[%s425] sm:$0x2] %vm422, %v421
  %s427 = scalar_lea.vmem %s1, 147
  %428 = vst.msk [vmem:[%s427] sm:$0x4] %vm422, %v421
  %s429 = scalar_lea.vmem %s1, 210
  %430 = vst.msk [vmem:[%s429] sm:$0x8] %vm422, %v421
  %s431 = scalar_lea.vmem %s1, 273
  %432 = vst.msk [vmem:[%s431] sm:$0x10] %vm422, %v421
  %s433 = scalar_lea.vmem %s1, 336
  %434 = vst.msk [vmem:[%s433] sm:$0x20] %vm422, %v421
  %s435 = scalar_lea.vmem %s1, 399
  %436 = vst.msk [vmem:[%s435] sm:$0x40] %vm422, %v421
  %s437 = scalar_lea.vmem %s1, 462
  %438 = vst.msk [vmem:[%s437] sm:$0x80] %vm422, %v421
  %v439 = vld [vmem:[%s0] sm:$0xff]
  %440 = vrot.lane.b32.xlu0 %v439, 106
  %v441 = vpop.permute.xlu0 %440
  %vm442 = vcmask 7168
  %s443 = scalar_lea.vmem %s1, 22
  %444 = vst.msk [vmem:[%s443] sm:$0x1] %vm442, %v441
  %s445 = scalar_lea.vmem %s1, 85
  %446 = vst.msk [vmem:[%s445] sm:$0x2] %vm442, %v441
  %s447 = scalar_lea.vmem %s1, 148
  %448 = vst.msk [vmem:[%s447] sm:$0x4] %vm442, %v441
  %s449 = scalar_lea.vmem %s1, 211
  %450 = vst.msk [vmem:[%s449] sm:$0x8] %vm442, %v441
  %s451 = scalar_lea.vmem %s1, 274
  %452 = vst.msk [vmem:[%s451] sm:$0x10] %vm442, %v441
  %s453 = scalar_lea.vmem %s1, 337
  %454 = vst.msk [vmem:[%s453] sm:$0x20] %vm442, %v441
  %s455 = scalar_lea.vmem %s1, 400
  %456 = vst.msk [vmem:[%s455] sm:$0x40] %vm442, %v441
  %s457 = scalar_lea.vmem %s1, 463
  %458 = vst.msk [vmem:[%s457] sm:$0x80] %vm442, %v441
  %v459 = vld [vmem:[%s0] sm:$0xff]
  %460 = vrot.lane.b32.xlu0 %v459, 105
  %v461 = vpop.permute.xlu0 %460
  %vm462 = vcmask 7168
  %s463 = scalar_lea.vmem %s1, 23
  %464 = vst.msk [vmem:[%s463] sm:$0x1] %vm462, %v461
  %s465 = scalar_lea.vmem %s1, 86
  %466 = vst.msk [vmem:[%s465] sm:$0x2] %vm462, %v461
  %s467 = scalar_lea.vmem %s1, 149
  %468 = vst.msk [vmem:[%s467] sm:$0x4] %vm462, %v461
  %s469 = scalar_lea.vmem %s1, 212
  %470 = vst.msk [vmem:[%s469] sm:$0x8] %vm462, %v461
  %s471 = scalar_lea.vmem %s1, 275
  %472 = vst.msk [vmem:[%s471] sm:$0x10] %vm462, %v461
  %s473 = scalar_lea.vmem %s1, 338
  %474 = vst.msk [vmem:[%s473] sm:$0x20] %vm462, %v461
  %s475 = scalar_lea.vmem %s1, 401
  %476 = vst.msk [vmem:[%s475] sm:$0x40] %vm462, %v461
  %s477 = scalar_lea.vmem %s1, 464
  %478 = vst.msk [vmem:[%s477] sm:$0x80] %vm462, %v461
  %v479 = vld [vmem:[%s0] sm:$0xff]
  %480 = vrot.lane.b32.xlu0 %v479, 104
  %v481 = vpop.permute.xlu0 %480
  %vm482 = vcmask 7168
  %s483 = scalar_lea.vmem %s1, 24
  %484 = vst.msk [vmem:[%s483] sm:$0x1] %vm482, %v481
  %s485 = scalar_lea.vmem %s1, 87
  %486 = vst.msk [vmem:[%s485] sm:$0x2] %vm482, %v481
  %s487 = scalar_lea.vmem %s1, 150
  %488 = vst.msk [vmem:[%s487] sm:$0x4] %vm482, %v481
  %s489 = scalar_lea.vmem %s1, 213
  %490 = vst.msk [vmem:[%s489] sm:$0x8] %vm482, %v481
  %s491 = scalar_lea.vmem %s1, 276
  %492 = vst.msk [vmem:[%s491] sm:$0x10] %vm482, %v481
  %s493 = scalar_lea.vmem %s1, 339
  %494 = vst.msk [vmem:[%s493] sm:$0x20] %vm482, %v481
  %s495 = scalar_lea.vmem %s1, 402
  %496 = vst.msk [vmem:[%s495] sm:$0x40] %vm482, %v481
  %s497 = scalar_lea.vmem %s1, 465
  %498 = vst.msk [vmem:[%s497] sm:$0x80] %vm482, %v481
  %v499 = vld [vmem:[%s0] sm:$0xff]
  %500 = vrot.lane.b32.xlu0 %v499, 103
  %v501 = vpop.permute.xlu0 %500
  %vm502 = vcmask 7168
  %s503 = scalar_lea.vmem %s1, 25
  %504 = vst.msk [vmem:[%s503] sm:$0x1] %vm502, %v501
  %s505 = scalar_lea.vmem %s1, 88
  %506 = vst.msk [vmem:[%s505] sm:$0x2] %vm502, %v501
  %s507 = scalar_lea.vmem %s1, 151
  %508 = vst.msk [vmem:[%s507] sm:$0x4] %vm502, %v501
  %s509 = scalar_lea.vmem %s1, 214
  %510 = vst.msk [vmem:[%s509] sm:$0x8] %vm502, %v501
  %s511 = scalar_lea.vmem %s1, 277
  %512 = vst.msk [vmem:[%s511] sm:$0x10] %vm502, %v501
  %s513 = scalar_lea.vmem %s1, 340
  %514 = vst.msk [vmem:[%s513] sm:$0x20] %vm502, %v501
  %s515 = scalar_lea.vmem %s1, 403
  %516 = vst.msk [vmem:[%s515] sm:$0x40] %vm502, %v501
  %s517 = scalar_lea.vmem %s1, 466
  %518 = vst.msk [vmem:[%s517] sm:$0x80] %vm502, %v501
  %v519 = vld [vmem:[%s0] sm:$0xff]
  %520 = vrot.lane.b32.xlu0 %v519, 102
  %v521 = vpop.permute.xlu0 %520
  %vm522 = vcmask 7168
  %s523 = scalar_lea.vmem %s1, 26
  %524 = vst.msk [vmem:[%s523] sm:$0x1] %vm522, %v521
  %s525 = scalar_lea.vmem %s1, 89
  %526 = vst.msk [vmem:[%s525] sm:$0x2] %vm522, %v521
  %s527 = scalar_lea.vmem %s1, 152
  %528 = vst.msk [vmem:[%s527] sm:$0x4] %vm522, %v521
  %s529 = scalar_lea.vmem %s1, 215
  %530 = vst.msk [vmem:[%s529] sm:$0x8] %vm522, %v521
  %s531 = scalar_lea.vmem %s1, 278
  %532 = vst.msk [vmem:[%s531] sm:$0x10] %vm522, %v521
  %s533 = scalar_lea.vmem %s1, 341
  %534 = vst.msk [vmem:[%s533] sm:$0x20] %vm522, %v521
  %s535 = scalar_lea.vmem %s1, 404
  %536 = vst.msk [vmem:[%s535] sm:$0x40] %vm522, %v521
  %s537 = scalar_lea.vmem %s1, 467
  %538 = vst.msk [vmem:[%s537] sm:$0x80] %vm522, %v521
  %v539 = vld [vmem:[%s0] sm:$0xff]
  %540 = vrot.lane.b32.xlu0 %v539, 101
  %v541 = vpop.permute.xlu0 %540
  %vm542 = vcmask 7168
  %s543 = scalar_lea.vmem %s1, 27
  %544 = vst.msk [vmem:[%s543] sm:$0x1] %vm542, %v541
  %s545 = scalar_lea.vmem %s1, 90
  %546 = vst.msk [vmem:[%s545] sm:$0x2] %vm542, %v541
  %s547 = scalar_lea.vmem %s1, 153
  %548 = vst.msk [vmem:[%s547] sm:$0x4] %vm542, %v541
  %s549 = scalar_lea.vmem %s1, 216
  %550 = vst.msk [vmem:[%s549] sm:$0x8] %vm542, %v541
  %s551 = scalar_lea.vmem %s1, 279
  %552 = vst.msk [vmem:[%s551] sm:$0x10] %vm542, %v541
  %s553 = scalar_lea.vmem %s1, 342
  %554 = vst.msk [vmem:[%s553] sm:$0x20] %vm542, %v541
  %s555 = scalar_lea.vmem %s1, 405
  %556 = vst.msk [vmem:[%s555] sm:$0x40] %vm542, %v541
  %s557 = scalar_lea.vmem %s1, 468
  %558 = vst.msk [vmem:[%s557] sm:$0x80] %vm542, %v541
  %v559 = vld [vmem:[%s0] sm:$0xff]
  %560 = vrot.lane.b32.xlu0 %v559, 100
  %v561 = vpop.permute.xlu0 %560
  %vm562 = vcmask 7168
  %s563 = scalar_lea.vmem %s1, 28
  %564 = vst.msk [vmem:[%s563] sm:$0x1] %vm562, %v561
  %s565 = scalar_lea.vmem %s1, 91
  %566 = vst.msk [vmem:[%s565] sm:$0x2] %vm562, %v561
  %s567 = scalar_lea.vmem %s1, 154
  %568 = vst.msk [vmem:[%s567] sm:$0x4] %vm562, %v561
  %s569 = scalar_lea.vmem %s1, 217
  %570 = vst.msk [vmem:[%s569] sm:$0x8] %vm562, %v561
  %s571 = scalar_lea.vmem %s1, 280
  %572 = vst.msk [vmem:[%s571] sm:$0x10] %vm562, %v561
  %s573 = scalar_lea.vmem %s1, 343
  %574 = vst.msk [vmem:[%s573] sm:$0x20] %vm562, %v561
  %s575 = scalar_lea.vmem %s1, 406
  %576 = vst.msk [vmem:[%s575] sm:$0x40] %vm562, %v561
  %s577 = scalar_lea.vmem %s1, 469
  %578 = vst.msk [vmem:[%s577] sm:$0x80] %vm562, %v561
  %v579 = vld [vmem:[%s0] sm:$0xff]
  %580 = vrot.lane.b32.xlu0 %v579, 99
  %v581 = vpop.permute.xlu0 %580
  %vm582 = vcmask 7168
  %s583 = scalar_lea.vmem %s1, 29
  %584 = vst.msk [vmem:[%s583] sm:$0x1] %vm582, %v581
  %s585 = scalar_lea.vmem %s1, 92
  %586 = vst.msk [vmem:[%s585] sm:$0x2] %vm582, %v581
  %s587 = scalar_lea.vmem %s1, 155
  %588 = vst.msk [vmem:[%s587] sm:$0x4] %vm582, %v581
  %s589 = scalar_lea.vmem %s1, 218
  %590 = vst.msk [vmem:[%s589] sm:$0x8] %vm582, %v581
  %s591 = scalar_lea.vmem %s1, 281
  %592 = vst.msk [vmem:[%s591] sm:$0x10] %vm582, %v581
  %s593 = scalar_lea.vmem %s1, 344
  %594 = vst.msk [vmem:[%s593] sm:$0x20] %vm582, %v581
  %s595 = scalar_lea.vmem %s1, 407
  %596 = vst.msk [vmem:[%s595] sm:$0x40] %vm582, %v581
  %s597 = scalar_lea.vmem %s1, 470
  %598 = vst.msk [vmem:[%s597] sm:$0x80] %vm582, %v581
  %v599 = vld [vmem:[%s0] sm:$0xff]
  %600 = vrot.lane.b32.xlu0 %v599, 98
  %v601 = vpop.permute.xlu0 %600
  %vm602 = vcmask 7168
  %s603 = scalar_lea.vmem %s1, 30
  %604 = vst.msk [vmem:[%s603] sm:$0x1] %vm602, %v601
  %s605 = scalar_lea.vmem %s1, 93
  %606 = vst.msk [vmem:[%s605] sm:$0x2] %vm602, %v601
  %s607 = scalar_lea.vmem %s1, 156
  %608 = vst.msk [vmem:[%s607] sm:$0x4] %vm602, %v601
  %s609 = scalar_lea.vmem %s1, 219
  %610 = vst.msk [vmem:[%s609] sm:$0x8] %vm602, %v601
  %s611 = scalar_lea.vmem %s1, 282
  %612 = vst.msk [vmem:[%s611] sm:$0x10] %vm602, %v601
  %s613 = scalar_lea.vmem %s1, 345
  %614 = vst.msk [vmem:[%s613] sm:$0x20] %vm602, %v601
  %s615 = scalar_lea.vmem %s1, 408
  %616 = vst.msk [vmem:[%s615] sm:$0x40] %vm602, %v601
  %s617 = scalar_lea.vmem %s1, 471
  %618 = vst.msk [vmem:[%s617] sm:$0x80] %vm602, %v601
  %v619 = vld [vmem:[%s0] sm:$0xff]
  %620 = vrot.lane.b32.xlu0 %v619, 97
  %v621 = vpop.permute.xlu0 %620
  %vm622 = vcmask 7168
  %s623 = scalar_lea.vmem %s1, 31
  %624 = vst.msk [vmem:[%s623] sm:$0x1] %vm622, %v621
  %s625 = scalar_lea.vmem %s1, 94
  %626 = vst.msk [vmem:[%s625] sm:$0x2] %vm622, %v621
  %s627 = scalar_lea.vmem %s1, 157
  %628 = vst.msk [vmem:[%s627] sm:$0x4] %vm622, %v621
  %s629 = scalar_lea.vmem %s1, 220
  %630 = vst.msk [vmem:[%s629] sm:$0x8] %vm622, %v621
  %s631 = scalar_lea.vmem %s1, 283
  %632 = vst.msk [vmem:[%s631] sm:$0x10] %vm622, %v621
  %s633 = scalar_lea.vmem %s1, 346
  %634 = vst.msk [vmem:[%s633] sm:$0x20] %vm622, %v621
  %s635 = scalar_lea.vmem %s1, 409
  %636 = vst.msk [vmem:[%s635] sm:$0x40] %vm622, %v621
  %s637 = scalar_lea.vmem %s1, 472
  %638 = vst.msk [vmem:[%s637] sm:$0x80] %vm622, %v621
  %v639 = vld [vmem:[%s0] sm:$0xff]
  %640 = vrot.lane.b32.xlu0 %v639, 96
  %v641 = vpop.permute.xlu0 %640
  %vm642 = vcmask 7168
  %s643 = scalar_lea.vmem %s1, 32
  %644 = vst.msk [vmem:[%s643] sm:$0x1] %vm642, %v641
  %s645 = scalar_lea.vmem %s1, 95
  %646 = vst.msk [vmem:[%s645] sm:$0x2] %vm642, %v641
  %s647 = scalar_lea.vmem %s1, 158
  %648 = vst.msk [vmem:[%s647] sm:$0x4] %vm642, %v641
  %s649 = scalar_lea.vmem %s1, 221
  %650 = vst.msk [vmem:[%s649] sm:$0x8] %vm642, %v641
  %s651 = scalar_lea.vmem %s1, 284
  %652 = vst.msk [vmem:[%s651] sm:$0x10] %vm642, %v641
  %s653 = scalar_lea.vmem %s1, 347
  %654 = vst.msk [vmem:[%s653] sm:$0x20] %vm642, %v641
  %s655 = scalar_lea.vmem %s1, 410
  %656 = vst.msk [vmem:[%s655] sm:$0x40] %vm642, %v641
  %s657 = scalar_lea.vmem %s1, 473
  %658 = vst.msk [vmem:[%s657] sm:$0x80] %vm642, %v641
  %v659 = vld [vmem:[%s0] sm:$0xff]
  %660 = vrot.lane.b32.xlu0 %v659, 95
  %v661 = vpop.permute.xlu0 %660
  %vm662 = vcmask 7168
  %s663 = scalar_lea.vmem %s1, 33
  %664 = vst.msk [vmem:[%s663] sm:$0x1] %vm662, %v661
  %s665 = scalar_lea.vmem %s1, 96
  %666 = vst.msk [vmem:[%s665] sm:$0x2] %vm662, %v661
  %s667 = scalar_lea.vmem %s1, 159
  %668 = vst.msk [vmem:[%s667] sm:$0x4] %vm662, %v661
  %s669 = scalar_lea.vmem %s1, 222
  %670 = vst.msk [vmem:[%s669] sm:$0x8] %vm662, %v661
  %s671 = scalar_lea.vmem %s1, 285
  %672 = vst.msk [vmem:[%s671] sm:$0x10] %vm662, %v661
  %s673 = scalar_lea.vmem %s1, 348
  %674 = vst.msk [vmem:[%s673] sm:$0x20] %vm662, %v661
  %s675 = scalar_lea.vmem %s1, 411
  %676 = vst.msk [vmem:[%s675] sm:$0x40] %vm662, %v661
  %s677 = scalar_lea.vmem %s1, 474
  %678 = vst.msk [vmem:[%s677] sm:$0x80] %vm662, %v661
  %v679 = vld [vmem:[%s0] sm:$0xff]
  %680 = vrot.lane.b32.xlu0 %v679, 94
  %v681 = vpop.permute.xlu0 %680
  %vm682 = vcmask 7168
  %s683 = scalar_lea.vmem %s1, 34
  %684 = vst.msk [vmem:[%s683] sm:$0x1] %vm682, %v681
  %s685 = scalar_lea.vmem %s1, 97
  %686 = vst.msk [vmem:[%s685] sm:$0x2] %vm682, %v681
  %s687 = scalar_lea.vmem %s1, 160
  %688 = vst.msk [vmem:[%s687] sm:$0x4] %vm682, %v681
  %s689 = scalar_lea.vmem %s1, 223
  %690 = vst.msk [vmem:[%s689] sm:$0x8] %vm682, %v681
  %s691 = scalar_lea.vmem %s1, 286
  %692 = vst.msk [vmem:[%s691] sm:$0x10] %vm682, %v681
  %s693 = scalar_lea.vmem %s1, 349
  %694 = vst.msk [vmem:[%s693] sm:$0x20] %vm682, %v681
  %s695 = scalar_lea.vmem %s1, 412
  %696 = vst.msk [vmem:[%s695] sm:$0x40] %vm682, %v681
  %s697 = scalar_lea.vmem %s1, 475
  %698 = vst.msk [vmem:[%s697] sm:$0x80] %vm682, %v681
  %v699 = vld [vmem:[%s0] sm:$0xff]
  %700 = vrot.lane.b32.xlu0 %v699, 93
  %v701 = vpop.permute.xlu0 %700
  %vm702 = vcmask 7168
  %s703 = scalar_lea.vmem %s1, 35
  %704 = vst.msk [vmem:[%s703] sm:$0x1] %vm702, %v701
  %s705 = scalar_lea.vmem %s1, 98
  %706 = vst.msk [vmem:[%s705] sm:$0x2] %vm702, %v701
  %s707 = scalar_lea.vmem %s1, 161
  %708 = vst.msk [vmem:[%s707] sm:$0x4] %vm702, %v701
  %s709 = scalar_lea.vmem %s1, 224
  %710 = vst.msk [vmem:[%s709] sm:$0x8] %vm702, %v701
  %s711 = scalar_lea.vmem %s1, 287
  %712 = vst.msk [vmem:[%s711] sm:$0x10] %vm702, %v701
  %s713 = scalar_lea.vmem %s1, 350
  %714 = vst.msk [vmem:[%s713] sm:$0x20] %vm702, %v701
  %s715 = scalar_lea.vmem %s1, 413
  %716 = vst.msk [vmem:[%s715] sm:$0x40] %vm702, %v701
  %s717 = scalar_lea.vmem %s1, 476
  %718 = vst.msk [vmem:[%s717] sm:$0x80] %vm702, %v701
  %v719 = vld [vmem:[%s0] sm:$0xff]
  %720 = vrot.lane.b32.xlu0 %v719, 92
  %v721 = vpop.permute.xlu0 %720
  %vm722 = vcmask 7168
  %s723 = scalar_lea.vmem %s1, 36
  %724 = vst.msk [vmem:[%s723] sm:$0x1] %vm722, %v721
  %s725 = scalar_lea.vmem %s1, 99
  %726 = vst.msk [vmem:[%s725] sm:$0x2] %vm722, %v721
  %s727 = scalar_lea.vmem %s1, 162
  %728 = vst.msk [vmem:[%s727] sm:$0x4] %vm722, %v721
  %s729 = scalar_lea.vmem %s1, 225
  %730 = vst.msk [vmem:[%s729] sm:$0x8] %vm722, %v721
  %s731 = scalar_lea.vmem %s1, 288
  %732 = vst.msk [vmem:[%s731] sm:$0x10] %vm722, %v721
  %s733 = scalar_lea.vmem %s1, 351
  %734 = vst.msk [vmem:[%s733] sm:$0x20] %vm722, %v721
  %s735 = scalar_lea.vmem %s1, 414
  %736 = vst.msk [vmem:[%s735] sm:$0x40] %vm722, %v721
  %s737 = scalar_lea.vmem %s1, 477
  %738 = vst.msk [vmem:[%s737] sm:$0x80] %vm722, %v721
  %v739 = vld [vmem:[%s0] sm:$0xff]
  %740 = vrot.lane.b32.xlu0 %v739, 91
  %v741 = vpop.permute.xlu0 %740
  %vm742 = vcmask 7168
  %s743 = scalar_lea.vmem %s1, 37
  %744 = vst.msk [vmem:[%s743] sm:$0x1] %vm742, %v741
  %s745 = scalar_lea.vmem %s1, 100
  %746 = vst.msk [vmem:[%s745] sm:$0x2] %vm742, %v741
  %s747 = scalar_lea.vmem %s1, 163
  %748 = vst.msk [vmem:[%s747] sm:$0x4] %vm742, %v741
  %s749 = scalar_lea.vmem %s1, 226
  %750 = vst.msk [vmem:[%s749] sm:$0x8] %vm742, %v741
  %s751 = scalar_lea.vmem %s1, 289
  %752 = vst.msk [vmem:[%s751] sm:$0x10] %vm742, %v741
  %s753 = scalar_lea.vmem %s1, 352
  %754 = vst.msk [vmem:[%s753] sm:$0x20] %vm742, %v741
  %s755 = scalar_lea.vmem %s1, 415
  %756 = vst.msk [vmem:[%s755] sm:$0x40] %vm742, %v741
  %s757 = scalar_lea.vmem %s1, 478
  %758 = vst.msk [vmem:[%s757] sm:$0x80] %vm742, %v741
  %v759 = vld [vmem:[%s0] sm:$0xff]
  %760 = vrot.lane.b32.xlu0 %v759, 90
  %v761 = vpop.permute.xlu0 %760
  %vm762 = vcmask 7168
  %s763 = scalar_lea.vmem %s1, 38
  %764 = vst.msk [vmem:[%s763] sm:$0x1] %vm762, %v761
  %s765 = scalar_lea.vmem %s1, 101
  %766 = vst.msk [vmem:[%s765] sm:$0x2] %vm762, %v761
  %s767 = scalar_lea.vmem %s1, 164
  %768 = vst.msk [vmem:[%s767] sm:$0x4] %vm762, %v761
  %s769 = scalar_lea.vmem %s1, 227
  %770 = vst.msk [vmem:[%s769] sm:$0x8] %vm762, %v761
  %s771 = scalar_lea.vmem %s1, 290
  %772 = vst.msk [vmem:[%s771] sm:$0x10] %vm762, %v761
  %s773 = scalar_lea.vmem %s1, 353
  %774 = vst.msk [vmem:[%s773] sm:$0x20] %vm762, %v761
  %s775 = scalar_lea.vmem %s1, 416
  %776 = vst.msk [vmem:[%s775] sm:$0x40] %vm762, %v761
  %s777 = scalar_lea.vmem %s1, 479
  %778 = vst.msk [vmem:[%s777] sm:$0x80] %vm762, %v761
  %v779 = vld [vmem:[%s0] sm:$0xff]
  %780 = vrot.lane.b32.xlu0 %v779, 89
  %v781 = vpop.permute.xlu0 %780
  %vm782 = vcmask 7168
  %s783 = scalar_lea.vmem %s1, 39
  %784 = vst.msk [vmem:[%s783] sm:$0x1] %vm782, %v781
  %s785 = scalar_lea.vmem %s1, 102
  %786 = vst.msk [vmem:[%s785] sm:$0x2] %vm782, %v781
  %s787 = scalar_lea.vmem %s1, 165
  %788 = vst.msk [vmem:[%s787] sm:$0x4] %vm782, %v781
  %s789 = scalar_lea.vmem %s1, 228
  %790 = vst.msk [vmem:[%s789] sm:$0x8] %vm782, %v781
  %s791 = scalar_lea.vmem %s1, 291
  %792 = vst.msk [vmem:[%s791] sm:$0x10] %vm782, %v781
  %s793 = scalar_lea.vmem %s1, 354
  %794 = vst.msk [vmem:[%s793] sm:$0x20] %vm782, %v781
  %s795 = scalar_lea.vmem %s1, 417
  %796 = vst.msk [vmem:[%s795] sm:$0x40] %vm782, %v781
  %s797 = scalar_lea.vmem %s1, 480
  %798 = vst.msk [vmem:[%s797] sm:$0x80] %vm782, %v781
  %v799 = vld [vmem:[%s0] sm:$0xff]
  %800 = vrot.lane.b32.xlu0 %v799, 88
  %v801 = vpop.permute.xlu0 %800
  %vm802 = vcmask 7168
  %s803 = scalar_lea.vmem %s1, 40
  %804 = vst.msk [vmem:[%s803] sm:$0x1] %vm802, %v801
  %s805 = scalar_lea.vmem %s1, 103
  %806 = vst.msk [vmem:[%s805] sm:$0x2] %vm802, %v801
  %s807 = scalar_lea.vmem %s1, 166
  %808 = vst.msk [vmem:[%s807] sm:$0x4] %vm802, %v801
  %s809 = scalar_lea.vmem %s1, 229
  %810 = vst.msk [vmem:[%s809] sm:$0x8] %vm802, %v801
  %s811 = scalar_lea.vmem %s1, 292
  %812 = vst.msk [vmem:[%s811] sm:$0x10] %vm802, %v801
  %s813 = scalar_lea.vmem %s1, 355
  %814 = vst.msk [vmem:[%s813] sm:$0x20] %vm802, %v801
  %s815 = scalar_lea.vmem %s1, 418
  %816 = vst.msk [vmem:[%s815] sm:$0x40] %vm802, %v801
  %s817 = scalar_lea.vmem %s1, 481
  %818 = vst.msk [vmem:[%s817] sm:$0x80] %vm802, %v801
  %v819 = vld [vmem:[%s0] sm:$0xff]
  %820 = vrot.lane.b32.xlu0 %v819, 87
  %v821 = vpop.permute.xlu0 %820
  %vm822 = vcmask 7168
  %s823 = scalar_lea.vmem %s1, 41
  %824 = vst.msk [vmem:[%s823] sm:$0x1] %vm822, %v821
  %s825 = scalar_lea.vmem %s1, 104
  %826 = vst.msk [vmem:[%s825] sm:$0x2] %vm822, %v821
  %s827 = scalar_lea.vmem %s1, 167
  %828 = vst.msk [vmem:[%s827] sm:$0x4] %vm822, %v821
  %s829 = scalar_lea.vmem %s1, 230
  %830 = vst.msk [vmem:[%s829] sm:$0x8] %vm822, %v821
  %s831 = scalar_lea.vmem %s1, 293
  %832 = vst.msk [vmem:[%s831] sm:$0x10] %vm822, %v821
  %s833 = scalar_lea.vmem %s1, 356
  %834 = vst.msk [vmem:[%s833] sm:$0x20] %vm822, %v821
  %s835 = scalar_lea.vmem %s1, 419
  %836 = vst.msk [vmem:[%s835] sm:$0x40] %vm822, %v821
  %s837 = scalar_lea.vmem %s1, 482
  %838 = vst.msk [vmem:[%s837] sm:$0x80] %vm822, %v821
  %v839 = vld [vmem:[%s0] sm:$0xff]
  %840 = vrot.lane.b32.xlu0 %v839, 86
  %v841 = vpop.permute.xlu0 %840
  %vm842 = vcmask 7168
  %s843 = scalar_lea.vmem %s1, 42
  %844 = vst.msk [vmem:[%s843] sm:$0x1] %vm842, %v841
  %s845 = scalar_lea.vmem %s1, 105
  %846 = vst.msk [vmem:[%s845] sm:$0x2] %vm842, %v841
  %s847 = scalar_lea.vmem %s1, 168
  %848 = vst.msk [vmem:[%s847] sm:$0x4] %vm842, %v841
  %s849 = scalar_lea.vmem %s1, 231
  %850 = vst.msk [vmem:[%s849] sm:$0x8] %vm842, %v841
  %s851 = scalar_lea.vmem %s1, 294
  %852 = vst.msk [vmem:[%s851] sm:$0x10] %vm842, %v841
  %s853 = scalar_lea.vmem %s1, 357
  %854 = vst.msk [vmem:[%s853] sm:$0x20] %vm842, %v841
  %s855 = scalar_lea.vmem %s1, 420
  %856 = vst.msk [vmem:[%s855] sm:$0x40] %vm842, %v841
  %s857 = scalar_lea.vmem %s1, 483
  %858 = vst.msk [vmem:[%s857] sm:$0x80] %vm842, %v841
  %v859 = vld [vmem:[%s0] sm:$0xff]
  %860 = vrot.lane.b32.xlu0 %v859, 85
  %v861 = vpop.permute.xlu0 %860
  %vm862 = vcmask 7168
  %s863 = scalar_lea.vmem %s1, 43
  %864 = vst.msk [vmem:[%s863] sm:$0x1] %vm862, %v861
  %s865 = scalar_lea.vmem %s1, 106
  %866 = vst.msk [vmem:[%s865] sm:$0x2] %vm862, %v861
  %s867 = scalar_lea.vmem %s1, 169
  %868 = vst.msk [vmem:[%s867] sm:$0x4] %vm862, %v861
  %s869 = scalar_lea.vmem %s1, 232
  %870 = vst.msk [vmem:[%s869] sm:$0x8] %vm862, %v861
  %s871 = scalar_lea.vmem %s1, 295
  %872 = vst.msk [vmem:[%s871] sm:$0x10] %vm862, %v861
  %s873 = scalar_lea.vmem %s1, 358
  %874 = vst.msk [vmem:[%s873] sm:$0x20] %vm862, %v861
  %s875 = scalar_lea.vmem %s1, 421
  %876 = vst.msk [vmem:[%s875] sm:$0x40] %vm862, %v861
  %s877 = scalar_lea.vmem %s1, 484
  %878 = vst.msk [vmem:[%s877] sm:$0x80] %vm862, %v861
  %v879 = vld [vmem:[%s0] sm:$0xff]
  %880 = vrot.lane.b32.xlu0 %v879, 84
  %v881 = vpop.permute.xlu0 %880
  %vm882 = vcmask 7168
  %s883 = scalar_lea.vmem %s1, 44
  %884 = vst.msk [vmem:[%s883] sm:$0x1] %vm882, %v881
  %s885 = scalar_lea.vmem %s1, 107
  %886 = vst.msk [vmem:[%s885] sm:$0x2] %vm882, %v881
  %s887 = scalar_lea.vmem %s1, 170
  %888 = vst.msk [vmem:[%s887] sm:$0x4] %vm882, %v881
  %s889 = scalar_lea.vmem %s1, 233
  %890 = vst.msk [vmem:[%s889] sm:$0x8] %vm882, %v881
  %s891 = scalar_lea.vmem %s1, 296
  %892 = vst.msk [vmem:[%s891] sm:$0x10] %vm882, %v881
  %s893 = scalar_lea.vmem %s1, 359
  %894 = vst.msk [vmem:[%s893] sm:$0x20] %vm882, %v881
  %s895 = scalar_lea.vmem %s1, 422
  %896 = vst.msk [vmem:[%s895] sm:$0x40] %vm882, %v881
  %s897 = scalar_lea.vmem %s1, 485
  %898 = vst.msk [vmem:[%s897] sm:$0x80] %vm882, %v881
  %v899 = vld [vmem:[%s0] sm:$0xff]
  %900 = vrot.lane.b32.xlu0 %v899, 83
  %v901 = vpop.permute.xlu0 %900
  %vm902 = vcmask 7168
  %s903 = scalar_lea.vmem %s1, 45
  %904 = vst.msk [vmem:[%s903] sm:$0x1] %vm902, %v901
  %s905 = scalar_lea.vmem %s1, 108
  %906 = vst.msk [vmem:[%s905] sm:$0x2] %vm902, %v901
  %s907 = scalar_lea.vmem %s1, 171
  %908 = vst.msk [vmem:[%s907] sm:$0x4] %vm902, %v901
  %s909 = scalar_lea.vmem %s1, 234
  %910 = vst.msk [vmem:[%s909] sm:$0x8] %vm902, %v901
  %s911 = scalar_lea.vmem %s1, 297
  %912 = vst.msk [vmem:[%s911] sm:$0x10] %vm902, %v901
  %s913 = scalar_lea.vmem %s1, 360
  %914 = vst.msk [vmem:[%s913] sm:$0x20] %vm902, %v901
  %s915 = scalar_lea.vmem %s1, 423
  %916 = vst.msk [vmem:[%s915] sm:$0x40] %vm902, %v901
  %s917 = scalar_lea.vmem %s1, 486
  %918 = vst.msk [vmem:[%s917] sm:$0x80] %vm902, %v901
  %v919 = vld [vmem:[%s0] sm:$0xff]
  %920 = vrot.lane.b32.xlu0 %v919, 82
  %v921 = vpop.permute.xlu0 %920
  %vm922 = vcmask 7168
  %s923 = scalar_lea.vmem %s1, 46
  %924 = vst.msk [vmem:[%s923] sm:$0x1] %vm922, %v921
  %s925 = scalar_lea.vmem %s1, 109
  %926 = vst.msk [vmem:[%s925] sm:$0x2] %vm922, %v921
  %s927 = scalar_lea.vmem %s1, 172
  %928 = vst.msk [vmem:[%s927] sm:$0x4] %vm922, %v921
  %s929 = scalar_lea.vmem %s1, 235
  %930 = vst.msk [vmem:[%s929] sm:$0x8] %vm922, %v921
  %s931 = scalar_lea.vmem %s1, 298
  %932 = vst.msk [vmem:[%s931] sm:$0x10] %vm922, %v921
  %s933 = scalar_lea.vmem %s1, 361
  %934 = vst.msk [vmem:[%s933] sm:$0x20] %vm922, %v921
  %s935 = scalar_lea.vmem %s1, 424
  %936 = vst.msk [vmem:[%s935] sm:$0x40] %vm922, %v921
  %s937 = scalar_lea.vmem %s1, 487
  %938 = vst.msk [vmem:[%s937] sm:$0x80] %vm922, %v921
  %v939 = vld [vmem:[%s0] sm:$0xff]
  %940 = vrot.lane.b32.xlu0 %v939, 81
  %v941 = vpop.permute.xlu0 %940
  %vm942 = vcmask 7168
  %s943 = scalar_lea.vmem %s1, 47
  %944 = vst.msk [vmem:[%s943] sm:$0x1] %vm942, %v941
  %s945 = scalar_lea.vmem %s1, 110
  %946 = vst.msk [vmem:[%s945] sm:$0x2] %vm942, %v941
  %s947 = scalar_lea.vmem %s1, 173
  %948 = vst.msk [vmem:[%s947] sm:$0x4] %vm942, %v941
  %s949 = scalar_lea.vmem %s1, 236
  %950 = vst.msk [vmem:[%s949] sm:$0x8] %vm942, %v941
  %s951 = scalar_lea.vmem %s1, 299
  %952 = vst.msk [vmem:[%s951] sm:$0x10] %vm942, %v941
  %s953 = scalar_lea.vmem %s1, 362
  %954 = vst.msk [vmem:[%s953] sm:$0x20] %vm942, %v941
  %s955 = scalar_lea.vmem %s1, 425
  %956 = vst.msk [vmem:[%s955] sm:$0x40] %vm942, %v941
  %s957 = scalar_lea.vmem %s1, 488
  %958 = vst.msk [vmem:[%s957] sm:$0x80] %vm942, %v941
  %v959 = vld [vmem:[%s0] sm:$0xff]
  %960 = vrot.lane.b32.xlu0 %v959, 80
  %v961 = vpop.permute.xlu0 %960
  %vm962 = vcmask 7168
  %s963 = scalar_lea.vmem %s1, 48
  %964 = vst.msk [vmem:[%s963] sm:$0x1] %vm962, %v961
  %s965 = scalar_lea.vmem %s1, 111
  %966 = vst.msk [vmem:[%s965] sm:$0x2] %vm962, %v961
  %s967 = scalar_lea.vmem %s1, 174
  %968 = vst.msk [vmem:[%s967] sm:$0x4] %vm962, %v961
  %s969 = scalar_lea.vmem %s1, 237
  %970 = vst.msk [vmem:[%s969] sm:$0x8] %vm962, %v961
  %s971 = scalar_lea.vmem %s1, 300
  %972 = vst.msk [vmem:[%s971] sm:$0x10] %vm962, %v961
  %s973 = scalar_lea.vmem %s1, 363
  %974 = vst.msk [vmem:[%s973] sm:$0x20] %vm962, %v961
  %s975 = scalar_lea.vmem %s1, 426
  %976 = vst.msk [vmem:[%s975] sm:$0x40] %vm962, %v961
  %s977 = scalar_lea.vmem %s1, 489
  %978 = vst.msk [vmem:[%s977] sm:$0x80] %vm962, %v961
  %v979 = vld [vmem:[%s0] sm:$0xff]
  %980 = vrot.lane.b32.xlu0 %v979, 79
  %v981 = vpop.permute.xlu0 %980
  %vm982 = vcmask 7168
  %s983 = scalar_lea.vmem %s1, 49
  %984 = vst.msk [vmem:[%s983] sm:$0x1] %vm982, %v981
  %s985 = scalar_lea.vmem %s1, 112
  %986 = vst.msk [vmem:[%s985] sm:$0x2] %vm982, %v981
  %s987 = scalar_lea.vmem %s1, 175
  %988 = vst.msk [vmem:[%s987] sm:$0x4] %vm982, %v981
  %s989 = scalar_lea.vmem %s1, 238
  %990 = vst.msk [vmem:[%s989] sm:$0x8] %vm982, %v981
  %s991 = scalar_lea.vmem %s1, 301
  %992 = vst.msk [vmem:[%s991] sm:$0x10] %vm982, %v981
  %s993 = scalar_lea.vmem %s1, 364
  %994 = vst.msk [vmem:[%s993] sm:$0x20] %vm982, %v981
  %s995 = scalar_lea.vmem %s1, 427
  %996 = vst.msk [vmem:[%s995] sm:$0x40] %vm982, %v981
  %s997 = scalar_lea.vmem %s1, 490
  %998 = vst.msk [vmem:[%s997] sm:$0x80] %vm982, %v981
  %v999 = vld [vmem:[%s0] sm:$0xff]
  %1000 = vrot.lane.b32.xlu0 %v999, 78
  %v1001 = vpop.permute.xlu0 %1000
  %vm1002 = vcmask 7168
  %s1003 = scalar_lea.vmem %s1, 50
  %1004 = vst.msk [vmem:[%s1003] sm:$0x1] %vm1002, %v1001
  %s1005 = scalar_lea.vmem %s1, 113
  %1006 = vst.msk [vmem:[%s1005] sm:$0x2] %vm1002, %v1001
  %s1007 = scalar_lea.vmem %s1, 176
  %1008 = vst.msk [vmem:[%s1007] sm:$0x4] %vm1002, %v1001
  %s1009 = scalar_lea.vmem %s1, 239
  %1010 = vst.msk [vmem:[%s1009] sm:$0x8] %vm1002, %v1001
  %s1011 = scalar_lea.vmem %s1, 302
  %1012 = vst.msk [vmem:[%s1011] sm:$0x10] %vm1002, %v1001
  %s1013 = scalar_lea.vmem %s1, 365
  %1014 = vst.msk [vmem:[%s1013] sm:$0x20] %vm1002, %v1001
  %s1015 = scalar_lea.vmem %s1, 428
  %1016 = vst.msk [vmem:[%s1015] sm:$0x40] %vm1002, %v1001
  %s1017 = scalar_lea.vmem %s1, 491
  %1018 = vst.msk [vmem:[%s1017] sm:$0x80] %vm1002, %v1001
  %v1019 = vld [vmem:[%s0] sm:$0xff]
  %1020 = vrot.lane.b32.xlu0 %v1019, 77
  %v1021 = vpop.permute.xlu0 %1020
  %vm1022 = vcmask 7168
  %s1023 = scalar_lea.vmem %s1, 51
  %1024 = vst.msk [vmem:[%s1023] sm:$0x1] %vm1022, %v1021
  %s1025 = scalar_lea.vmem %s1, 114
  %1026 = vst.msk [vmem:[%s1025] sm:$0x2] %vm1022, %v1021
  %s1027 = scalar_lea.vmem %s1, 177
  %1028 = vst.msk [vmem:[%s1027] sm:$0x4] %vm1022, %v1021
  %s1029 = scalar_lea.vmem %s1, 240
  %1030 = vst.msk [vmem:[%s1029] sm:$0x8] %vm1022, %v1021
  %s1031 = scalar_lea.vmem %s1, 303
  %1032 = vst.msk [vmem:[%s1031] sm:$0x10] %vm1022, %v1021
  %s1033 = scalar_lea.vmem %s1, 366
  %1034 = vst.msk [vmem:[%s1033] sm:$0x20] %vm1022, %v1021
  %s1035 = scalar_lea.vmem %s1, 429
  %1036 = vst.msk [vmem:[%s1035] sm:$0x40] %vm1022, %v1021
  %s1037 = scalar_lea.vmem %s1, 492
  %1038 = vst.msk [vmem:[%s1037] sm:$0x80] %vm1022, %v1021
  %v1039 = vld [vmem:[%s0] sm:$0xff]
  %1040 = vrot.lane.b32.xlu0 %v1039, 76
  %v1041 = vpop.permute.xlu0 %1040
  %vm1042 = vcmask 7168
  %s1043 = scalar_lea.vmem %s1, 52
  %1044 = vst.msk [vmem:[%s1043] sm:$0x1] %vm1042, %v1041
  %s1045 = scalar_lea.vmem %s1, 115
  %1046 = vst.msk [vmem:[%s1045] sm:$0x2] %vm1042, %v1041
  %s1047 = scalar_lea.vmem %s1, 178
  %1048 = vst.msk [vmem:[%s1047] sm:$0x4] %vm1042, %v1041
  %s1049 = scalar_lea.vmem %s1, 241
  %1050 = vst.msk [vmem:[%s1049] sm:$0x8] %vm1042, %v1041
  %s1051 = scalar_lea.vmem %s1, 304
  %1052 = vst.msk [vmem:[%s1051] sm:$0x10] %vm1042, %v1041
  %s1053 = scalar_lea.vmem %s1, 367
  %1054 = vst.msk [vmem:[%s1053] sm:$0x20] %vm1042, %v1041
  %s1055 = scalar_lea.vmem %s1, 430
  %1056 = vst.msk [vmem:[%s1055] sm:$0x40] %vm1042, %v1041
  %s1057 = scalar_lea.vmem %s1, 493
  %1058 = vst.msk [vmem:[%s1057] sm:$0x80] %vm1042, %v1041
  %v1059 = vld [vmem:[%s0] sm:$0xff]
  %1060 = vrot.lane.b32.xlu0 %v1059, 75
  %v1061 = vpop.permute.xlu0 %1060
  %vm1062 = vcmask 7168
  %s1063 = scalar_lea.vmem %s1, 53
  %1064 = vst.msk [vmem:[%s1063] sm:$0x1] %vm1062, %v1061
  %s1065 = scalar_lea.vmem %s1, 116
  %1066 = vst.msk [vmem:[%s1065] sm:$0x2] %vm1062, %v1061
  %s1067 = scalar_lea.vmem %s1, 179
  %1068 = vst.msk [vmem:[%s1067] sm:$0x4] %vm1062, %v1061
  %s1069 = scalar_lea.vmem %s1, 242
  %1070 = vst.msk [vmem:[%s1069] sm:$0x8] %vm1062, %v1061
  %s1071 = scalar_lea.vmem %s1, 305
  %1072 = vst.msk [vmem:[%s1071] sm:$0x10] %vm1062, %v1061
  %s1073 = scalar_lea.vmem %s1, 368
  %1074 = vst.msk [vmem:[%s1073] sm:$0x20] %vm1062, %v1061
  %s1075 = scalar_lea.vmem %s1, 431
  %1076 = vst.msk [vmem:[%s1075] sm:$0x40] %vm1062, %v1061
  %s1077 = scalar_lea.vmem %s1, 494
  %1078 = vst.msk [vmem:[%s1077] sm:$0x80] %vm1062, %v1061
  %v1079 = vld [vmem:[%s0] sm:$0xff]
  %1080 = vrot.lane.b32.xlu0 %v1079, 74
  %v1081 = vpop.permute.xlu0 %1080
  %vm1082 = vcmask 7168
  %s1083 = scalar_lea.vmem %s1, 54
  %1084 = vst.msk [vmem:[%s1083] sm:$0x1] %vm1082, %v1081
  %s1085 = scalar_lea.vmem %s1, 117
  %1086 = vst.msk [vmem:[%s1085] sm:$0x2] %vm1082, %v1081
  %s1087 = scalar_lea.vmem %s1, 180
  %1088 = vst.msk [vmem:[%s1087] sm:$0x4] %vm1082, %v1081
  %s1089 = scalar_lea.vmem %s1, 243
  %1090 = vst.msk [vmem:[%s1089] sm:$0x8] %vm1082, %v1081
  %s1091 = scalar_lea.vmem %s1, 306
  %1092 = vst.msk [vmem:[%s1091] sm:$0x10] %vm1082, %v1081
  %s1093 = scalar_lea.vmem %s1, 369
  %1094 = vst.msk [vmem:[%s1093] sm:$0x20] %vm1082, %v1081
  %s1095 = scalar_lea.vmem %s1, 432
  %1096 = vst.msk [vmem:[%s1095] sm:$0x40] %vm1082, %v1081
  %s1097 = scalar_lea.vmem %s1, 495
  %1098 = vst.msk [vmem:[%s1097] sm:$0x80] %vm1082, %v1081
  %v1099 = vld [vmem:[%s0] sm:$0xff]
  %1100 = vrot.lane.b32.xlu0 %v1099, 73
  %v1101 = vpop.permute.xlu0 %1100
  %vm1102 = vcmask 7168
  %s1103 = scalar_lea.vmem %s1, 55
  %1104 = vst.msk [vmem:[%s1103] sm:$0x1] %vm1102, %v1101
  %s1105 = scalar_lea.vmem %s1, 118
  %1106 = vst.msk [vmem:[%s1105] sm:$0x2] %vm1102, %v1101
  %s1107 = scalar_lea.vmem %s1, 181
  %1108 = vst.msk [vmem:[%s1107] sm:$0x4] %vm1102, %v1101
  %s1109 = scalar_lea.vmem %s1, 244
  %1110 = vst.msk [vmem:[%s1109] sm:$0x8] %vm1102, %v1101
  %s1111 = scalar_lea.vmem %s1, 307
  %1112 = vst.msk [vmem:[%s1111] sm:$0x10] %vm1102, %v1101
  %s1113 = scalar_lea.vmem %s1, 370
  %1114 = vst.msk [vmem:[%s1113] sm:$0x20] %vm1102, %v1101
  %s1115 = scalar_lea.vmem %s1, 433
  %1116 = vst.msk [vmem:[%s1115] sm:$0x40] %vm1102, %v1101
  %s1117 = scalar_lea.vmem %s1, 496
  %1118 = vst.msk [vmem:[%s1117] sm:$0x80] %vm1102, %v1101
  %v1119 = vld [vmem:[%s0] sm:$0xff]
  %1120 = vrot.lane.b32.xlu0 %v1119, 72
  %v1121 = vpop.permute.xlu0 %1120
  %vm1122 = vcmask 7168
  %s1123 = scalar_lea.vmem %s1, 56
  %1124 = vst.msk [vmem:[%s1123] sm:$0x1] %vm1122, %v1121
  %s1125 = scalar_lea.vmem %s1, 119
  %1126 = vst.msk [vmem:[%s1125] sm:$0x2] %vm1122, %v1121
  %s1127 = scalar_lea.vmem %s1, 182
  %1128 = vst.msk [vmem:[%s1127] sm:$0x4] %vm1122, %v1121
  %s1129 = scalar_lea.vmem %s1, 245
  %1130 = vst.msk [vmem:[%s1129] sm:$0x8] %vm1122, %v1121
  %s1131 = scalar_lea.vmem %s1, 308
  %1132 = vst.msk [vmem:[%s1131] sm:$0x10] %vm1122, %v1121
  %s1133 = scalar_lea.vmem %s1, 371
  %1134 = vst.msk [vmem:[%s1133] sm:$0x20] %vm1122, %v1121
  %s1135 = scalar_lea.vmem %s1, 434
  %1136 = vst.msk [vmem:[%s1135] sm:$0x40] %vm1122, %v1121
  %s1137 = scalar_lea.vmem %s1, 497
  %1138 = vst.msk [vmem:[%s1137] sm:$0x80] %vm1122, %v1121
  %v1139 = vld [vmem:[%s0] sm:$0xff]
  %1140 = vrot.lane.b32.xlu0 %v1139, 71
  %v1141 = vpop.permute.xlu0 %1140
  %vm1142 = vcmask 7168
  %s1143 = scalar_lea.vmem %s1, 57
  %1144 = vst.msk [vmem:[%s1143] sm:$0x1] %vm1142, %v1141
  %s1145 = scalar_lea.vmem %s1, 120
  %1146 = vst.msk [vmem:[%s1145] sm:$0x2] %vm1142, %v1141
  %s1147 = scalar_lea.vmem %s1, 183
  %1148 = vst.msk [vmem:[%s1147] sm:$0x4] %vm1142, %v1141
  %s1149 = scalar_lea.vmem %s1, 246
  %1150 = vst.msk [vmem:[%s1149] sm:$0x8] %vm1142, %v1141
  %s1151 = scalar_lea.vmem %s1, 309
  %1152 = vst.msk [vmem:[%s1151] sm:$0x10] %vm1142, %v1141
  %s1153 = scalar_lea.vmem %s1, 372
  %1154 = vst.msk [vmem:[%s1153] sm:$0x20] %vm1142, %v1141
  %s1155 = scalar_lea.vmem %s1, 435
  %1156 = vst.msk [vmem:[%s1155] sm:$0x40] %vm1142, %v1141
  %s1157 = scalar_lea.vmem %s1, 498
  %1158 = vst.msk [vmem:[%s1157] sm:$0x80] %vm1142, %v1141
  %v1159 = vld [vmem:[%s0] sm:$0xff]
  %1160 = vrot.lane.b32.xlu0 %v1159, 70
  %v1161 = vpop.permute.xlu0 %1160
  %vm1162 = vcmask 7168
  %s1163 = scalar_lea.vmem %s1, 58
  %1164 = vst.msk [vmem:[%s1163] sm:$0x1] %vm1162, %v1161
  %s1165 = scalar_lea.vmem %s1, 121
  %1166 = vst.msk [vmem:[%s1165] sm:$0x2] %vm1162, %v1161
  %s1167 = scalar_lea.vmem %s1, 184
  %1168 = vst.msk [vmem:[%s1167] sm:$0x4] %vm1162, %v1161
  %s1169 = scalar_lea.vmem %s1, 247
  %1170 = vst.msk [vmem:[%s1169] sm:$0x8] %vm1162, %v1161
  %s1171 = scalar_lea.vmem %s1, 310
  %1172 = vst.msk [vmem:[%s1171] sm:$0x10] %vm1162, %v1161
  %s1173 = scalar_lea.vmem %s1, 373
  %1174 = vst.msk [vmem:[%s1173] sm:$0x20] %vm1162, %v1161
  %s1175 = scalar_lea.vmem %s1, 436
  %1176 = vst.msk [vmem:[%s1175] sm:$0x40] %vm1162, %v1161
  %s1177 = scalar_lea.vmem %s1, 499
  %1178 = vst.msk [vmem:[%s1177] sm:$0x80] %vm1162, %v1161
  %v1179 = vld [vmem:[%s0] sm:$0xff]
  %1180 = vrot.lane.b32.xlu0 %v1179, 69
  %v1181 = vpop.permute.xlu0 %1180
  %vm1182 = vcmask 7168
  %s1183 = scalar_lea.vmem %s1, 59
  %1184 = vst.msk [vmem:[%s1183] sm:$0x1] %vm1182, %v1181
  %s1185 = scalar_lea.vmem %s1, 122
  %1186 = vst.msk [vmem:[%s1185] sm:$0x2] %vm1182, %v1181
  %s1187 = scalar_lea.vmem %s1, 185
  %1188 = vst.msk [vmem:[%s1187] sm:$0x4] %vm1182, %v1181
  %s1189 = scalar_lea.vmem %s1, 248
  %1190 = vst.msk [vmem:[%s1189] sm:$0x8] %vm1182, %v1181
  %s1191 = scalar_lea.vmem %s1, 311
  %1192 = vst.msk [vmem:[%s1191] sm:$0x10] %vm1182, %v1181
  %s1193 = scalar_lea.vmem %s1, 374
  %1194 = vst.msk [vmem:[%s1193] sm:$0x20] %vm1182, %v1181
  %s1195 = scalar_lea.vmem %s1, 437
  %1196 = vst.msk [vmem:[%s1195] sm:$0x40] %vm1182, %v1181
  %s1197 = scalar_lea.vmem %s1, 500
  %1198 = vst.msk [vmem:[%s1197] sm:$0x80] %vm1182, %v1181
  %v1199 = vld [vmem:[%s0] sm:$0xff]
  %1200 = vrot.lane.b32.xlu0 %v1199, 68
  %v1201 = vpop.permute.xlu0 %1200
  %vm1202 = vcmask 7168
  %s1203 = scalar_lea.vmem %s1, 60
  %1204 = vst.msk [vmem:[%s1203] sm:$0x1] %vm1202, %v1201
  %s1205 = scalar_lea.vmem %s1, 123
  %1206 = vst.msk [vmem:[%s1205] sm:$0x2] %vm1202, %v1201
  %s1207 = scalar_lea.vmem %s1, 186
  %1208 = vst.msk [vmem:[%s1207] sm:$0x4] %vm1202, %v1201
  %s1209 = scalar_lea.vmem %s1, 249
  %1210 = vst.msk [vmem:[%s1209] sm:$0x8] %vm1202, %v1201
  %s1211 = scalar_lea.vmem %s1, 312
  %1212 = vst.msk [vmem:[%s1211] sm:$0x10] %vm1202, %v1201
  %s1213 = scalar_lea.vmem %s1, 375
  %1214 = vst.msk [vmem:[%s1213] sm:$0x20] %vm1202, %v1201
  %s1215 = scalar_lea.vmem %s1, 438
  %1216 = vst.msk [vmem:[%s1215] sm:$0x40] %vm1202, %v1201
  %s1217 = scalar_lea.vmem %s1, 501
  %1218 = vst.msk [vmem:[%s1217] sm:$0x80] %vm1202, %v1201
  %v1219 = vld [vmem:[%s0] sm:$0xff]
  %1220 = vrot.lane.b32.xlu0 %v1219, 67
  %v1221 = vpop.permute.xlu0 %1220
  %vm1222 = vcmask 7168
  %s1223 = scalar_lea.vmem %s1, 61
  %1224 = vst.msk [vmem:[%s1223] sm:$0x1] %vm1222, %v1221
  %s1225 = scalar_lea.vmem %s1, 124
  %1226 = vst.msk [vmem:[%s1225] sm:$0x2] %vm1222, %v1221
  %s1227 = scalar_lea.vmem %s1, 187
  %1228 = vst.msk [vmem:[%s1227] sm:$0x4] %vm1222, %v1221
  %s1229 = scalar_lea.vmem %s1, 250
  %1230 = vst.msk [vmem:[%s1229] sm:$0x8] %vm1222, %v1221
  %s1231 = scalar_lea.vmem %s1, 313
  %1232 = vst.msk [vmem:[%s1231] sm:$0x10] %vm1222, %v1221
  %s1233 = scalar_lea.vmem %s1, 376
  %1234 = vst.msk [vmem:[%s1233] sm:$0x20] %vm1222, %v1221
  %s1235 = scalar_lea.vmem %s1, 439
  %1236 = vst.msk [vmem:[%s1235] sm:$0x40] %vm1222, %v1221
  %s1237 = scalar_lea.vmem %s1, 502
  %1238 = vst.msk [vmem:[%s1237] sm:$0x80] %vm1222, %v1221
  %v1239 = vld [vmem:[%s0] sm:$0xff]
  %1240 = vrot.lane.b32.xlu0 %v1239, 66
  %v1241 = vpop.permute.xlu0 %1240
  %vm1242 = vcmask 7168
  %s1243 = scalar_lea.vmem %s1, 62
  %1244 = vst.msk [vmem:[%s1243] sm:$0x1] %vm1242, %v1241
  %s1245 = scalar_lea.vmem %s1, 125
  %1246 = vst.msk [vmem:[%s1245] sm:$0x2] %vm1242, %v1241
  %s1247 = scalar_lea.vmem %s1, 188
  %1248 = vst.msk [vmem:[%s1247] sm:$0x4] %vm1242, %v1241
  %s1249 = scalar_lea.vmem %s1, 251
  %1250 = vst.msk [vmem:[%s1249] sm:$0x8] %vm1242, %v1241
  %s1251 = scalar_lea.vmem %s1, 314
  %1252 = vst.msk [vmem:[%s1251] sm:$0x10] %vm1242, %v1241
  %s1253 = scalar_lea.vmem %s1, 377
  %1254 = vst.msk [vmem:[%s1253] sm:$0x20] %vm1242, %v1241
  %s1255 = scalar_lea.vmem %s1, 440
  %1256 = vst.msk [vmem:[%s1255] sm:$0x40] %vm1242, %v1241
  %s1257 = scalar_lea.vmem %s1, 503
  %1258 = vst.msk [vmem:[%s1257] sm:$0x80] %vm1242, %v1241
  %v1259 = vld [vmem:[%s0] sm:$0xff]
  %1260 = vrot.lane.b32.xlu0 %v1259, 65
  %v1261 = vpop.permute.xlu0 %1260
  %vm1262 = vcmask 7168
  %s1263 = scalar_lea.vmem %s1, 63
  %1264 = vst.msk [vmem:[%s1263] sm:$0x1] %vm1262, %v1261
  %s1265 = scalar_lea.vmem %s1, 126
  %1266 = vst.msk [vmem:[%s1265] sm:$0x2] %vm1262, %v1261
  %s1267 = scalar_lea.vmem %s1, 189
  %1268 = vst.msk [vmem:[%s1267] sm:$0x4] %vm1262, %v1261
  %s1269 = scalar_lea.vmem %s1, 252
  %1270 = vst.msk [vmem:[%s1269] sm:$0x8] %vm1262, %v1261
  %s1271 = scalar_lea.vmem %s1, 315
  %1272 = vst.msk [vmem:[%s1271] sm:$0x10] %vm1262, %v1261
  %s1273 = scalar_lea.vmem %s1, 378
  %1274 = vst.msk [vmem:[%s1273] sm:$0x20] %vm1262, %v1261
  %s1275 = scalar_lea.vmem %s1, 441
  %1276 = vst.msk [vmem:[%s1275] sm:$0x40] %vm1262, %v1261
  %s1277 = scalar_lea.vmem %s1, 504
  %1278 = vst.msk [vmem:[%s1277] sm:$0x80] %vm1262, %v1261

// kernel: tile.1
$region0: #{tile.1}
  %s0 = inlined_call_operand.vmem [shape: f32[8,32], index: 0, kind: input, shape index: {}]
  %s1 = inlined_call_operand.vmem [shape: f32[256,1], index: 1, kind: output, shape index: {}]
  %v2 = vld [vmem:[%s0] sm:$0xff]
  %vm3 = vcmask 7168
  %4 = vst.msk [vmem:[%s1] sm:$0x1] %vm3, %v2
  %s5 = scalar_lea.vmem %s1, 31
  %6 = vst.msk [vmem:[%s5] sm:$0x2] %vm3, %v2
  %s7 = scalar_lea.vmem %s1, 62
  %8 = vst.msk [vmem:[%s7] sm:$0x4] %vm3, %v2
  %s9 = scalar_lea.vmem %s1, 93
  %10 = vst.msk [vmem:[%s9] sm:$0x8] %vm3, %v2
  %s11 = scalar_lea.vmem %s1, 124
  %12 = vst.msk [vmem:[%s11] sm:$0x10] %vm3, %v2
  %s13 = scalar_lea.vmem %s1, 155
  %14 = vst.msk [vmem:[%s13] sm:$0x20] %vm3, %v2
  %s15 = scalar_lea.vmem %s1, 186
  %16 = vst.msk [vmem:[%s15] sm:$0x40] %vm3, %v2
  %s17 = scalar_lea.vmem %s1, 217
  %18 = vst.msk [vmem:[%s17] sm:$0x80] %vm3, %v2
  %v19 = vld [vmem:[%s0] sm:$0xff]
  %20 = vrot.lane.b32.xlu0 %v19, 127
  %v21 = vpop.permute.xlu0 %20
  %vm22 = vcmask 7168
  %s23 = scalar_lea.vmem %s1, 1
  %24 = vst.msk [vmem:[%s23] sm:$0x1] %vm22, %v21
  %s25 = scalar_lea.vmem %s1, 32
  %26 = vst.msk [vmem:[%s25] sm:$0x2] %vm22, %v21
  %s27 = scalar_lea.vmem %s1, 63
  %28 = vst.msk [vmem:[%s27] sm:$0x4] %vm22, %v21
  %s29 = scalar_lea.vmem %s1, 94
  %30 = vst.msk [vmem:[%s29] sm:$0x8] %vm22, %v21
  %s31 = scalar_lea.vmem %s1, 125
  %32 = vst.msk [vmem:[%s31] sm:$0x10] %vm22, %v21
  %s33 = scalar_lea.vmem %s1, 156
  %34 = vst.msk [vmem:[%s33] sm:$0x20] %vm22, %v21
  %s35 = scalar_lea.vmem %s1, 187
  %36 = vst.msk [vmem:[%s35] sm:$0x40] %vm22, %v21
  %s37 = scalar_lea.vmem %s1, 218
  %38 = vst.msk [vmem:[%s37] sm:$0x80] %vm22, %v21
  %v39 = vld [vmem:[%s0] sm:$0xff]
  %40 = vrot.lane.b32.xlu0 %v39, 126
  %v41 = vpop.permute.xlu0 %40
  %vm42 = vcmask 7168
  %s43 = scalar_lea.vmem %s1, 2
  %44 = vst.msk [vmem:[%s43] sm:$0x1] %vm42, %v41
  %s45 = scalar_lea.vmem %s1, 33
  %46 = vst.msk [vmem:[%s45] sm:$0x2] %vm42, %v41
  %s47 = scalar_lea.vmem %s1, 64
  %48 = vst.msk [vmem:[%s47] sm:$0x4] %vm42, %v41
  %s49 = scalar_lea.vmem %s1, 95
  %50 = vst.msk [vmem:[%s49] sm:$0x8] %vm42, %v41
  %s51 = scalar_lea.vmem %s1, 126
  %52 = vst.msk [vmem:[%s51] sm:$0x10] %vm42, %v41
  %s53 = scalar_lea.vmem %s1, 157
  %54 = vst.msk [vmem:[%s53] sm:$0x20] %vm42, %v41
  %s55 = scalar_lea.vmem %s1, 188
  %56 = vst.msk [vmem:[%s55] sm:$0x40] %vm42, %v41
  %s57 = scalar_lea.vmem %s1, 219
  %58 = vst.msk [vmem:[%s57] sm:$0x80] %vm42, %v41
  %v59 = vld [vmem:[%s0] sm:$0xff]
  %60 = vrot.lane.b32.xlu0 %v59, 125
  %v61 = vpop.permute.xlu0 %60
  %vm62 = vcmask 7168
  %s63 = scalar_lea.vmem %s1, 3
  %64 = vst.msk [vmem:[%s63] sm:$0x1] %vm62, %v61
  %s65 = scalar_lea.vmem %s1, 34
  %66 = vst.msk [vmem:[%s65] sm:$0x2] %vm62, %v61
  %s67 = scalar_lea.vmem %s1, 65
  %68 = vst.msk [vmem:[%s67] sm:$0x4] %vm62, %v61
  %s69 = scalar_lea.vmem %s1, 96
  %70 = vst.msk [vmem:[%s69] sm:$0x8] %vm62, %v61
  %s71 = scalar_lea.vmem %s1, 127
  %72 = vst.msk [vmem:[%s71] sm:$0x10] %vm62, %v61
  %s73 = scalar_lea.vmem %s1, 158
  %74 = vst.msk [vmem:[%s73] sm:$0x20] %vm62, %v61
  %s75 = scalar_lea.vmem %s1, 189
  %76 = vst.msk [vmem:[%s75] sm:$0x40] %vm62, %v61
  %s77 = scalar_lea.vmem %s1, 220
  %78 = vst.msk [vmem:[%s77] sm:$0x80] %vm62, %v61
  %v79 = vld [vmem:[%s0] sm:$0xff]
  %80 = vrot.lane.b32.xlu0 %v79, 124
  %v81 = vpop.permute.xlu0 %80
  %vm82 = vcmask 7168
  %s83 = scalar_lea.vmem %s1, 4
  %84 = vst.msk [vmem:[%s83] sm:$0x1] %vm82, %v81
  %s85 = scalar_lea.vmem %s1, 35
  %86 = vst.msk [vmem:[%s85] sm:$0x2] %vm82, %v81
  %s87 = scalar_lea.vmem %s1, 66
  %88 = vst.msk [vmem:[%s87] sm:$0x4] %vm82, %v81
  %s89 = scalar_lea.vmem %s1, 97
  %90 = vst.msk [vmem:[%s89] sm:$0x8] %vm82, %v81
  %s91 = scalar_lea.vmem %s1, 128
  %92 = vst.msk [vmem:[%s91] sm:$0x10] %vm82, %v81
  %s93 = scalar_lea.vmem %s1, 159
  %94 = vst.msk [vmem:[%s93] sm:$0x20] %vm82, %v81
  %s95 = scalar_lea.vmem %s1, 190
  %96 = vst.msk [vmem:[%s95] sm:$0x40] %vm82, %v81
  %s97 = scalar_lea.vmem %s1, 221
  %98 = vst.msk [vmem:[%s97] sm:$0x80] %vm82, %v81
  %v99 = vld [vmem:[%s0] sm:$0xff]
  %100 = vrot.lane.b32.xlu0 %v99, 123
  %v101 = vpop.permute.xlu0 %100
  %vm102 = vcmask 7168
  %s103 = scalar_lea.vmem %s1, 5
  %104 = vst.msk [vmem:[%s103] sm:$0x1] %vm102, %v101
  %s105 = scalar_lea.vmem %s1, 36
  %106 = vst.msk [vmem:[%s105] sm:$0x2] %vm102, %v101
  %s107 = scalar_lea.vmem %s1, 67
  %108 = vst.msk [vmem:[%s107] sm:$0x4] %vm102, %v101
  %s109 = scalar_lea.vmem %s1, 98
  %110 = vst.msk [vmem:[%s109] sm:$0x8] %vm102, %v101
  %s111 = scalar_lea.vmem %s1, 129
  %112 = vst.msk [vmem:[%s111] sm:$0x10] %vm102, %v101
  %s113 = scalar_lea.vmem %s1, 160
  %114 = vst.msk [vmem:[%s113] sm:$0x20] %vm102, %v101
  %s115 = scalar_lea.vmem %s1, 191
  %116 = vst.msk [vmem:[%s115] sm:$0x40] %vm102, %v101
  %s117 = scalar_lea.vmem %s1, 222
  %118 = vst.msk [vmem:[%s117] sm:$0x80] %vm102, %v101
  %v119 = vld [vmem:[%s0] sm:$0xff]
  %120 = vrot.lane.b32.xlu0 %v119, 122
  %v121 = vpop.permute.xlu0 %120
  %vm122 = vcmask 7168
  %s123 = scalar_lea.vmem %s1, 6
  %124 = vst.msk [vmem:[%s123] sm:$0x1] %vm122, %v121
  %s125 = scalar_lea.vmem %s1, 37
  %126 = vst.msk [vmem:[%s125] sm:$0x2] %vm122, %v121
  %s127 = scalar_lea.vmem %s1, 68
  %128 = vst.msk [vmem:[%s127] sm:$0x4] %vm122, %v121
  %s129 = scalar_lea.vmem %s1, 99
  %130 = vst.msk [vmem:[%s129] sm:$0x8] %vm122, %v121
  %s131 = scalar_lea.vmem %s1, 130
  %132 = vst.msk [vmem:[%s131] sm:$0x10] %vm122, %v121
  %s133 = scalar_lea.vmem %s1, 161
  %134 = vst.msk [vmem:[%s133] sm:$0x20] %vm122, %v121
  %s135 = scalar_lea.vmem %s1, 192
  %136 = vst.msk [vmem:[%s135] sm:$0x40] %vm122, %v121
  %s137 = scalar_lea.vmem %s1, 223
  %138 = vst.msk [vmem:[%s137] sm:$0x80] %vm122, %v121
  %v139 = vld [vmem:[%s0] sm:$0xff]
  %140 = vrot.lane.b32.xlu0 %v139, 121
  %v141 = vpop.permute.xlu0 %140
  %vm142 = vcmask 7168
  %s143 = scalar_lea.vmem %s1, 7
  %144 = vst.msk [vmem:[%s143] sm:$0x1] %vm142, %v141
  %s145 = scalar_lea.vmem %s1, 38
  %146 = vst.msk [vmem:[%s145] sm:$0x2] %vm142, %v141
  %s147 = scalar_lea.vmem %s1, 69
  %148 = vst.msk [vmem:[%s147] sm:$0x4] %vm142, %v141
  %s149 = scalar_lea.vmem %s1, 100
  %150 = vst.msk [vmem:[%s149] sm:$0x8] %vm142, %v141
  %s151 = scalar_lea.vmem %s1, 131
  %152 = vst.msk [vmem:[%s151] sm:$0x10] %vm142, %v141
  %s153 = scalar_lea.vmem %s1, 162
  %154 = vst.msk [vmem:[%s153] sm:$0x20] %vm142, %v141
  %s155 = scalar_lea.vmem %s1, 193
  %156 = vst.msk [vmem:[%s155] sm:$0x40] %vm142, %v141
  %s157 = scalar_lea.vmem %s1, 224
  %158 = vst.msk [vmem:[%s157] sm:$0x80] %vm142, %v141
  %v159 = vld [vmem:[%s0] sm:$0xff]
  %160 = vrot.lane.b32.xlu0 %v159, 120
  %v161 = vpop.permute.xlu0 %160
  %vm162 = vcmask 7168
  %s163 = scalar_lea.vmem %s1, 8
  %164 = vst.msk [vmem:[%s163] sm:$0x1] %vm162, %v161
  %s165 = scalar_lea.vmem %s1, 39
  %166 = vst.msk [vmem:[%s165] sm:$0x2] %vm162, %v161
  %s167 = scalar_lea.vmem %s1, 70
  %168 = vst.msk [vmem:[%s167] sm:$0x4] %vm162, %v161
  %s169 = scalar_lea.vmem %s1, 101
  %170 = vst.msk [vmem:[%s169] sm:$0x8] %vm162, %v161
  %s171 = scalar_lea.vmem %s1, 132
  %172 = vst.msk [vmem:[%s171] sm:$0x10] %vm162, %v161
  %s173 = scalar_lea.vmem %s1, 163
  %174 = vst.msk [vmem:[%s173] sm:$0x20] %vm162, %v161
  %s175 = scalar_lea.vmem %s1, 194
  %176 = vst.msk [vmem:[%s175] sm:$0x40] %vm162, %v161
  %s177 = scalar_lea.vmem %s1, 225
  %178 = vst.msk [vmem:[%s177] sm:$0x80] %vm162, %v161
  %v179 = vld [vmem:[%s0] sm:$0xff]
  %180 = vrot.lane.b32.xlu0 %v179, 119
  %v181 = vpop.permute.xlu0 %180
  %vm182 = vcmask 7168
  %s183 = scalar_lea.vmem %s1, 9
  %184 = vst.msk [vmem:[%s183] sm:$0x1] %vm182, %v181
  %s185 = scalar_lea.vmem %s1, 40
  %186 = vst.msk [vmem:[%s185] sm:$0x2] %vm182, %v181
  %s187 = scalar_lea.vmem %s1, 71
  %188 = vst.msk [vmem:[%s187] sm:$0x4] %vm182, %v181
  %s189 = scalar_lea.vmem %s1, 102
  %190 = vst.msk [vmem:[%s189] sm:$0x8] %vm182, %v181
  %s191 = scalar_lea.vmem %s1, 133
  %192 = vst.msk [vmem:[%s191] sm:$0x10] %vm182, %v181
  %s193 = scalar_lea.vmem %s1, 164
  %194 = vst.msk [vmem:[%s193] sm:$0x20] %vm182, %v181
  %s195 = scalar_lea.vmem %s1, 195
  %196 = vst.msk [vmem:[%s195] sm:$0x40] %vm182, %v181
  %s197 = scalar_lea.vmem %s1, 226
  %198 = vst.msk [vmem:[%s197] sm:$0x80] %vm182, %v181
  %v199 = vld [vmem:[%s0] sm:$0xff]
  %200 = vrot.lane.b32.xlu0 %v199, 118
  %v201 = vpop.permute.xlu0 %200
  %vm202 = vcmask 7168
  %s203 = scalar_lea.vmem %s1, 10
  %204 = vst.msk [vmem:[%s203] sm:$0x1] %vm202, %v201
  %s205 = scalar_lea.vmem %s1, 41
  %206 = vst.msk [vmem:[%s205] sm:$0x2] %vm202, %v201
  %s207 = scalar_lea.vmem %s1, 72
  %208 = vst.msk [vmem:[%s207] sm:$0x4] %vm202, %v201
  %s209 = scalar_lea.vmem %s1, 103
  %210 = vst.msk [vmem:[%s209] sm:$0x8] %vm202, %v201
  %s211 = scalar_lea.vmem %s1, 134
  %212 = vst.msk [vmem:[%s211] sm:$0x10] %vm202, %v201
  %s213 = scalar_lea.vmem %s1, 165
  %214 = vst.msk [vmem:[%s213] sm:$0x20] %vm202, %v201
  %s215 = scalar_lea.vmem %s1, 196
  %216 = vst.msk [vmem:[%s215] sm:$0x40] %vm202, %v201
  %s217 = scalar_lea.vmem %s1, 227
  %218 = vst.msk [vmem:[%s217] sm:$0x80] %vm202, %v201
  %v219 = vld [vmem:[%s0] sm:$0xff]
  %220 = vrot.lane.b32.xlu0 %v219, 117
  %v221 = vpop.permute.xlu0 %220
  %vm222 = vcmask 7168
  %s223 = scalar_lea.vmem %s1, 11
  %224 = vst.msk [vmem:[%s223] sm:$0x1] %vm222, %v221
  %s225 = scalar_lea.vmem %s1, 42
  %226 = vst.msk [vmem:[%s225] sm:$0x2] %vm222, %v221
  %s227 = scalar_lea.vmem %s1, 73
  %228 = vst.msk [vmem:[%s227] sm:$0x4] %vm222, %v221
  %s229 = scalar_lea.vmem %s1, 104
  %230 = vst.msk [vmem:[%s229] sm:$0x8] %vm222, %v221
  %s231 = scalar_lea.vmem %s1, 135
  %232 = vst.msk [vmem:[%s231] sm:$0x10] %vm222, %v221
  %s233 = scalar_lea.vmem %s1, 166
  %234 = vst.msk [vmem:[%s233] sm:$0x20] %vm222, %v221
  %s235 = scalar_lea.vmem %s1, 197
  %236 = vst.msk [vmem:[%s235] sm:$0x40] %vm222, %v221
  %s237 = scalar_lea.vmem %s1, 228
  %238 = vst.msk [vmem:[%s237] sm:$0x80] %vm222, %v221
  %v239 = vld [vmem:[%s0] sm:$0xff]
  %240 = vrot.lane.b32.xlu0 %v239, 116
  %v241 = vpop.permute.xlu0 %240
  %vm242 = vcmask 7168
  %s243 = scalar_lea.vmem %s1, 12
  %244 = vst.msk [vmem:[%s243] sm:$0x1] %vm242, %v241
  %s245 = scalar_lea.vmem %s1, 43
  %246 = vst.msk [vmem:[%s245] sm:$0x2] %vm242, %v241
  %s247 = scalar_lea.vmem %s1, 74
  %248 = vst.msk [vmem:[%s247] sm:$0x4] %vm242, %v241
  %s249 = scalar_lea.vmem %s1, 105
  %250 = vst.msk [vmem:[%s249] sm:$0x8] %vm242, %v241
  %s251 = scalar_lea.vmem %s1, 136
  %252 = vst.msk [vmem:[%s251] sm:$0x10] %vm242, %v241
  %s253 = scalar_lea.vmem %s1, 167
  %254 = vst.msk [vmem:[%s253] sm:$0x20] %vm242, %v241
  %s255 = scalar_lea.vmem %s1, 198
  %256 = vst.msk [vmem:[%s255] sm:$0x40] %vm242, %v241
  %s257 = scalar_lea.vmem %s1, 229
  %258 = vst.msk [vmem:[%s257] sm:$0x80] %vm242, %v241
  %v259 = vld [vmem:[%s0] sm:$0xff]
  %260 = vrot.lane.b32.xlu0 %v259, 115
  %v261 = vpop.permute.xlu0 %260
  %vm262 = vcmask 7168
  %s263 = scalar_lea.vmem %s1, 13
  %264 = vst.msk [vmem:[%s263] sm:$0x1] %vm262, %v261
  %s265 = scalar_lea.vmem %s1, 44
  %266 = vst.msk [vmem:[%s265] sm:$0x2] %vm262, %v261
  %s267 = scalar_lea.vmem %s1, 75
  %268 = vst.msk [vmem:[%s267] sm:$0x4] %vm262, %v261
  %s269 = scalar_lea.vmem %s1, 106
  %270 = vst.msk [vmem:[%s269] sm:$0x8] %vm262, %v261
  %s271 = scalar_lea.vmem %s1, 137
  %272 = vst.msk [vmem:[%s271] sm:$0x10] %vm262, %v261
  %s273 = scalar_lea.vmem %s1, 168
  %274 = vst.msk [vmem:[%s273] sm:$0x20] %vm262, %v261
  %s275 = scalar_lea.vmem %s1, 199
  %276 = vst.msk [vmem:[%s275] sm:$0x40] %vm262, %v261
  %s277 = scalar_lea.vmem %s1, 230
  %278 = vst.msk [vmem:[%s277] sm:$0x80] %vm262, %v261
  %v279 = vld [vmem:[%s0] sm:$0xff]
  %280 = vrot.lane.b32.xlu0 %v279, 114
  %v281 = vpop.permute.xlu0 %280
  %vm282 = vcmask 7168
  %s283 = scalar_lea.vmem %s1, 14
  %284 = vst.msk [vmem:[%s283] sm:$0x1] %vm282, %v281
  %s285 = scalar_lea.vmem %s1, 45
  %286 = vst.msk [vmem:[%s285] sm:$0x2] %vm282, %v281
  %s287 = scalar_lea.vmem %s1, 76
  %288 = vst.msk [vmem:[%s287] sm:$0x4] %vm282, %v281
  %s289 = scalar_lea.vmem %s1, 107
  %290 = vst.msk [vmem:[%s289] sm:$0x8] %vm282, %v281
  %s291 = scalar_lea.vmem %s1, 138
  %292 = vst.msk [vmem:[%s291] sm:$0x10] %vm282, %v281
  %s293 = scalar_lea.vmem %s1, 169
  %294 = vst.msk [vmem:[%s293] sm:$0x20] %vm282, %v281
  %s295 = scalar_lea.vmem %s1, 200
  %296 = vst.msk [vmem:[%s295] sm:$0x40] %vm282, %v281
  %s297 = scalar_lea.vmem %s1, 231
  %298 = vst.msk [vmem:[%s297] sm:$0x80] %vm282, %v281
  %v299 = vld [vmem:[%s0] sm:$0xff]
  %300 = vrot.lane.b32.xlu0 %v299, 113
  %v301 = vpop.permute.xlu0 %300
  %vm302 = vcmask 7168
  %s303 = scalar_lea.vmem %s1, 15
  %304 = vst.msk [vmem:[%s303] sm:$0x1] %vm302, %v301
  %s305 = scalar_lea.vmem %s1, 46
  %306 = vst.msk [vmem:[%s305] sm:$0x2] %vm302, %v301
  %s307 = scalar_lea.vmem %s1, 77
  %308 = vst.msk [vmem:[%s307] sm:$0x4] %vm302, %v301
  %s309 = scalar_lea.vmem %s1, 108
  %310 = vst.msk [vmem:[%s309] sm:$0x8] %vm302, %v301
  %s311 = scalar_lea.vmem %s1, 139
  %312 = vst.msk [vmem:[%s311] sm:$0x10] %vm302, %v301
  %s313 = scalar_lea.vmem %s1, 170
  %314 = vst.msk [vmem:[%s313] sm:$0x20] %vm302, %v301
  %s315 = scalar_lea.vmem %s1, 201
  %316 = vst.msk [vmem:[%s315] sm:$0x40] %vm302, %v301
  %s317 = scalar_lea.vmem %s1, 232
  %318 = vst.msk [vmem:[%s317] sm:$0x80] %vm302, %v301
  %v319 = vld [vmem:[%s0] sm:$0xff]
  %320 = vrot.lane.b32.xlu0 %v319, 112
  %v321 = vpop.permute.xlu0 %320
  %vm322 = vcmask 7168
  %s323 = scalar_lea.vmem %s1, 16
  %324 = vst.msk [vmem:[%s323] sm:$0x1] %vm322, %v321
  %s325 = scalar_lea.vmem %s1, 47
  %326 = vst.msk [vmem:[%s325] sm:$0x2] %vm322, %v321
  %s327 = scalar_lea.vmem %s1, 78
  %328 = vst.msk [vmem:[%s327] sm:$0x4] %vm322, %v321
  %s329 = scalar_lea.vmem %s1, 109
  %330 = vst.msk [vmem:[%s329] sm:$0x8] %vm322, %v321
  %s331 = scalar_lea.vmem %s1, 140
  %332 = vst.msk [vmem:[%s331] sm:$0x10] %vm322, %v321
  %s333 = scalar_lea.vmem %s1, 171
  %334 = vst.msk [vmem:[%s333] sm:$0x20] %vm322, %v321
  %s335 = scalar_lea.vmem %s1, 202
  %336 = vst.msk [vmem:[%s335] sm:$0x40] %vm322, %v321
  %s337 = scalar_lea.vmem %s1, 233
  %338 = vst.msk [vmem:[%s337] sm:$0x80] %vm322, %v321
  %v339 = vld [vmem:[%s0] sm:$0xff]
  %340 = vrot.lane.b32.xlu0 %v339, 111
  %v341 = vpop.permute.xlu0 %340
  %vm342 = vcmask 7168
  %s343 = scalar_lea.vmem %s1, 17
  %344 = vst.msk [vmem:[%s343] sm:$0x1] %vm342, %v341
  %s345 = scalar_lea.vmem %s1, 48
  %346 = vst.msk [vmem:[%s345] sm:$0x2] %vm342, %v341
  %s347 = scalar_lea.vmem %s1, 79
  %348 = vst.msk [vmem:[%s347] sm:$0x4] %vm342, %v341
  %s349 = scalar_lea.vmem %s1, 110
  %350 = vst.msk [vmem:[%s349] sm:$0x8] %vm342, %v341
  %s351 = scalar_lea.vmem %s1, 141
  %352 = vst.msk [vmem:[%s351] sm:$0x10] %vm342, %v341
  %s353 = scalar_lea.vmem %s1, 172
  %354 = vst.msk [vmem:[%s353] sm:$0x20] %vm342, %v341
  %s355 = scalar_lea.vmem %s1, 203
  %356 = vst.msk [vmem:[%s355] sm:$0x40] %vm342, %v341
  %s357 = scalar_lea.vmem %s1, 234
  %358 = vst.msk [vmem:[%s357] sm:$0x80] %vm342, %v341
  %v359 = vld [vmem:[%s0] sm:$0xff]
  %360 = vrot.lane.b32.xlu0 %v359, 110
  %v361 = vpop.permute.xlu0 %360
  %vm362 = vcmask 7168
  %s363 = scalar_lea.vmem %s1, 18
  %364 = vst.msk [vmem:[%s363] sm:$0x1] %vm362, %v361
  %s365 = scalar_lea.vmem %s1, 49
  %366 = vst.msk [vmem:[%s365] sm:$0x2] %vm362, %v361
  %s367 = scalar_lea.vmem %s1, 80
  %368 = vst.msk [vmem:[%s367] sm:$0x4] %vm362, %v361
  %s369 = scalar_lea.vmem %s1, 111
  %370 = vst.msk [vmem:[%s369] sm:$0x8] %vm362, %v361
  %s371 = scalar_lea.vmem %s1, 142
  %372 = vst.msk [vmem:[%s371] sm:$0x10] %vm362, %v361
  %s373 = scalar_lea.vmem %s1, 173
  %374 = vst.msk [vmem:[%s373] sm:$0x20] %vm362, %v361
  %s375 = scalar_lea.vmem %s1, 204
  %376 = vst.msk [vmem:[%s375] sm:$0x40] %vm362, %v361
  %s377 = scalar_lea.vmem %s1, 235
  %378 = vst.msk [vmem:[%s377] sm:$0x80] %vm362, %v361
  %v379 = vld [vmem:[%s0] sm:$0xff]
  %380 = vrot.lane.b32.xlu0 %v379, 109
  %v381 = vpop.permute.xlu0 %380
  %vm382 = vcmask 7168
  %s383 = scalar_lea.vmem %s1, 19
  %384 = vst.msk [vmem:[%s383] sm:$0x1] %vm382, %v381
  %s385 = scalar_lea.vmem %s1, 50
  %386 = vst.msk [vmem:[%s385] sm:$0x2] %vm382, %v381
  %s387 = scalar_lea.vmem %s1, 81
  %388 = vst.msk [vmem:[%s387] sm:$0x4] %vm382, %v381
  %s389 = scalar_lea.vmem %s1, 112
  %390 = vst.msk [vmem:[%s389] sm:$0x8] %vm382, %v381
  %s391 = scalar_lea.vmem %s1, 143
  %392 = vst.msk [vmem:[%s391] sm:$0x10] %vm382, %v381
  %s393 = scalar_lea.vmem %s1, 174
  %394 = vst.msk [vmem:[%s393] sm:$0x20] %vm382, %v381
  %s395 = scalar_lea.vmem %s1, 205
  %396 = vst.msk [vmem:[%s395] sm:$0x40] %vm382, %v381
  %s397 = scalar_lea.vmem %s1, 236
  %398 = vst.msk [vmem:[%s397] sm:$0x80] %vm382, %v381
  %v399 = vld [vmem:[%s0] sm:$0xff]
  %400 = vrot.lane.b32.xlu0 %v399, 108
  %v401 = vpop.permute.xlu0 %400
  %vm402 = vcmask 7168
  %s403 = scalar_lea.vmem %s1, 20
  %404 = vst.msk [vmem:[%s403] sm:$0x1] %vm402, %v401
  %s405 = scalar_lea.vmem %s1, 51
  %406 = vst.msk [vmem:[%s405] sm:$0x2] %vm402, %v401
  %s407 = scalar_lea.vmem %s1, 82
  %408 = vst.msk [vmem:[%s407] sm:$0x4] %vm402, %v401
  %s409 = scalar_lea.vmem %s1, 113
  %410 = vst.msk [vmem:[%s409] sm:$0x8] %vm402, %v401
  %s411 = scalar_lea.vmem %s1, 144
  %412 = vst.msk [vmem:[%s411] sm:$0x10] %vm402, %v401
  %s413 = scalar_lea.vmem %s1, 175
  %414 = vst.msk [vmem:[%s413] sm:$0x20] %vm402, %v401
  %s415 = scalar_lea.vmem %s1, 206
  %416 = vst.msk [vmem:[%s415] sm:$0x40] %vm402, %v401
  %s417 = scalar_lea.vmem %s1, 237
  %418 = vst.msk [vmem:[%s417] sm:$0x80] %vm402, %v401
  %v419 = vld [vmem:[%s0] sm:$0xff]
  %420 = vrot.lane.b32.xlu0 %v419, 107
  %v421 = vpop.permute.xlu0 %420
  %vm422 = vcmask 7168
  %s423 = scalar_lea.vmem %s1, 21
  %424 = vst.msk [vmem:[%s423] sm:$0x1] %vm422, %v421
  %s425 = scalar_lea.vmem %s1, 52
  %426 = vst.msk [vmem:[%s425] sm:$0x2] %vm422, %v421
  %s427 = scalar_lea.vmem %s1, 83
  %428 = vst.msk [vmem:[%s427] sm:$0x4] %vm422, %v421
  %s429 = scalar_lea.vmem %s1, 114
  %430 = vst.msk [vmem:[%s429] sm:$0x8] %vm422, %v421
  %s431 = scalar_lea.vmem %s1, 145
  %432 = vst.msk [vmem:[%s431] sm:$0x10] %vm422, %v421
  %s433 = scalar_lea.vmem %s1, 176
  %434 = vst.msk [vmem:[%s433] sm:$0x20] %vm422, %v421
  %s435 = scalar_lea.vmem %s1, 207
  %436 = vst.msk [vmem:[%s435] sm:$0x40] %vm422, %v421
  %s437 = scalar_lea.vmem %s1, 238
  %438 = vst.msk [vmem:[%s437] sm:$0x80] %vm422, %v421
  %v439 = vld [vmem:[%s0] sm:$0xff]
  %440 = vrot.lane.b32.xlu0 %v439, 106
  %v441 = vpop.permute.xlu0 %440
  %vm442 = vcmask 7168
  %s443 = scalar_lea.vmem %s1, 22
  %444 = vst.msk [vmem:[%s443] sm:$0x1] %vm442, %v441
  %s445 = scalar_lea.vmem %s1, 53
  %446 = vst.msk [vmem:[%s445] sm:$0x2] %vm442, %v441
  %s447 = scalar_lea.vmem %s1, 84
  %448 = vst.msk [vmem:[%s447] sm:$0x4] %vm442, %v441
  %s449 = scalar_lea.vmem %s1, 115
  %450 = vst.msk [vmem:[%s449] sm:$0x8] %vm442, %v441
  %s451 = scalar_lea.vmem %s1, 146
  %452 = vst.msk [vmem:[%s451] sm:$0x10] %vm442, %v441
  %s453 = scalar_lea.vmem %s1, 177
  %454 = vst.msk [vmem:[%s453] sm:$0x20] %vm442, %v441
  %s455 = scalar_lea.vmem %s1, 208
  %456 = vst.msk [vmem:[%s455] sm:$0x40] %vm442, %v441
  %s457 = scalar_lea.vmem %s1, 239
  %458 = vst.msk [vmem:[%s457] sm:$0x80] %vm442, %v441
  %v459 = vld [vmem:[%s0] sm:$0xff]
  %460 = vrot.lane.b32.xlu0 %v459, 105
  %v461 = vpop.permute.xlu0 %460
  %vm462 = vcmask 7168
  %s463 = scalar_lea.vmem %s1, 23
  %464 = vst.msk [vmem:[%s463] sm:$0x1] %vm462, %v461
  %s465 = scalar_lea.vmem %s1, 54
  %466 = vst.msk [vmem:[%s465] sm:$0x2] %vm462, %v461
  %s467 = scalar_lea.vmem %s1, 85
  %468 = vst.msk [vmem:[%s467] sm:$0x4] %vm462, %v461
  %s469 = scalar_lea.vmem %s1, 116
  %470 = vst.msk [vmem:[%s469] sm:$0x8] %vm462, %v461
  %s471 = scalar_lea.vmem %s1, 147
  %472 = vst.msk [vmem:[%s471] sm:$0x10] %vm462, %v461
  %s473 = scalar_lea.vmem %s1, 178
  %474 = vst.msk [vmem:[%s473] sm:$0x20] %vm462, %v461
  %s475 = scalar_lea.vmem %s1, 209
  %476 = vst.msk [vmem:[%s475] sm:$0x40] %vm462, %v461
  %s477 = scalar_lea.vmem %s1, 240
  %478 = vst.msk [vmem:[%s477] sm:$0x80] %vm462, %v461
  %v479 = vld [vmem:[%s0] sm:$0xff]
  %480 = vrot.lane.b32.xlu0 %v479, 104
  %v481 = vpop.permute.xlu0 %480
  %vm482 = vcmask 7168
  %s483 = scalar_lea.vmem %s1, 24
  %484 = vst.msk [vmem:[%s483] sm:$0x1] %vm482, %v481
  %s485 = scalar_lea.vmem %s1, 55
  %486 = vst.msk [vmem:[%s485] sm:$0x2] %vm482, %v481
  %s487 = scalar_lea.vmem %s1, 86
  %488 = vst.msk [vmem:[%s487] sm:$0x4] %vm482, %v481
  %s489 = scalar_lea.vmem %s1, 117
  %490 = vst.msk [vmem:[%s489] sm:$0x8] %vm482, %v481
  %s491 = scalar_lea.vmem %s1, 148
  %492 = vst.msk [vmem:[%s491] sm:$0x10] %vm482, %v481
  %s493 = scalar_lea.vmem %s1, 179
  %494 = vst.msk [vmem:[%s493] sm:$0x20] %vm482, %v481
  %s495 = scalar_lea.vmem %s1, 210
  %496 = vst.msk [vmem:[%s495] sm:$0x40] %vm482, %v481
  %s497 = scalar_lea.vmem %s1, 241
  %498 = vst.msk [vmem:[%s497] sm:$0x80] %vm482, %v481
  %v499 = vld [vmem:[%s0] sm:$0xff]
  %500 = vrot.lane.b32.xlu0 %v499, 103
  %v501 = vpop.permute.xlu0 %500
  %vm502 = vcmask 7168
  %s503 = scalar_lea.vmem %s1, 25
  %504 = vst.msk [vmem:[%s503] sm:$0x1] %vm502, %v501
  %s505 = scalar_lea.vmem %s1, 56
  %506 = vst.msk [vmem:[%s505] sm:$0x2] %vm502, %v501
  %s507 = scalar_lea.vmem %s1, 87
  %508 = vst.msk [vmem:[%s507] sm:$0x4] %vm502, %v501
  %s509 = scalar_lea.vmem %s1, 118
  %510 = vst.msk [vmem:[%s509] sm:$0x8] %vm502, %v501
  %s511 = scalar_lea.vmem %s1, 149
  %512 = vst.msk [vmem:[%s511] sm:$0x10] %vm502, %v501
  %s513 = scalar_lea.vmem %s1, 180
  %514 = vst.msk [vmem:[%s513] sm:$0x20] %vm502, %v501
  %s515 = scalar_lea.vmem %s1, 211
  %516 = vst.msk [vmem:[%s515] sm:$0x40] %vm502, %v501
  %s517 = scalar_lea.vmem %s1, 242
  %518 = vst.msk [vmem:[%s517] sm:$0x80] %vm502, %v501
  %v519 = vld [vmem:[%s0] sm:$0xff]
  %520 = vrot.lane.b32.xlu0 %v519, 102
  %v521 = vpop.permute.xlu0 %520
  %vm522 = vcmask 7168
  %s523 = scalar_lea.vmem %s1, 26
  %524 = vst.msk [vmem:[%s523] sm:$0x1] %vm522, %v521
  %s525 = scalar_lea.vmem %s1, 57
  %526 = vst.msk [vmem:[%s525] sm:$0x2] %vm522, %v521
  %s527 = scalar_lea.vmem %s1, 88
  %528 = vst.msk [vmem:[%s527] sm:$0x4] %vm522, %v521
  %s529 = scalar_lea.vmem %s1, 119
  %530 = vst.msk [vmem:[%s529] sm:$0x8] %vm522, %v521
  %s531 = scalar_lea.vmem %s1, 150
  %532 = vst.msk [vmem:[%s531] sm:$0x10] %vm522, %v521
  %s533 = scalar_lea.vmem %s1, 181
  %534 = vst.msk [vmem:[%s533] sm:$0x20] %vm522, %v521
  %s535 = scalar_lea.vmem %s1, 212
  %536 = vst.msk [vmem:[%s535] sm:$0x40] %vm522, %v521
  %s537 = scalar_lea.vmem %s1, 243
  %538 = vst.msk [vmem:[%s537] sm:$0x80] %vm522, %v521
  %v539 = vld [vmem:[%s0] sm:$0xff]
  %540 = vrot.lane.b32.xlu0 %v539, 101
  %v541 = vpop.permute.xlu0 %540
  %vm542 = vcmask 7168
  %s543 = scalar_lea.vmem %s1, 27
  %544 = vst.msk [vmem:[%s543] sm:$0x1] %vm542, %v541
  %s545 = scalar_lea.vmem %s1, 58
  %546 = vst.msk [vmem:[%s545] sm:$0x2] %vm542, %v541
  %s547 = scalar_lea.vmem %s1, 89
  %548 = vst.msk [vmem:[%s547] sm:$0x4] %vm542, %v541
  %s549 = scalar_lea.vmem %s1, 120
  %550 = vst.msk [vmem:[%s549] sm:$0x8] %vm542, %v541
  %s551 = scalar_lea.vmem %s1, 151
  %552 = vst.msk [vmem:[%s551] sm:$0x10] %vm542, %v541
  %s553 = scalar_lea.vmem %s1, 182
  %554 = vst.msk [vmem:[%s553] sm:$0x20] %vm542, %v541
  %s555 = scalar_lea.vmem %s1, 213
  %556 = vst.msk [vmem:[%s555] sm:$0x40] %vm542, %v541
  %s557 = scalar_lea.vmem %s1, 244
  %558 = vst.msk [vmem:[%s557] sm:$0x80] %vm542, %v541
  %v559 = vld [vmem:[%s0] sm:$0xff]
  %560 = vrot.lane.b32.xlu0 %v559, 100
  %v561 = vpop.permute.xlu0 %560
  %vm562 = vcmask 7168
  %s563 = scalar_lea.vmem %s1, 28
  %564 = vst.msk [vmem:[%s563] sm:$0x1] %vm562, %v561
  %s565 = scalar_lea.vmem %s1, 59
  %566 = vst.msk [vmem:[%s565] sm:$0x2] %vm562, %v561
  %s567 = scalar_lea.vmem %s1, 90
  %568 = vst.msk [vmem:[%s567] sm:$0x4] %vm562, %v561
  %s569 = scalar_lea.vmem %s1, 121
  %570 = vst.msk [vmem:[%s569] sm:$0x8] %vm562, %v561
  %s571 = scalar_lea.vmem %s1, 152
  %572 = vst.msk [vmem:[%s571] sm:$0x10] %vm562, %v561
  %s573 = scalar_lea.vmem %s1, 183
  %574 = vst.msk [vmem:[%s573] sm:$0x20] %vm562, %v561
  %s575 = scalar_lea.vmem %s1, 214
  %576 = vst.msk [vmem:[%s575] sm:$0x40] %vm562, %v561
  %s577 = scalar_lea.vmem %s1, 245
  %578 = vst.msk [vmem:[%s577] sm:$0x80] %vm562, %v561
  %v579 = vld [vmem:[%s0] sm:$0xff]
  %580 = vrot.lane.b32.xlu0 %v579, 99
  %v581 = vpop.permute.xlu0 %580
  %vm582 = vcmask 7168
  %s583 = scalar_lea.vmem %s1, 29
  %584 = vst.msk [vmem:[%s583] sm:$0x1] %vm582, %v581
  %s585 = scalar_lea.vmem %s1, 60
  %586 = vst.msk [vmem:[%s585] sm:$0x2] %vm582, %v581
  %s587 = scalar_lea.vmem %s1, 91
  %588 = vst.msk [vmem:[%s587] sm:$0x4] %vm582, %v581
  %s589 = scalar_lea.vmem %s1, 122
  %590 = vst.msk [vmem:[%s589] sm:$0x8] %vm582, %v581
  %s591 = scalar_lea.vmem %s1, 153
  %592 = vst.msk [vmem:[%s591] sm:$0x10] %vm582, %v581
  %s593 = scalar_lea.vmem %s1, 184
  %594 = vst.msk [vmem:[%s593] sm:$0x20] %vm582, %v581
  %s595 = scalar_lea.vmem %s1, 215
  %596 = vst.msk [vmem:[%s595] sm:$0x40] %vm582, %v581
  %s597 = scalar_lea.vmem %s1, 246
  %598 = vst.msk [vmem:[%s597] sm:$0x80] %vm582, %v581
  %v599 = vld [vmem:[%s0] sm:$0xff]
  %600 = vrot.lane.b32.xlu0 %v599, 98
  %v601 = vpop.permute.xlu0 %600
  %vm602 = vcmask 7168
  %s603 = scalar_lea.vmem %s1, 30
  %604 = vst.msk [vmem:[%s603] sm:$0x1] %vm602, %v601
  %s605 = scalar_lea.vmem %s1, 61
  %606 = vst.msk [vmem:[%s605] sm:$0x2] %vm602, %v601
  %s607 = scalar_lea.vmem %s1, 92
  %608 = vst.msk [vmem:[%s607] sm:$0x4] %vm602, %v601
  %s609 = scalar_lea.vmem %s1, 123
  %610 = vst.msk [vmem:[%s609] sm:$0x8] %vm602, %v601
  %s611 = scalar_lea.vmem %s1, 154
  %612 = vst.msk [vmem:[%s611] sm:$0x10] %vm602, %v601
  %s613 = scalar_lea.vmem %s1, 185
  %614 = vst.msk [vmem:[%s613] sm:$0x20] %vm602, %v601
  %s615 = scalar_lea.vmem %s1, 216
  %616 = vst.msk [vmem:[%s615] sm:$0x40] %vm602, %v601
  %s617 = scalar_lea.vmem %s1, 247
  %618 = vst.msk [vmem:[%s617] sm:$0x80] %vm602, %v601
  %v619 = vld [vmem:[%s0] sm:$0xff]
  %620 = vrot.lane.b32.xlu0 %v619, 97
  %v621 = vpop.permute.xlu0 %620
  %vm622 = vcmask 7168
  %s623 = scalar_lea.vmem %s1, 31
  %624 = vst.msk [vmem:[%s623] sm:$0x1] %vm622, %v621
  %s625 = scalar_lea.vmem %s1, 62
  %626 = vst.msk [vmem:[%s625] sm:$0x2] %vm622, %v621
  %s627 = scalar_lea.vmem %s1, 93
  %628 = vst.msk [vmem:[%s627] sm:$0x4] %vm622, %v621
  %s629 = scalar_lea.vmem %s1, 124
  %630 = vst.msk [vmem:[%s629] sm:$0x8] %vm622, %v621
  %s631 = scalar_lea.vmem %s1, 155
  %632 = vst.msk [vmem:[%s631] sm:$0x10] %vm622, %v621
  %s633 = scalar_lea.vmem %s1, 186
  %634 = vst.msk [vmem:[%s633] sm:$0x20] %vm622, %v621
  %s635 = scalar_lea.vmem %s1, 217
  %636 = vst.msk [vmem:[%s635] sm:$0x40] %vm622, %v621
  %s637 = scalar_lea.vmem %s1, 248
  %638 = vst.msk [vmem:[%s637] sm:$0x80] %vm622, %v621

// kernel: tile.68
$region0: #{tile.68}
  #allocation0 [shape = 's32[1]{0}', space=sflag, size = 0x4, scoped, tag = 'scoped memory for tile.68']
  %s0 = inlined_call_operand.vmem [shape: f32[10], index: 0, kind: input, shape index: {}]
  %s1 = inlined_call_operand.vmem [shape: f32[8,10], index: 1, kind: output, shape index: {}]
  // Predicated region
  $region2: #{tile.68} parent=0 // pred_check
    _
  $region3: #{tile.68} parent=0 // pred_check_branch
    %3 = sbr.rel (0) target = $region5
  $region4: #{tile.68} parent=0 // pred_region
    _
  $region5: #{tile.68} parent=0 // pred_fallthru
    _
  %v4 = vld [vmem:[%s0] ss:$0 sm:$0xff]
  %5 = vst [vmem:[%s1] sm:$0xff] %v4

// kernel: tile.3
$region0: #{tile.3}
  %s0 = inlined_call_operand.vmem [shape: f32[8,10], index: 0, kind: input, shape index: {}]
  %s1 = inlined_call_operand.vmem [shape: f32[80,1], index: 1, kind: output, shape index: {}]
  %v2 = vld [vmem:[%s0] sm:$0xff]
  %vm3 = vcmask 7168
  %4 = vst.msk [vmem:[%s1] ss:$10 sm:$0xff] %vm3, %v2
  %v5 = vld.sshfl [vmem:[%s0] sm:$0xff pattern:$0x36251470]
  %6 = vrot.lane.b32.xlu0 %v5, 127
  %v7 = vpop.permute.xlu0 %6
  %vm8 = vcmask 7168
  %s9 = scalar_lea.vmem %s1, 1
  %10 = vst.msk [vmem:[%s9] ss:$70 sm:$0x3] %vm8, %v7
  %s11 = scalar_lea.vmem %s1, 101
  %12 = vst.msk [vmem:[%s11] ss:$-30 sm:$0xc] %vm8, %v7
  %s13 = scalar_lea.vmem %s1, 171
  %14 = vst.msk [vmem:[%s13] ss:$-30 sm:$0x30] %vm8, %v7
  %s15 = scalar_lea.vmem %s1, 241
  %16 = vst.msk [vmem:[%s15] ss:$-30 sm:$0xc0] %vm8, %v7
  %v17 = vld.sshfl [vmem:[%s0] sm:$0xff pattern:$0x62514703]
  %18 = vrot.lane.b32.xlu0 %v17, 126
  %v19 = vpop.permute.xlu0 %18
  %vm20 = vcmask 7168
  %s21 = scalar_lea.vmem %s1, 32
  %22 = vst.msk [vmem:[%s21] ss:$-30 sm:$0x3] %vm20, %v19
  %s23 = scalar_lea.vmem %s1, 132
  %24 = vst.msk [vmem:[%s23] ss:$-30 sm:$0x1c] %vm20, %v19
  %s25 = scalar_lea.vmem %s1, 202
  %26 = vst.msk [vmem:[%s25] ss:$-30 sm:$0x60] %vm20, %v19
  %s27 = scalar_lea.vmem %s1, 55
  %28 = vst.msk [vmem:[%s27] sm:$0x80] %vm20, %v19
  %v29 = vld.sshfl [vmem:[%s0] sm:$0xff pattern:$0x62514703]
  %30 = vrot.lane.b32.xlu0 %v29, 125
  %v31 = vpop.permute.xlu0 %30
  %vm32 = vcmask 7168
  %s33 = scalar_lea.vmem %s1, 33
  %34 = vst.msk [vmem:[%s33] ss:$-30 sm:$0x3] %vm32, %v31
  %s35 = scalar_lea.vmem %s1, 133
  %36 = vst.msk [vmem:[%s35] ss:$-30 sm:$0x1c] %vm32, %v31
  %s37 = scalar_lea.vmem %s1, 203
  %38 = vst.msk [vmem:[%s37] ss:$-30 sm:$0x60] %vm32, %v31
  %s39 = scalar_lea.vmem %s1, 56
  %40 = vst.msk [vmem:[%s39] sm:$0x80] %vm32, %v31
  %v41 = vld.sshfl [vmem:[%s0] sm:$0xff pattern:$0x25147036]
  %42 = vrot.lane.b32.xlu0 %v41, 124
  %v43 = vpop.permute.xlu0 %42
  %vm44 = vcmask 7168
  %s45 = scalar_lea.vmem %s1, 64
  %46 = vst.msk [vmem:[%s45] ss:$-30 sm:$0x7] %vm44, %v43
  %s47 = scalar_lea.vmem %s1, 164
  %48 = vst.msk [vmem:[%s47] ss:$-30 sm:$0x38] %vm44, %v43
  %s49 = scalar_lea.vmem %s1, 234
  %50 = vst.msk [vmem:[%s49] ss:$-30 sm:$0xc0] %vm44, %v43
  %v51 = vld.sshfl [vmem:[%s0] sm:$0xff pattern:$0x25147036]
  %52 = vrot.lane.b32.xlu0 %v51, 123
  %v53 = vpop.permute.xlu0 %52
  %vm54 = vcmask 7168
  %s55 = scalar_lea.vmem %s1, 65
  %56 = vst.msk [vmem:[%s55] ss:$-30 sm:$0x7] %vm54, %v53
  %s57 = scalar_lea.vmem %s1, 165
  %58 = vst.msk [vmem:[%s57] ss:$-30 sm:$0x38] %vm54, %v53
  %s59 = scalar_lea.vmem %s1, 235
  %60 = vst.msk [vmem:[%s59] ss:$-30 sm:$0xc0] %vm54, %v53
  %v61 = vld.sshfl [vmem:[%s0] sm:$0xff pattern:$0x25147036]
  %62 = vrot.lane.b32.xlu0 %v61, 122
  %v63 = vpop.permute.xlu0 %62
  %vm64 = vcmask 7168
  %s65 = scalar_lea.vmem %s1, 66
  %66 = vst.msk [vmem:[%s65] ss:$-30 sm:$0x7] %vm64, %v63
  %s67 = scalar_lea.vmem %s1, 166
  %68 = vst.msk [vmem:[%s67] ss:$-30 sm:$0x38] %vm64, %v63
  %s69 = scalar_lea.vmem %s1, 236
  %70 = vst.msk [vmem:[%s69] ss:$-30 sm:$0xc0] %vm64, %v63
  %v71 = vld.sshfl [vmem:[%s0] sm:$0xff pattern:$0x25147036]
  %72 = vrot.lane.b32.xlu0 %v71, 121
  %v73 = vpop.permute.xlu0 %72
  %vm74 = vcmask 7168
  %s75 = scalar_lea.vmem %s1, 67
  %76 = vst.msk [vmem:[%s75] ss:$-30 sm:$0x7] %vm74, %v73
  %s77 = scalar_lea.vmem %s1, 167
  %78 = vst.msk [vmem:[%s77] ss:$-30 sm:$0x38] %vm74, %v73
  %s79 = scalar_lea.vmem %s1, 237
  %80 = vst.msk [vmem:[%s79] ss:$-30 sm:$0xc0] %vm74, %v73
  %v81 = vld.sshfl [vmem:[%s0] sm:$0xff pattern:$0x25147036]
  %82 = vrot.lane.b32.xlu0 %v81, 120
  %v83 = vpop.permute.xlu0 %82
  %vm84 = vcmask 7168
  %s85 = scalar_lea.vmem %s1, 68
  %86 = vst.msk [vmem:[%s85] ss:$-30 sm:$0x7] %vm84, %v83
  %s87 = scalar_lea.vmem %s1, 168
  %88 = vst.msk [vmem:[%s87] ss:$-30 sm:$0x38] %vm84, %v83
  %s89 = scalar_lea.vmem %s1, 238
  %90 = vst.msk [vmem:[%s89] ss:$-30 sm:$0xc0] %vm84, %v83
  %v91 = vld.sshfl [vmem:[%s0] sm:$0xff pattern:$0x25147036]
  %92 = vrot.lane.b32.xlu0 %v91, 119
  %v93 = vpop.permute.xlu0 %92
  %vm94 = vcmask 7168
  %s95 = scalar_lea.vmem %s1, 69
  %96 = vst.msk [vmem:[%s95] ss:$-30 sm:$0x7] %vm94, %v93
  %s97 = scalar_lea.vmem %s1, 169
  %98 = vst.msk [vmem:[%s97] ss:$-30 sm:$0x38] %vm94, %v93
  %s99 = scalar_lea.vmem %s1, 239
  %100 = vst.msk [vmem:[%s99] ss:$-30 sm:$0xc0] %vm94, %v93

// kernel: tile.73
$region0: #{tile.73}
  #allocation0 [shape = 's32[1]{0}', space=sflag, size = 0x4, scoped, tag = 'scoped memory for tile.73']
  %s0 = inlined_call_operand.vmem [shape: f32[5], index: 0, kind: input, shape index: {}]
  %s1 = inlined_call_operand.vmem [shape: f32[8,5], index: 1, kind: output, shape index: {}]
  // Predicated region
  $region2: #{tile.73} parent=0 // pred_check
    _
  $region3: #{tile.73} parent=0 // pred_check_branch
    %3 = sbr.rel (0) target = $region5
  $region4: #{tile.73} parent=0 // pred_region
    _
  $region5: #{tile.73} parent=0 // pred_fallthru
    _
  %v4 = vld [vmem:[%s0] ss:$0 sm:$0xff]
  %5 = vst [vmem:[%s1] sm:$0xff] %v4

// kernel: tile.4
$region0: #{tile.4}
  %s0 = inlined_call_operand.vmem [shape: f32[8,5], index: 0, kind: input, shape index: {}]
  %s1 = inlined_call_operand.vmem [shape: f32[40,1], index: 1, kind: output, shape index: {}]
  %v2 = vld [vmem:[%s0] sm:$0xff]
  %vm3 = vcmask 7168
  %4 = vst.msk [vmem:[%s1] ss:$5 sm:$0xff] %vm3, %v2
  %v5 = vld.sshfl [vmem:[%s0] sm:$0xff pattern:$0x65432170]
  %6 = vrot.lane.b32.xlu0 %v5, 127
  %v7 = vpop.permute.xlu0 %6
  %vm8 = vcmask 7168
  %s9 = scalar_lea.vmem %s1, 1
  %10 = vst.msk [vmem:[%s9] ss:$35 sm:$0x3] %vm8, %v7
  %s11 = scalar_lea.vmem %s1, 4294967292
  %12 = vst.msk [vmem:[%s11] ss:$5 sm:$0xfc] %vm8, %v7
  %v13 = vld.sshfl [vmem:[%s0] sm:$0xff pattern:$0x54321706]
  %14 = vrot.lane.b32.xlu0 %v13, 126
  %v15 = vpop.permute.xlu0 %14
  %vm16 = vcmask 7168
  %s17 = scalar_lea.vmem %s1, 32
  %18 = vst.msk [vmem:[%s17] ss:$-30 sm:$0x3] %vm16, %v15
  %s19 = scalar_lea.vmem %s1, 97
  %20 = vst.msk [vmem:[%s19] ss:$-30 sm:$0xc] %vm16, %v15
  %s21 = scalar_lea.vmem %s1, 4294967288
  %22 = vst.msk [vmem:[%s21] ss:$5 sm:$0xf0] %vm16, %v15
  %v23 = vld.sshfl [vmem:[%s0] sm:$0xff pattern:$0x54321706]
  %24 = vrot.lane.b32.xlu0 %v23, 125
  %v25 = vpop.permute.xlu0 %24
  %vm26 = vcmask 7168
  %s27 = scalar_lea.vmem %s1, 33
  %28 = vst.msk [vmem:[%s27] ss:$-30 sm:$0x3] %vm26, %v25
  %s29 = scalar_lea.vmem %s1, 98
  %30 = vst.msk [vmem:[%s29] ss:$-30 sm:$0xc] %vm26, %v25
  %s31 = scalar_lea.vmem %s1, 4294967289
  %32 = vst.msk [vmem:[%s31] ss:$5 sm:$0xf0] %vm26, %v25
  %v33 = vld.sshfl [vmem:[%s0] sm:$0xff pattern:$0x54321706]
  %34 = vrot.lane.b32.xlu0 %v33, 124
  %v35 = vpop.permute.xlu0 %34
  %vm36 = vcmask 7168
  %s37 = scalar_lea.vmem %s1, 34
  %38 = vst.msk [vmem:[%s37] ss:$-30 sm:$0x3] %vm36, %v35
  %s39 = scalar_lea.vmem %s1, 99
  %40 = vst.msk [vmem:[%s39] ss:$-30 sm:$0xc] %vm36, %v35
  %s41 = scalar_lea.vmem %s1, 4294967290
  %42 = vst.msk [vmem:[%s41] ss:$5 sm:$0xf0] %vm36, %v35

// kernel: tile.63
$region0: #{tile.63}
  #allocation0 [shape = 's32[1]{0}', space=sflag, size = 0x4, scoped, tag = 'scoped memory for tile.63']
  %s0 = inlined_call_operand.vmem [shape: f32[4], index: 0, kind: input, shape index: {}]
  %s1 = inlined_call_operand.vmem [shape: f32[8,4], index: 1, kind: output, shape index: {}]
  // Predicated region
  $region2: #{tile.63} parent=0 // pred_check
    _
  $region3: #{tile.63} parent=0 // pred_check_branch
    %3 = sbr.rel (0) target = $region5
  $region4: #{tile.63} parent=0 // pred_region
    _
  $region5: #{tile.63} parent=0 // pred_fallthru
    _
  %v4 = vld [vmem:[%s0] ss:$0 sm:$0xff]
  %5 = vst [vmem:[%s1] sm:$0xff] %v4

// kernel: tile.2
$region0: #{tile.2}
  %s0 = inlined_call_operand.vmem [shape: f32[8,4], index: 0, kind: input, shape index: {}]
  %s1 = inlined_call_operand.vmem [shape: f32[32,1], index: 1, kind: output, shape index: {}]
  %v2 = vld [vmem:[%s0] sm:$0xff]
  %vm3 = vcmask 7168
  %4 = vst.msk [vmem:[%s1] ss:$4 sm:$0xff] %vm3, %v2
  %v5 = vld [vmem:[%s0] sm:$0xff]
  %6 = vrot.lane.b32.xlu0 %v5, 127
  %v7 = vpop.permute.xlu0 %6
  %vm8 = vcmask 7168
  %s9 = scalar_lea.vmem %s1, 1
  %10 = vst.msk [vmem:[%s9] ss:$4 sm:$0xff] %vm8, %v7
  %v11 = vld [vmem:[%s0] sm:$0xff]
  %12 = vrot.lane.b32.xlu0 %v11, 126
  %v13 = vpop.permute.xlu0 %12
  %vm14 = vcmask 7168
  %s15 = scalar_lea.vmem %s1, 2
  %16 = vst.msk [vmem:[%s15] ss:$4 sm:$0xff] %vm14, %v13
  %v17 = vld [vmem:[%s0] sm:$0xff]
  %18 = vrot.lane.b32.xlu0 %v17, 125
  %v19 = vpop.permute.xlu0 %18
  %vm20 = vcmask 7168
  %s21 = scalar_lea.vmem %s1, 3
  %22 = vst.msk [vmem:[%s21] ss:$4 sm:$0xff] %vm20, %v19

// kernel: tile.78
$region0: #{tile.78}
  #allocation0 [shape = 's32[1]{0}', space=sflag, size = 0x4, scoped, tag = 'scoped memory for tile.78']
  %s0 = inlined_call_operand.vmem [shape: f32[3], index: 0, kind: input, shape index: {}]
  %s1 = inlined_call_operand.vmem [shape: f32[8,3], index: 1, kind: output, shape index: {}]
  // Predicated region
  $region2: #{tile.78} parent=0 // pred_check
    _
  $region3: #{tile.78} parent=0 // pred_check_branch
    %3 = sbr.rel (0) target = $region5
  $region4: #{tile.78} parent=0 // pred_region
    _
  $region5: #{tile.78} parent=0 // pred_fallthru
    _
  %v4 = vld [vmem:[%s0] ss:$0 sm:$0xff]
  %5 = vst [vmem:[%s1] sm:$0xff] %v4

// kernel: tile.5
$region0: #{tile.5}
  %s0 = inlined_call_operand.vmem [shape: f32[8,3], index: 0, kind: input, shape index: {}]
  %s1 = inlined_call_operand.vmem [shape: f32[24,1], index: 1, kind: output, shape index: {}]
  %v2 = vld [vmem:[%s0] sm:$0xff]
  %vm3 = vcmask 7168
  %4 = vst.msk [vmem:[%s1] ss:$3 sm:$0xff] %vm3, %v2
  %v5 = vld [vmem:[%s0] sm:$0xff]
  %6 = vrot.lane.b32.xlu0 %v5, 127
  %v7 = vpop.permute.xlu0 %6
  %vm8 = vcmask 7168
  %s9 = scalar_lea.vmem %s1, 1
  %10 = vst.msk [vmem:[%s9] ss:$3 sm:$0xff] %vm8, %v7
  %v11 = vld [vmem:[%s0] sm:$0xff]
  %12 = vrot.lane.b32.xlu0 %v11, 126
  %v13 = vpop.permute.xlu0 %12
  %vm14 = vcmask 7168
  %s15 = scalar_lea.vmem %s1, 2
  %16 = vst.msk [vmem:[%s15] ss:$3 sm:$0xff] %vm14, %v13

// kernel: decoder_forward.1
$region0: #{decoder_forward.1}
  #allocation0 [shape = 'u32[]', space=smem, size = 0x4, offset = 0x4, fixed_abs, tag = 'smem constant byte address 0x4 - core index']
  #allocation1 [shape = 'u32[144,128]{1,0:T(1,128)}', space=vmem, size = 0x12000, scoped, tag = 'internal scratch']
  %s0 = inlined_call_operand.vmem [shape: f32[42,128], index: 0, kind: input, shape index: {}]
  %s1 = inlined_call_operand.vmem [shape: f32[512,42], index: 1, kind: input, shape index: {}]
  %s2 = inlined_call_operand.vmem [shape: f32[512,1], index: 2, kind: input, shape index: {}]
  %s3 = inlined_call_operand.vmem [shape: f32[256,512], index: 3, kind: input, shape index: {}]
  %s4 = inlined_call_operand.vmem [shape: f32[256,1], index: 4, kind: input, shape index: {}]
  %s5 = inlined_call_operand.vmem [shape: f32[32,256], index: 5, kind: input, shape index: {}]
  %s6 = inlined_call_operand.vmem [shape: f32[32,1], index: 6, kind: input, shape index: {}]
  %s7 = inlined_call_operand.vmem [shape: f32[80,42], index: 7, kind: input, shape index: {}]
  %s8 = inlined_call_operand.vmem [shape: f32[80,32], index: 8, kind: input, shape index: {}]
  %s9 = inlined_call_operand.vmem [shape: f32[80,1], index: 9, kind: input, shape index: {}]
  %s10 = inlined_call_operand.vmem [shape: f32[40,80], index: 10, kind: input, shape index: {}]
  %s11 = inlined_call_operand.vmem [shape: f32[40,1], index: 11, kind: input, shape index: {}]
  %s12 = inlined_call_operand.vmem [shape: f32[24,40], index: 12, kind: input, shape index: {}]
  %s13 = inlined_call_operand.vmem [shape: f32[24,1], index: 13, kind: input, shape index: {}]
  %s14 = inlined_call_operand.vmem [shape: f32[24,128], index: 14, kind: output, shape index: {}]
  %s15 = sld [smem:[#allocation0]]
  $region66: #{decoder_forward.1} parent=0
    _
  %s17 = ssub.s32 1, %s15
  %s18 = scalar_select 0, %s17, %s15
  // Predicated region
  $region2: #{decoder_forward.1} parent=0 // pred_check
    _
  $region3: #{decoder_forward.1} parent=0 // pred_check_branch
    %20 = sbr.rel (0) target = $region5
  $region4: #{decoder_forward.1} parent=0 // pred_region
    _
  $region5: #{decoder_forward.1} parent=0 // pred_fallthru
    _
  // Predicated region
  $region6: #{decoder_forward.1} parent=0 // pred_check
    _
  $region7: #{decoder_forward.1} parent=0 // pred_check_branch
    %22 = sbr.rel (0) target = $region9
  $region8: #{decoder_forward.1} parent=0 // pred_region
    _
  $region9: #{decoder_forward.1} parent=0 // pred_fallthru
    _
  // Predicated region
  $region10: #{decoder_forward.1} parent=0 // pred_check
    _
  $region11: #{decoder_forward.1} parent=0 // pred_check_branch
    %24 = sbr.rel (0) target = $region13
  $region12: #{decoder_forward.1} parent=0 // pred_region
    _
  $region13: #{decoder_forward.1} parent=0 // pred_fallthru
    _
  // Predicated region
  $region14: #{decoder_forward.1} parent=0 // pred_check
    _
  $region15: #{decoder_forward.1} parent=0 // pred_check_branch
    %26 = sbr.rel (0) target = $region17
  $region16: #{decoder_forward.1} parent=0 // pred_region
    _
  $region17: #{decoder_forward.1} parent=0 // pred_fallthru
    _
  // Predicated region
  $region18: #{decoder_forward.1} parent=0 // pred_check
    _
  $region19: #{decoder_forward.1} parent=0 // pred_check_branch
    %28 = sbr.rel (0) target = $region21
  $region20: #{decoder_forward.1} parent=0 // pred_region
    _
  $region21: #{decoder_forward.1} parent=0 // pred_fallthru
    _
  // Predicated region
  $region22: #{decoder_forward.1} parent=0 // pred_check
    _
  $region23: #{decoder_forward.1} parent=0 // pred_check_branch
    %30 = sbr.rel (0) target = $region25
  $region24: #{decoder_forward.1} parent=0 // pred_region
    _
  $region25: #{decoder_forward.1} parent=0 // pred_fallthru
    _
  // Predicated region
  $region26: #{decoder_forward.1} parent=0 // pred_check
    _
  $region27: #{decoder_forward.1} parent=0 // pred_check_branch
    %32 = sbr.rel (0) target = $region29
  $region28: #{decoder_forward.1} parent=0 // pred_region
    _
  $region29: #{decoder_forward.1} parent=0 // pred_fallthru
    _
  // Predicated region
  $region30: #{decoder_forward.1} parent=0 // pred_check
    _
  $region31: #{decoder_forward.1} parent=0 // pred_check_branch
    %34 = sbr.rel (0) target = $region33
  $region32: #{decoder_forward.1} parent=0 // pred_region
    _
  $region33: #{decoder_forward.1} parent=0 // pred_fallthru
    _
  // Predicated region
  $region34: #{decoder_forward.1} parent=0 // pred_check
    _
  $region35: #{decoder_forward.1} parent=0 // pred_check_branch
    %36 = sbr.rel (0) target = $region37
  $region36: #{decoder_forward.1} parent=0 // pred_region
    _
  $region37: #{decoder_forward.1} parent=0 // pred_fallthru
    _
  // Predicated region
  $region38: #{decoder_forward.1} parent=0 // pred_check
    _
  $region39: #{decoder_forward.1} parent=0 // pred_check_branch
    %38 = sbr.rel (0) target = $region41
  $region40: #{decoder_forward.1} parent=0 // pred_region
    _
  $region41: #{decoder_forward.1} parent=0 // pred_fallthru
    _
  // Predicated region
  $region42: #{decoder_forward.1} parent=0 // pred_check
    _
  $region43: #{decoder_forward.1} parent=0 // pred_check_branch
    %40 = sbr.rel (0) target = $region45
  $region44: #{decoder_forward.1} parent=0 // pred_region
    _
  $region45: #{decoder_forward.1} parent=0 // pred_fallthru
    _
  // Predicated region
  $region46: #{decoder_forward.1} parent=0 // pred_check
    _
  $region47: #{decoder_forward.1} parent=0 // pred_check_branch
    %42 = sbr.rel (0) target = $region49
  $region48: #{decoder_forward.1} parent=0 // pred_region
    _
  $region49: #{decoder_forward.1} parent=0 // pred_fallthru
    _
  // Predicated region
  $region50: #{decoder_forward.1} parent=0 // pred_check
    _
  $region51: #{decoder_forward.1} parent=0 // pred_check_branch
    %44 = sbr.rel (0) target = $region53
  $region52: #{decoder_forward.1} parent=0 // pred_region
    _
  $region53: #{decoder_forward.1} parent=0 // pred_fallthru
    _
  // Predicated region
  $region54: #{decoder_forward.1} parent=0 // pred_check
    _
  $region55: #{decoder_forward.1} parent=0 // pred_check_branch
    %46 = sbr.rel (0) target = $region57
  $region56: #{decoder_forward.1} parent=0 // pred_region
    _
  $region57: #{decoder_forward.1} parent=0 // pred_fallthru
    _
  %v47 = vld [vmem:[%s0] sm:$0xff]
  %v48 = vld [vmem:[%s0 + $0x8] sm:$0xff]
  %v49 = vld [vmem:[%s0 + $0x10] sm:$0xff]
  %v50 = vld [vmem:[%s0 + $0x18] sm:$0xff]
  %v51 = vld [vmem:[%s0 + $0x20] sm:$0xff]
  %v52 = vld [vmem:[%s0 + $0x28] sm:$0x3]
  %v53 = vld [vmem:[%s1] sm:$0xff]
  %v54 = vld [vmem:[%s1 + $0x8] sm:$0xff]
  %v55 = vld [vmem:[%s1 + $0x10] sm:$0xff]
  %v56 = vld [vmem:[%s1 + $0x18] sm:$0xff]
  %v57 = vld [vmem:[%s1 + $0x20] sm:$0xff]
  %v58 = vld [vmem:[%s1 + $0x28] sm:$0xff]
  %v59 = vld [vmem:[%s1 + $0x30] sm:$0xff]
  %v60 = vld [vmem:[%s1 + $0x38] sm:$0xff]
  %v61 = vld [vmem:[%s1 + $0x40] sm:$0xff]
  %v62 = vld [vmem:[%s1 + $0x48] sm:$0xff]
  %v63 = vld [vmem:[%s1 + $0x50] sm:$0xff]
  %v64 = vld [vmem:[%s1 + $0x58] sm:$0xff]
  %v65 = vld [vmem:[%s1 + $0x60] sm:$0xff]
  %v66 = vld [vmem:[%s1 + $0x68] sm:$0xff]
  %v67 = vld [vmem:[%s1 + $0x70] sm:$0xff]
  %v68 = vld [vmem:[%s1 + $0x78] sm:$0xff]
  %v69 = vld [vmem:[%s1 + $0x80] sm:$0xff]
  %v70 = vld [vmem:[%s1 + $0x88] sm:$0xff]
  %v71 = vld [vmem:[%s1 + $0x90] sm:$0xff]
  %v72 = vld [vmem:[%s1 + $0x98] sm:$0xff]
  %v73 = vld [vmem:[%s1 + $0xa0] sm:$0xff]
  %v74 = vld [vmem:[%s1 + $0xa8] sm:$0xff]
  %v75 = vld [vmem:[%s1 + $0xb0] sm:$0xff]
  %v76 = vld [vmem:[%s1 + $0xb8] sm:$0xff]
  %v77 = vld [vmem:[%s1 + $0xc0] sm:$0xff]
  %v78 = vld [vmem:[%s1 + $0xc8] sm:$0xff]
  %v79 = vld [vmem:[%s1 + $0xd0] sm:$0xff]
  %v80 = vld [vmem:[%s1 + $0xd8] sm:$0xff]
  %v81 = vld [vmem:[%s1 + $0xe0] sm:$0xff]
  %v82 = vld [vmem:[%s1 + $0xe8] sm:$0xff]
  %v83 = vld [vmem:[%s1 + $0xf0] sm:$0xff]
  %v84 = vld [vmem:[%s1 + $0xf8] sm:$0xff]
  %v85 = vld [vmem:[%s1 + $0x100] sm:$0xff]
  %v86 = vld [vmem:[%s1 + $0x108] sm:$0xff]
  %v87 = vld [vmem:[%s1 + $0x110] sm:$0xff]
  %v88 = vld [vmem:[%s1 + $0x118] sm:$0xff]
  %v89 = vld [vmem:[%s1 + $0x120] sm:$0xff]
  %v90 = vld [vmem:[%s1 + $0x128] sm:$0xff]
  %v91 = vld [vmem:[%s1 + $0x130] sm:$0xff]
  %v92 = vld [vmem:[%s1 + $0x138] sm:$0xff]
  %v93 = vld [vmem:[%s1 + $0x140] sm:$0xff]
  %v94 = vld [vmem:[%s1 + $0x148] sm:$0xff]
  %v95 = vld [vmem:[%s1 + $0x150] sm:$0xff]
  %v96 = vld [vmem:[%s1 + $0x158] sm:$0xff]
  %v97 = vld [vmem:[%s1 + $0x160] sm:$0xff]
  %v98 = vld [vmem:[%s1 + $0x168] sm:$0xff]
  %v99 = vld [vmem:[%s1 + $0x170] sm:$0xff]
  %v100 = vld [vmem:[%s1 + $0x178] sm:$0xff]
  %v101 = vld [vmem:[%s1 + $0x180] sm:$0xff]
  %v102 = vld [vmem:[%s1 + $0x188] sm:$0xff]
  %v103 = vld [vmem:[%s1 + $0x190] sm:$0xff]
  %v104 = vld [vmem:[%s1 + $0x198] sm:$0xff]
  %v105 = vld [vmem:[%s1 + $0x1a0] sm:$0xff]
  %v106 = vld [vmem:[%s1 + $0x1a8] sm:$0xff]
  %v107 = vld [vmem:[%s1 + $0x1b0] sm:$0xff]
  %v108 = vld [vmem:[%s1 + $0x1b8] sm:$0xff]
  %v109 = vld [vmem:[%s1 + $0x1c0] sm:$0xff]
  %v110 = vld [vmem:[%s1 + $0x1c8] sm:$0xff]
  %v111 = vld [vmem:[%s1 + $0x1d0] sm:$0xff]
  %v112 = vld [vmem:[%s1 + $0x1d8] sm:$0xff]
  %v113 = vld [vmem:[%s1 + $0x1e0] sm:$0xff]
  %v114 = vld [vmem:[%s1 + $0x1e8] sm:$0xff]
  %v115 = vld [vmem:[%s1 + $0x1f0] sm:$0xff]
  %v116 = vld [vmem:[%s1 + $0x1f8] sm:$0xff]
  %v117 = vld [vmem:[%s2] sm:$0xff]
  %v118 = vld [vmem:[%s2 + $0x8] sm:$0xff]
  %v119 = vld [vmem:[%s2 + $0x10] sm:$0xff]
  %v120 = vld [vmem:[%s2 + $0x18] sm:$0xff]
  %v121 = vld [vmem:[%s2 + $0x20] sm:$0xff]
  %v122 = vld [vmem:[%s2 + $0x28] sm:$0xff]
  %v123 = vld [vmem:[%s2 + $0x30] sm:$0xff]
  %v124 = vld [vmem:[%s2 + $0x38] sm:$0xff]
  %v125 = vld [vmem:[%s2 + $0x40] sm:$0xff]
  %v126 = vld [vmem:[%s2 + $0x48] sm:$0xff]
  %v127 = vld [vmem:[%s2 + $0x50] sm:$0xff]
  %v128 = vld [vmem:[%s2 + $0x58] sm:$0xff]
  %v129 = vld [vmem:[%s2 + $0x60] sm:$0xff]
  %v130 = vld [vmem:[%s2 + $0x68] sm:$0xff]
  %v131 = vld [vmem:[%s2 + $0x70] sm:$0xff]
  %v132 = vld [vmem:[%s2 + $0x78] sm:$0xff]
  %v133 = vld [vmem:[%s2 + $0x80] sm:$0xff]
  %v134 = vld [vmem:[%s2 + $0x88] sm:$0xff]
  %v135 = vld [vmem:[%s2 + $0x90] sm:$0xff]
  %v136 = vld [vmem:[%s2 + $0x98] sm:$0xff]
  %v137 = vld [vmem:[%s2 + $0xa0] sm:$0xff]
  %v138 = vld [vmem:[%s2 + $0xa8] sm:$0xff]
  %v139 = vld [vmem:[%s2 + $0xb0] sm:$0xff]
  %v140 = vld [vmem:[%s2 + $0xb8] sm:$0xff]
  %v141 = vld [vmem:[%s2 + $0xc0] sm:$0xff]
  %v142 = vld [vmem:[%s2 + $0xc8] sm:$0xff]
  %v143 = vld [vmem:[%s2 + $0xd0] sm:$0xff]
  %v144 = vld [vmem:[%s2 + $0xd8] sm:$0xff]
  %v145 = vld [vmem:[%s2 + $0xe0] sm:$0xff]
  %v146 = vld [vmem:[%s2 + $0xe8] sm:$0xff]
  %v147 = vld [vmem:[%s2 + $0xf0] sm:$0xff]
  %v148 = vld [vmem:[%s2 + $0xf8] sm:$0xff]
  %v149 = vld [vmem:[%s2 + $0x100] sm:$0xff]
  %v150 = vld [vmem:[%s2 + $0x108] sm:$0xff]
  %v151 = vld [vmem:[%s2 + $0x110] sm:$0xff]
  %v152 = vld [vmem:[%s2 + $0x118] sm:$0xff]
  %v153 = vld [vmem:[%s2 + $0x120] sm:$0xff]
  %v154 = vld [vmem:[%s2 + $0x128] sm:$0xff]
  %v155 = vld [vmem:[%s2 + $0x130] sm:$0xff]
  %v156 = vld [vmem:[%s2 + $0x138] sm:$0xff]
  %v157 = vld [vmem:[%s2 + $0x140] sm:$0xff]
  %v158 = vld [vmem:[%s2 + $0x148] sm:$0xff]
  %v159 = vld [vmem:[%s2 + $0x150] sm:$0xff]
  %v160 = vld [vmem:[%s2 + $0x158] sm:$0xff]
  %v161 = vld [vmem:[%s2 + $0x160] sm:$0xff]
  %v162 = vld [vmem:[%s2 + $0x168] sm:$0xff]
  %v163 = vld [vmem:[%s2 + $0x170] sm:$0xff]
  %v164 = vld [vmem:[%s2 + $0x178] sm:$0xff]
  %v165 = vld [vmem:[%s2 + $0x180] sm:$0xff]
  %v166 = vld [vmem:[%s2 + $0x188] sm:$0xff]
  %v167 = vld [vmem:[%s2 + $0x190] sm:$0xff]
  %v168 = vld [vmem:[%s2 + $0x198] sm:$0xff]
  %v169 = vld [vmem:[%s2 + $0x1a0] sm:$0xff]
  %v170 = vld [vmem:[%s2 + $0x1a8] sm:$0xff]
  %v171 = vld [vmem:[%s2 + $0x1b0] sm:$0xff]
  %v172 = vld [vmem:[%s2 + $0x1b8] sm:$0xff]
  %v173 = vld [vmem:[%s2 + $0x1c0] sm:$0xff]
  %v174 = vld [vmem:[%s2 + $0x1c8] sm:$0xff]
  %v175 = vld [vmem:[%s2 + $0x1d0] sm:$0xff]
  %v176 = vld [vmem:[%s2 + $0x1d8] sm:$0xff]
  %v177 = vld [vmem:[%s2 + $0x1e0] sm:$0xff]
  %v178 = vld [vmem:[%s2 + $0x1e8] sm:$0xff]
  %v179 = vld [vmem:[%s2 + $0x1f0] sm:$0xff]
  %v180 = vld [vmem:[%s2 + $0x1f8] sm:$0xff]
  %182 = vset.pattern.permute.xlu0 0
  %183 = vperm.xlu0 %182, %v117
  %v184 = vpop.permute.xlu0 %183
  %187 = vset.pattern.permute.xlu0 0
  %188 = vperm.xlu0 %187, %v118
  %v189 = vpop.permute.xlu0 %188
  %192 = vset.pattern.permute.xlu0 0
  %193 = vperm.xlu0 %192, %v119
  %v194 = vpop.permute.xlu0 %193
  %197 = vset.pattern.permute.xlu0 0
  %198 = vperm.xlu0 %197, %v120
  %v199 = vpop.permute.xlu0 %198
  %202 = vset.pattern.permute.xlu0 0
  %203 = vperm.xlu0 %202, %v121
  %v204 = vpop.permute.xlu0 %203
  %207 = vset.pattern.permute.xlu0 0
  %208 = vperm.xlu0 %207, %v122
  %v209 = vpop.permute.xlu0 %208
  %212 = vset.pattern.permute.xlu0 0
  %213 = vperm.xlu0 %212, %v123
  %v214 = vpop.permute.xlu0 %213
  %217 = vset.pattern.permute.xlu0 0
  %218 = vperm.xlu0 %217, %v124
  %v219 = vpop.permute.xlu0 %218
  %222 = vset.pattern.permute.xlu0 0
  %223 = vperm.xlu0 %222, %v125
  %v224 = vpop.permute.xlu0 %223
  %227 = vset.pattern.permute.xlu0 0
  %228 = vperm.xlu0 %227, %v126
  %v229 = vpop.permute.xlu0 %228
  %232 = vset.pattern.permute.xlu0 0
  %233 = vperm.xlu0 %232, %v127
  %v234 = vpop.permute.xlu0 %233
  %237 = vset.pattern.permute.xlu0 0
  %238 = vperm.xlu0 %237, %v128
  %v239 = vpop.permute.xlu0 %238
  %242 = vset.pattern.permute.xlu0 0
  %243 = vperm.xlu0 %242, %v129
  %v244 = vpop.permute.xlu0 %243
  %247 = vset.pattern.permute.xlu0 0
  %248 = vperm.xlu0 %247, %v130
  %v249 = vpop.permute.xlu0 %248
  %252 = vset.pattern.permute.xlu0 0
  %253 = vperm.xlu0 %252, %v131
  %v254 = vpop.permute.xlu0 %253
  %257 = vset.pattern.permute.xlu0 0
  %258 = vperm.xlu0 %257, %v132
  %v259 = vpop.permute.xlu0 %258
  %262 = vset.pattern.permute.xlu0 0
  %263 = vperm.xlu0 %262, %v133
  %v264 = vpop.permute.xlu0 %263
  %267 = vset.pattern.permute.xlu0 0
  %268 = vperm.xlu0 %267, %v134
  %v269 = vpop.permute.xlu0 %268
  %272 = vset.pattern.permute.xlu0 0
  %273 = vperm.xlu0 %272, %v135
  %v274 = vpop.permute.xlu0 %273
  %277 = vset.pattern.permute.xlu0 0
  %278 = vperm.xlu0 %277, %v136
  %v279 = vpop.permute.xlu0 %278
  %282 = vset.pattern.permute.xlu0 0
  %283 = vperm.xlu0 %282, %v137
  %v284 = vpop.permute.xlu0 %283
  %287 = vset.pattern.permute.xlu0 0
  %288 = vperm.xlu0 %287, %v138
  %v289 = vpop.permute.xlu0 %288
  %292 = vset.pattern.permute.xlu0 0
  %293 = vperm.xlu0 %292, %v139
  %v294 = vpop.permute.xlu0 %293
  %297 = vset.pattern.permute.xlu0 0
  %298 = vperm.xlu0 %297, %v140
  %v299 = vpop.permute.xlu0 %298
  %302 = vset.pattern.permute.xlu0 0
  %303 = vperm.xlu0 %302, %v141
  %v304 = vpop.permute.xlu0 %303
  %307 = vset.pattern.permute.xlu0 0
  %308 = vperm.xlu0 %307, %v142
  %v309 = vpop.permute.xlu0 %308
  %312 = vset.pattern.permute.xlu0 0
  %313 = vperm.xlu0 %312, %v143
  %v314 = vpop.permute.xlu0 %313
  %317 = vset.pattern.permute.xlu0 0
  %318 = vperm.xlu0 %317, %v144
  %v319 = vpop.permute.xlu0 %318
  %322 = vset.pattern.permute.xlu0 0
  %323 = vperm.xlu0 %322, %v145
  %v324 = vpop.permute.xlu0 %323
  %327 = vset.pattern.permute.xlu0 0
  %328 = vperm.xlu0 %327, %v146
  %v329 = vpop.permute.xlu0 %328
  %332 = vset.pattern.permute.xlu0 0
  %333 = vperm.xlu0 %332, %v147
  %v334 = vpop.permute.xlu0 %333
  %337 = vset.pattern.permute.xlu0 0
  %338 = vperm.xlu0 %337, %v148
  %v339 = vpop.permute.xlu0 %338
  %342 = vset.pattern.permute.xlu0 0
  %343 = vperm.xlu0 %342, %v149
  %v344 = vpop.permute.xlu0 %343
  %347 = vset.pattern.permute.xlu0 0
  %348 = vperm.xlu0 %347, %v150
  %v349 = vpop.permute.xlu0 %348
  %352 = vset.pattern.permute.xlu0 0
  %353 = vperm.xlu0 %352, %v151
  %v354 = vpop.permute.xlu0 %353
  %357 = vset.pattern.permute.xlu0 0
  %358 = vperm.xlu0 %357, %v152
  %v359 = vpop.permute.xlu0 %358
  %362 = vset.pattern.permute.xlu0 0
  %363 = vperm.xlu0 %362, %v153
  %v364 = vpop.permute.xlu0 %363
  %367 = vset.pattern.permute.xlu0 0
  %368 = vperm.xlu0 %367, %v154
  %v369 = vpop.permute.xlu0 %368
  %372 = vset.pattern.permute.xlu0 0
  %373 = vperm.xlu0 %372, %v155
  %v374 = vpop.permute.xlu0 %373
  %377 = vset.pattern.permute.xlu0 0
  %378 = vperm.xlu0 %377, %v156
  %v379 = vpop.permute.xlu0 %378
  %382 = vset.pattern.permute.xlu0 0
  %383 = vperm.xlu0 %382, %v157
  %v384 = vpop.permute.xlu0 %383
  %387 = vset.pattern.permute.xlu0 0
  %388 = vperm.xlu0 %387, %v158
  %v389 = vpop.permute.xlu0 %388
  %392 = vset.pattern.permute.xlu0 0
  %393 = vperm.xlu0 %392, %v159
  %v394 = vpop.permute.xlu0 %393
  %397 = vset.pattern.permute.xlu0 0
  %398 = vperm.xlu0 %397, %v160
  %v399 = vpop.permute.xlu0 %398
  %402 = vset.pattern.permute.xlu0 0
  %403 = vperm.xlu0 %402, %v161
  %v404 = vpop.permute.xlu0 %403
  %407 = vset.pattern.permute.xlu0 0
  %408 = vperm.xlu0 %407, %v162
  %v409 = vpop.permute.xlu0 %408
  %412 = vset.pattern.permute.xlu0 0
  %413 = vperm.xlu0 %412, %v163
  %v414 = vpop.permute.xlu0 %413
  %417 = vset.pattern.permute.xlu0 0
  %418 = vperm.xlu0 %417, %v164
  %v419 = vpop.permute.xlu0 %418
  %422 = vset.pattern.permute.xlu0 0
  %423 = vperm.xlu0 %422, %v165
  %v424 = vpop.permute.xlu0 %423
  %427 = vset.pattern.permute.xlu0 0
  %428 = vperm.xlu0 %427, %v166
  %v429 = vpop.permute.xlu0 %428
  %432 = vset.pattern.permute.xlu0 0
  %433 = vperm.xlu0 %432, %v167
  %v434 = vpop.permute.xlu0 %433
  %437 = vset.pattern.permute.xlu0 0
  %438 = vperm.xlu0 %437, %v168
  %v439 = vpop.permute.xlu0 %438
  %442 = vset.pattern.permute.xlu0 0
  %443 = vperm.xlu0 %442, %v169
  %v444 = vpop.permute.xlu0 %443
  %447 = vset.pattern.permute.xlu0 0
  %448 = vperm.xlu0 %447, %v170
  %v449 = vpop.permute.xlu0 %448
  %452 = vset.pattern.permute.xlu0 0
  %453 = vperm.xlu0 %452, %v171
  %v454 = vpop.permute.xlu0 %453
  %457 = vset.pattern.permute.xlu0 0
  %458 = vperm.xlu0 %457, %v172
  %v459 = vpop.permute.xlu0 %458
  %462 = vset.pattern.permute.xlu0 0
  %463 = vperm.xlu0 %462, %v173
  %v464 = vpop.permute.xlu0 %463
  %467 = vset.pattern.permute.xlu0 0
  %468 = vperm.xlu0 %467, %v174
  %v469 = vpop.permute.xlu0 %468
  %472 = vset.pattern.permute.xlu0 0
  %473 = vperm.xlu0 %472, %v175
  %v474 = vpop.permute.xlu0 %473
  %477 = vset.pattern.permute.xlu0 0
  %478 = vperm.xlu0 %477, %v176
  %v479 = vpop.permute.xlu0 %478
  %482 = vset.pattern.permute.xlu0 0
  %483 = vperm.xlu0 %482, %v177
  %v484 = vpop.permute.xlu0 %483
  %487 = vset.pattern.permute.xlu0 0
  %488 = vperm.xlu0 %487, %v178
  %v489 = vpop.permute.xlu0 %488
  %492 = vset.pattern.permute.xlu0 0
  %493 = vperm.xlu0 %492, %v179
  %v494 = vpop.permute.xlu0 %493
  %497 = vset.pattern.permute.xlu0 0
  %498 = vperm.xlu0 %497, %v180
  %v499 = vpop.permute.xlu0 %498
  %vm501 = vcmask 343040
  %v503 = vsel %vm501, %v53, 0
  %v506 = vsel %vm501, %v54, 0
  %v509 = vsel %vm501, %v55, 0
  %v512 = vsel %vm501, %v56, 0
  %v515 = vsel %vm501, %v57, 0
  %v518 = vsel %vm501, %v58, 0
  %v521 = vsel %vm501, %v59, 0
  %v524 = vsel %vm501, %v60, 0
  %v527 = vsel %vm501, %v61, 0
  %v530 = vsel %vm501, %v62, 0
  %v533 = vsel %vm501, %v63, 0
  %v536 = vsel %vm501, %v64, 0
  %v539 = vsel %vm501, %v65, 0
  %v542 = vsel %vm501, %v66, 0
  %v545 = vsel %vm501, %v67, 0
  %v548 = vsel %vm501, %v68, 0
  %v551 = vsel %vm501, %v69, 0
  %v554 = vsel %vm501, %v70, 0
  %v557 = vsel %vm501, %v71, 0
  %v560 = vsel %vm501, %v72, 0
  %v563 = vsel %vm501, %v73, 0
  %v566 = vsel %vm501, %v74, 0
  %v569 = vsel %vm501, %v75, 0
  %v572 = vsel %vm501, %v76, 0
  %v575 = vsel %vm501, %v77, 0
  %v578 = vsel %vm501, %v78, 0
  %v581 = vsel %vm501, %v79, 0
  %v584 = vsel %vm501, %v80, 0
  %v587 = vsel %vm501, %v81, 0
  %v590 = vsel %vm501, %v82, 0
  %v593 = vsel %vm501, %v83, 0
  %v596 = vsel %vm501, %v84, 0
  %v599 = vsel %vm501, %v85, 0
  %v602 = vsel %vm501, %v86, 0
  %v605 = vsel %vm501, %v87, 0
  %v608 = vsel %vm501, %v88, 0
  %v611 = vsel %vm501, %v89, 0
  %v614 = vsel %vm501, %v90, 0
  %v617 = vsel %vm501, %v91, 0
  %v620 = vsel %vm501, %v92, 0
  %v623 = vsel %vm501, %v93, 0
  %v626 = vsel %vm501, %v94, 0
  %v629 = vsel %vm501, %v95, 0
  %v632 = vsel %vm501, %v96, 0
  %v635 = vsel %vm501, %v97, 0
  %v638 = vsel %vm501, %v98, 0
  %v641 = vsel %vm501, %v99, 0
  %v644 = vsel %vm501, %v100, 0
  %v647 = vsel %vm501, %v101, 0
  %v650 = vsel %vm501, %v102, 0
  %v653 = vsel %vm501, %v103, 0
  %v656 = vsel %vm501, %v104, 0
  %v659 = vsel %vm501, %v105, 0
  %v662 = vsel %vm501, %v106, 0
  %v665 = vsel %vm501, %v107, 0
  %v668 = vsel %vm501, %v108, 0
  %v671 = vsel %vm501, %v109, 0
  %v674 = vsel %vm501, %v110, 0
  %v677 = vsel %vm501, %v111, 0
  %v680 = vsel %vm501, %v112, 0
  %v683 = vsel %vm501, %v113, 0
  %v686 = vsel %vm501, %v114, 0
  %v689 = vsel %vm501, %v115, 0
  %v692 = vsel %vm501, %v116, 0
  %vm694 = vcmask 1041408
  %v696 = vsel %vm694, %v52, 0
  %698 = vmatprep.subr.mxu0 0.0
  %699 = vmatpush1.msra.mxu0 %v47
  %700 = vmatprep.subr.mxu0 0.0
  %701 = vmatpush1.msra.mxu0 %v48
  %702 = vmatprep.subr.mxu0 0.0
  %703 = vmatpush1.msra.mxu0 %v49
  %704 = vmatprep.subr.mxu0 0.0
  %705 = vmatpush1.msra.mxu0 %v50
  %706 = vmatprep.subr.mxu0 0.0
  %707 = vmatpush1.msra.mxu0 %v51
  %708 = vmatprep.subr.mxu0 0.0
  %709 = vmatpush1.msra.mxu0 %v696
  %710 = vmatprep.subr.mxu0 0.0
  %711 = vmatpush1.msra.mxu0 0.0
  %712 = vmatprep.subr.mxu0 0.0
  %713 = vmatpush1.msra.mxu0 0.0
  %714 = vmatprep.subr.mxu0 0.0
  %715 = vmatpush1.msra.mxu0 0.0
  %716 = vmatprep.subr.mxu0 0.0
  %717 = vmatpush1.msra.mxu0 0.0
  %718 = vmatprep.subr.mxu0 0.0
  %719 = vmatpush1.msra.mxu0 0.0
  %720 = vmatprep.subr.mxu0 0.0
  %721 = vmatpush1.msra.mxu0 0.0
  %722 = vmatprep.subr.mxu0 0.0
  %723 = vmatpush1.msra.mxu0 0.0
  %724 = vmatprep.subr.mxu0 0.0
  %725 = vmatpush1.msra.mxu0 0.0
  %726 = vmatprep.subr.mxu0 0.0
  %727 = vmatpush1.msra.mxu0 0.0
  %728 = vmatprep.subr.mxu0 0.0
  %729 = vmatpush1.msra.mxu0 0.0
  %730 = vmatprep.subr.mxu0 0.0
  %731 = vmatpush1.msra.mxu0 0.0
  %732 = vmatprep.subr.mxu0 0.0
  %733 = vmatpush1.msra.mxu0 0.0
  %734 = vmatprep.subr.mxu0 0.0
  %735 = vmatpush1.msra.mxu0 0.0
  %736 = vmatprep.subr.mxu0 0.0
  %737 = vmatpush1.msra.mxu0 0.0
  %738 = vmatprep.subr.mxu0 0.0
  %739 = vmatpush1.msra.mxu0 0.0
  %740 = vmatprep.subr.mxu0 0.0
  %741 = vmatpush1.msra.mxu0 0.0
  %742 = vmatprep.subr.mxu0 0.0
  %743 = vmatpush1.msra.mxu0 0.0
  %744 = vmatprep.subr.mxu0 0.0
  %745 = vmatpush1.msra.mxu0 0.0
  %746 = vmatprep.subr.mxu0 0.0
  %747 = vmatpush1.msra.mxu0 0.0
  %748 = vmatprep.subr.mxu0 0.0
  %749 = vmatpush1.msra.mxu0 0.0
  %750 = vmatprep.subr.mxu0 0.0
  %751 = vmatpush1.msra.mxu0 0.0
  %752 = vmatprep.subr.mxu0 0.0
  %753 = vmatpush1.msra.mxu0 0.0
  %754 = vmatprep.subr.mxu0 0.0
  %755 = vmatpush1.msra.mxu0 0.0
  %756 = vmatprep.subr.mxu0 0.0
  %757 = vmatpush1.msra.mxu0 0.0
  %758 = vmatprep.subr.mxu0 0.0
  %759 = vmatpush1.msra.mxu0 0.0
  %760 = vmatprep.subr.mxu0 0.0
  %761 = vmatpush1.msra.mxu0 0.0
  %762 = vmatprep.mubr.f32.mxu0 0.0
  %763 = vmatmul.mubr.f32.gmra.mrb[0].mxu0 %v503
  %v764 = vpop.f32.mrb[0].mxu0
  %v765 = vadd.f32 %v184, %v764
  %v766 = vpop.f32.mrb[0].mxu0
  %767 = vmatprep.mubr.f32.mxu0 0.0
  %768 = vmatmul.mubr.f32.gmra.mrb[0].mxu0 %v506
  %v769 = vpop.f32.mrb[0].mxu0
  %v770 = vadd.f32 %v189, %v769
  %v771 = vpop.f32.mrb[0].mxu0
  %772 = vmatprep.mubr.f32.mxu0 0.0
  %773 = vmatmul.mubr.f32.gmra.mrb[0].mxu0 %v509
  %v774 = vpop.f32.mrb[0].mxu0
  %v775 = vadd.f32 %v194, %v774
  %v776 = vpop.f32.mrb[0].mxu0
  %777 = vmatprep.mubr.f32.mxu0 0.0
  %778 = vmatmul.mubr.f32.gmra.mrb[0].mxu0 %v512
  %v779 = vpop.f32.mrb[0].mxu0
  %v780 = vadd.f32 %v199, %v779
  %v781 = vpop.f32.mrb[0].mxu0
  %782 = vmatprep.mubr.f32.mxu0 0.0
  %783 = vmatmul.mubr.f32.gmra.mrb[0].mxu0 %v515
  %v784 = vpop.f32.mrb[0].mxu0
  %v785 = vadd.f32 %v204, %v784
  %v786 = vpop.f32.mrb[0].mxu0
  %787 = vmatprep.mubr.f32.mxu0 0.0
  %788 = vmatmul.mubr.f32.gmra.mrb[0].mxu0 %v518
  %v789 = vpop.f32.mrb[0].mxu0
  %v790 = vadd.f32 %v209, %v789
  %v791 = vpop.f32.mrb[0].mxu0
  %792 = vmatprep.mubr.f32.mxu0 0.0
  %793 = vmatmul.mubr.f32.gmra.mrb[0].mxu0 %v521
  %v794 = vpop.f32.mrb[0].mxu0
  %v795 = vadd.f32 %v214, %v794
  %v796 = vpop.f32.mrb[0].mxu0
  %797 = vmatprep.mubr.f32.mxu0 0.0
  %798 = vmatmul.mubr.f32.gmra.mrb[0].mxu0 %v524
  %v799 = vpop.f32.mrb[0].mxu0
  %v800 = vadd.f32 %v219, %v799
  %v801 = vpop.f32.mrb[0].mxu0
  %802 = vmatprep.mubr.f32.mxu0 0.0
  %803 = vmatmul.mubr.f32.gmra.mrb[0].mxu0 %v527
  %v804 = vpop.f32.mrb[0].mxu0
  %v805 = vadd.f32 %v224, %v804
  %v806 = vpop.f32.mrb[0].mxu0
  %807 = vmatprep.mubr.f32.mxu0 0.0
  %808 = vmatmul.mubr.f32.gmra.mrb[0].mxu0 %v530
  %v809 = vpop.f32.mrb[0].mxu0
  %v810 = vadd.f32 %v229, %v809
  %v811 = vpop.f32.mrb[0].mxu0
  %812 = vmatprep.mubr.f32.mxu0 0.0
  %813 = vmatmul.mubr.f32.gmra.mrb[0].mxu0 %v533
  %v814 = vpop.f32.mrb[0].mxu0
  %v815 = vadd.f32 %v234, %v814
  %v816 = vpop.f32.mrb[0].mxu0
  %817 = vmatprep.mubr.f32.mxu0 0.0
  %818 = vmatmul.mubr.f32.gmra.mrb[0].mxu0 %v536
  %v819 = vpop.f32.mrb[0].mxu0
  %v820 = vadd.f32 %v239, %v819
  %v821 = vpop.f32.mrb[0].mxu0
  %822 = vmatprep.mubr.f32.mxu0 0.0
  %823 = vmatmul.mubr.f32.gmra.mrb[0].mxu0 %v539
  %v824 = vpop.f32.mrb[0].mxu0
  %v825 = vadd.f32 %v244, %v824
  %v826 = vpop.f32.mrb[0].mxu0
  %827 = vmatprep.mubr.f32.mxu0 0.0
  %828 = vmatmul.mubr.f32.gmra.mrb[0].mxu0 %v542
  %v829 = vpop.f32.mrb[0].mxu0
  %v830 = vadd.f32 %v249, %v829
  %v831 = vpop.f32.mrb[0].mxu0
  %832 = vmatprep.mubr.f32.mxu0 0.0
  %833 = vmatmul.mubr.f32.gmra.mrb[0].mxu0 %v545
  %v834 = vpop.f32.mrb[0].mxu0
  %v835 = vadd.f32 %v254, %v834
  %v836 = vpop.f32.mrb[0].mxu0
  %837 = vmatprep.mubr.f32.mxu0 0.0
  %838 = vmatmul.mubr.f32.gmra.mrb[0].mxu0 %v548
  %v839 = vpop.f32.mrb[0].mxu0
  %v840 = vadd.f32 %v259, %v839
  %v841 = vpop.f32.mrb[0].mxu0
  %842 = vmatprep.mubr.f32.mxu0 0.0
  %843 = vmatmul.mubr.f32.gmra.mrb[0].mxu0 %v551
  %v844 = vpop.f32.mrb[0].mxu0
  %v845 = vadd.f32 %v264, %v844
  %v846 = vpop.f32.mrb[0].mxu0
  %847 = vmatprep.mubr.f32.mxu0 0.0
  %848 = vmatmul.mubr.f32.gmra.mrb[0].mxu0 %v554
  %v849 = vpop.f32.mrb[0].mxu0
  %v850 = vadd.f32 %v269, %v849
  %v851 = vpop.f32.mrb[0].mxu0
  %852 = vmatprep.mubr.f32.mxu0 0.0
  %853 = vmatmul.mubr.f32.gmra.mrb[0].mxu0 %v557
  %v854 = vpop.f32.mrb[0].mxu0
  %v855 = vadd.f32 %v274, %v854
  %v856 = vpop.f32.mrb[0].mxu0
  %857 = vmatprep.mubr.f32.mxu0 0.0
  %858 = vmatmul.mubr.f32.gmra.mrb[0].mxu0 %v560
  %v859 = vpop.f32.mrb[0].mxu0
  %v860 = vadd.f32 %v279, %v859
  %v861 = vpop.f32.mrb[0].mxu0
  %862 = vmatprep.mubr.f32.mxu0 0.0
  %863 = vmatmul.mubr.f32.gmra.mrb[0].mxu0 %v563
  %v864 = vpop.f32.mrb[0].mxu0
  %v865 = vadd.f32 %v284, %v864
  %v866 = vpop.f32.mrb[0].mxu0
  %867 = vmatprep.mubr.f32.mxu0 0.0
  %868 = vmatmul.mubr.f32.gmra.mrb[0].mxu0 %v566
  %v869 = vpop.f32.mrb[0].mxu0
  %v870 = vadd.f32 %v289, %v869
  %v871 = vpop.f32.mrb[0].mxu0
  %872 = vmatprep.mubr.f32.mxu0 0.0
  %873 = vmatmul.mubr.f32.gmra.mrb[0].mxu0 %v569
  %v874 = vpop.f32.mrb[0].mxu0
  %v875 = vadd.f32 %v294, %v874
  %v876 = vpop.f32.mrb[0].mxu0
  %877 = vmatprep.mubr.f32.mxu0 0.0
  %878 = vmatmul.mubr.f32.gmra.mrb[0].mxu0 %v572
  %v879 = vpop.f32.mrb[0].mxu0
  %v880 = vadd.f32 %v299, %v879
  %v881 = vpop.f32.mrb[0].mxu0
  %882 = vmatprep.mubr.f32.mxu0 0.0
  %883 = vmatmul.mubr.f32.gmra.mrb[0].mxu0 %v575
  %v884 = vpop.f32.mrb[0].mxu0
  %v885 = vadd.f32 %v304, %v884
  %v886 = vpop.f32.mrb[0].mxu0
  %887 = vmatprep.mubr.f32.mxu0 0.0
  %888 = vmatmul.mubr.f32.gmra.mrb[0].mxu0 %v578
  %v889 = vpop.f32.mrb[0].mxu0
  %v890 = vadd.f32 %v309, %v889
  %v891 = vpop.f32.mrb[0].mxu0
  %892 = vmatprep.mubr.f32.mxu0 0.0
  %893 = vmatmul.mubr.f32.gmra.mrb[0].mxu0 %v581
  %v894 = vpop.f32.mrb[0].mxu0
  %v895 = vadd.f32 %v314, %v894
  %v896 = vpop.f32.mrb[0].mxu0
  %897 = vmatprep.mubr.f32.mxu0 0.0
  %898 = vmatmul.mubr.f32.gmra.mrb[0].mxu0 %v584
  %v899 = vpop.f32.mrb[0].mxu0
  %v900 = vadd.f32 %v319, %v899
  %v901 = vpop.f32.mrb[0].mxu0
  %902 = vmatprep.mubr.f32.mxu0 0.0
  %903 = vmatmul.mubr.f32.gmra.mrb[0].mxu0 %v587
  %v904 = vpop.f32.mrb[0].mxu0
  %v905 = vadd.f32 %v324, %v904
  %v906 = vpop.f32.mrb[0].mxu0
  %907 = vmatprep.mubr.f32.mxu0 0.0
  %908 = vmatmul.mubr.f32.gmra.mrb[0].mxu0 %v590
  %v909 = vpop.f32.mrb[0].mxu0
  %v910 = vadd.f32 %v329, %v909
  %v911 = vpop.f32.mrb[0].mxu0
  %912 = vmatprep.mubr.f32.mxu0 0.0
  %913 = vmatmul.mubr.f32.gmra.mrb[0].mxu0 %v593
  %v914 = vpop.f32.mrb[0].mxu0
  %v915 = vadd.f32 %v334, %v914
  %v916 = vpop.f32.mrb[0].mxu0
  %917 = vmatprep.mubr.f32.mxu0 0.0
  %918 = vmatmul.mubr.f32.gmra.mrb[0].mxu0 %v596
  %v919 = vpop.f32.mrb[0].mxu0
  %v920 = vadd.f32 %v339, %v919
  %v921 = vpop.f32.mrb[0].mxu0
  %922 = vmatprep.mubr.f32.mxu0 0.0
  %923 = vmatmul.mubr.f32.gmra.mrb[0].mxu0 %v599
  %v924 = vpop.f32.mrb[0].mxu0
  %v925 = vadd.f32 %v344, %v924
  %v926 = vpop.f32.mrb[0].mxu0
  %927 = vmatprep.mubr.f32.mxu0 0.0
  %928 = vmatmul.mubr.f32.gmra.mrb[0].mxu0 %v602
  %v929 = vpop.f32.mrb[0].mxu0
  %v930 = vadd.f32 %v349, %v929
  %v931 = vpop.f32.mrb[0].mxu0
  %932 = vmatprep.mubr.f32.mxu0 0.0
  %933 = vmatmul.mubr.f32.gmra.mrb[0].mxu0 %v605
  %v934 = vpop.f32.mrb[0].mxu0
  %v935 = vadd.f32 %v354, %v934
  %v936 = vpop.f32.mrb[0].mxu0
  %937 = vmatprep.mubr.f32.mxu0 0.0
  %938 = vmatmul.mubr.f32.gmra.mrb[0].mxu0 %v608
  %v939 = vpop.f32.mrb[0].mxu0
  %v940 = vadd.f32 %v359, %v939
  %v941 = vpop.f32.mrb[0].mxu0
  %942 = vmatprep.mubr.f32.mxu0 0.0
  %943 = vmatmul.mubr.f32.gmra.mrb[0].mxu0 %v611
  %v944 = vpop.f32.mrb[0].mxu0
  %v945 = vadd.f32 %v364, %v944
  %v946 = vpop.f32.mrb[0].mxu0
  %947 = vmatprep.mubr.f32.mxu0 0.0
  %948 = vmatmul.mubr.f32.gmra.mrb[0].mxu0 %v614
  %v949 = vpop.f32.mrb[0].mxu0
  %v950 = vadd.f32 %v369, %v949
  %v951 = vpop.f32.mrb[0].mxu0
  %952 = vmatprep.mubr.f32.mxu0 0.0
  %953 = vmatmul.mubr.f32.gmra.mrb[0].mxu0 %v617
  %v954 = vpop.f32.mrb[0].mxu0
  %v955 = vadd.f32 %v374, %v954
  %v956 = vpop.f32.mrb[0].mxu0
  %957 = vmatprep.mubr.f32.mxu0 0.0
  %958 = vmatmul.mubr.f32.gmra.mrb[0].mxu0 %v620
  %v959 = vpop.f32.mrb[0].mxu0
  %v960 = vadd.f32 %v379, %v959
  %v961 = vpop.f32.mrb[0].mxu0
  %962 = vmatprep.mubr.f32.mxu0 0.0
  %963 = vmatmul.mubr.f32.gmra.mrb[0].mxu0 %v623
  %v964 = vpop.f32.mrb[0].mxu0
  %v965 = vadd.f32 %v384, %v964
  %v966 = vpop.f32.mrb[0].mxu0
  %967 = vmatprep.mubr.f32.mxu0 0.0
  %968 = vmatmul.mubr.f32.gmra.mrb[0].mxu0 %v626
  %v969 = vpop.f32.mrb[0].mxu0
  %v970 = vadd.f32 %v389, %v969
  %v971 = vpop.f32.mrb[0].mxu0
  %972 = vmatprep.mubr.f32.mxu0 0.0
  %973 = vmatmul.mubr.f32.gmra.mrb[0].mxu0 %v629
  %v974 = vpop.f32.mrb[0].mxu0
  %v975 = vadd.f32 %v394, %v974
  %v976 = vpop.f32.mrb[0].mxu0
  %977 = vmatprep.mubr.f32.mxu0 0.0
  %978 = vmatmul.mubr.f32.gmra.mrb[0].mxu0 %v632
  %v979 = vpop.f32.mrb[0].mxu0
  %v980 = vadd.f32 %v399, %v979
  %v981 = vpop.f32.mrb[0].mxu0
  %982 = vmatprep.mubr.f32.mxu0 0.0
  %983 = vmatmul.mubr.f32.gmra.mrb[0].mxu0 %v635
  %v984 = vpop.f32.mrb[0].mxu0
  %v985 = vadd.f32 %v404, %v984
  %v986 = vpop.f32.mrb[0].mxu0
  %987 = vmatprep.mubr.f32.mxu0 0.0
  %988 = vmatmul.mubr.f32.gmra.mrb[0].mxu0 %v638
  %v989 = vpop.f32.mrb[0].mxu0
  %v990 = vadd.f32 %v409, %v989
  %v991 = vpop.f32.mrb[0].mxu0
  %992 = vmatprep.mubr.f32.mxu0 0.0
  %993 = vmatmul.mubr.f32.gmra.mrb[0].mxu0 %v641
  %v994 = vpop.f32.mrb[0].mxu0
  %v995 = vadd.f32 %v414, %v994
  %v996 = vpop.f32.mrb[0].mxu0
  %997 = vmatprep.mubr.f32.mxu0 0.0
  %998 = vmatmul.mubr.f32.gmra.mrb[0].mxu0 %v644
  %v999 = vpop.f32.mrb[0].mxu0
  %v1000 = vadd.f32 %v419, %v999
  %v1001 = vpop.f32.mrb[0].mxu0
  %1002 = vmatprep.mubr.f32.mxu0 0.0
  %1003 = vmatmul.mubr.f32.gmra.mrb[0].mxu0 %v647
  %v1004 = vpop.f32.mrb[0].mxu0
  %v1005 = vadd.f32 %v424, %v1004
  %v1006 = vpop.f32.mrb[0].mxu0
  %1007 = vmatprep.mubr.f32.mxu0 0.0
  %1008 = vmatmul.mubr.f32.gmra.mrb[0].mxu0 %v650
  %v1009 = vpop.f32.mrb[0].mxu0
  %v1010 = vadd.f32 %v429, %v1009
  %v1011 = vpop.f32.mrb[0].mxu0
  %1012 = vmatprep.mubr.f32.mxu0 0.0
  %1013 = vmatmul.mubr.f32.gmra.mrb[0].mxu0 %v653
  %v1014 = vpop.f32.mrb[0].mxu0
  %v1015 = vadd.f32 %v434, %v1014
  %v1016 = vpop.f32.mrb[0].mxu0
  %1017 = vmatprep.mubr.f32.mxu0 0.0
  %1018 = vmatmul.mubr.f32.gmra.mrb[0].mxu0 %v656
  %v1019 = vpop.f32.mrb[0].mxu0
  %v1020 = vadd.f32 %v439, %v1019
  %v1021 = vpop.f32.mrb[0].mxu0
  %1022 = vmatprep.mubr.f32.mxu0 0.0
  %1023 = vmatmul.mubr.f32.gmra.mrb[0].mxu0 %v659
  %v1024 = vpop.f32.mrb[0].mxu0
  %v1025 = vadd.f32 %v444, %v1024
  %v1026 = vpop.f32.mrb[0].mxu0
  %1027 = vmatprep.mubr.f32.mxu0 0.0
  %1028 = vmatmul.mubr.f32.gmra.mrb[0].mxu0 %v662
  %v1029 = vpop.f32.mrb[0].mxu0
  %v1030 = vadd.f32 %v449, %v1029
  %v1031 = vpop.f32.mrb[0].mxu0
  %1032 = vmatprep.mubr.f32.mxu0 0.0
  %1033 = vmatmul.mubr.f32.gmra.mrb[0].mxu0 %v665
  %v1034 = vpop.f32.mrb[0].mxu0
  %v1035 = vadd.f32 %v454, %v1034
  %v1036 = vpop.f32.mrb[0].mxu0
  %1037 = vmatprep.mubr.f32.mxu0 0.0
  %1038 = vmatmul.mubr.f32.gmra.mrb[0].mxu0 %v668
  %v1039 = vpop.f32.mrb[0].mxu0
  %v1040 = vadd.f32 %v459, %v1039
  %v1041 = vpop.f32.mrb[0].mxu0
  %1042 = vmatprep.mubr.f32.mxu0 0.0
  %1043 = vmatmul.mubr.f32.gmra.mrb[0].mxu0 %v671
  %v1044 = vpop.f32.mrb[0].mxu0
  %v1045 = vadd.f32 %v464, %v1044
  %v1046 = vpop.f32.mrb[0].mxu0
  %1047 = vmatprep.mubr.f32.mxu0 0.0
  %1048 = vmatmul.mubr.f32.gmra.mrb[0].mxu0 %v674
  %v1049 = vpop.f32.mrb[0].mxu0
  %v1050 = vadd.f32 %v469, %v1049
  %v1051 = vpop.f32.mrb[0].mxu0
  %1052 = vmatprep.mubr.f32.mxu0 0.0
  %1053 = vmatmul.mubr.f32.gmra.mrb[0].mxu0 %v677
  %v1054 = vpop.f32.mrb[0].mxu0
  %v1055 = vadd.f32 %v474, %v1054
  %v1056 = vpop.f32.mrb[0].mxu0
  %1057 = vmatprep.mubr.f32.mxu0 0.0
  %1058 = vmatmul.mubr.f32.gmra.mrb[0].mxu0 %v680
  %v1059 = vpop.f32.mrb[0].mxu0
  %v1060 = vadd.f32 %v479, %v1059
  %v1061 = vpop.f32.mrb[0].mxu0
  %1062 = vmatprep.mubr.f32.mxu0 0.0
  %1063 = vmatmul.mubr.f32.gmra.mrb[0].mxu0 %v683
  %v1064 = vpop.f32.mrb[0].mxu0
  %v1065 = vadd.f32 %v484, %v1064
  %v1066 = vpop.f32.mrb[0].mxu0
  %1067 = vmatprep.mubr.f32.mxu0 0.0
  %1068 = vmatmul.mubr.f32.gmra.mrb[0].mxu0 %v686
  %v1069 = vpop.f32.mrb[0].mxu0
  %v1070 = vadd.f32 %v489, %v1069
  %v1071 = vpop.f32.mrb[0].mxu0
  %1072 = vmatprep.mubr.f32.mxu0 0.0
  %1073 = vmatmul.mubr.f32.gmra.mrb[0].mxu0 %v689
  %v1074 = vpop.f32.mrb[0].mxu0
  %v1075 = vadd.f32 %v494, %v1074
  %v1076 = vpop.f32.mrb[0].mxu0
  %1077 = vmatprep.mubr.f32.mxu0 0.0
  %1078 = vmatmul.mubr.f32.gmra.mrb[0].mxu0 %v692
  %v1079 = vpop.f32.mrb[0].mxu0
  %v1080 = vadd.f32 %v499, %v1079
  %v1081 = vpop.f32.mrb[0].mxu0
  %1082 = vdwg.mxu0
  %v1083 = vmax.f32 %v765, 0.0
  %v1084 = vmax.f32 %v770, 0.0
  %v1085 = vmax.f32 %v775, 0.0
  %v1086 = vmax.f32 %v780, 0.0
  %v1087 = vmax.f32 %v785, 0.0
  %v1088 = vmax.f32 %v790, 0.0
  %v1089 = vmax.f32 %v795, 0.0
  %v1090 = vmax.f32 %v800, 0.0
  %v1091 = vmax.f32 %v805, 0.0
  %v1092 = vmax.f32 %v810, 0.0
  %v1093 = vmax.f32 %v815, 0.0
  %v1094 = vmax.f32 %v820, 0.0
  %v1095 = vmax.f32 %v825, 0.0
  %v1096 = vmax.f32 %v830, 0.0
  %v1097 = vmax.f32 %v835, 0.0
  %v1098 = vmax.f32 %v840, 0.0
  %v1099 = vmax.f32 %v845, 0.0
  %v1100 = vmax.f32 %v850, 0.0
  %v1101 = vmax.f32 %v855, 0.0
  %v1102 = vmax.f32 %v860, 0.0
  %v1103 = vmax.f32 %v865, 0.0
  %v1104 = vmax.f32 %v870, 0.0
  %v1105 = vmax.f32 %v875, 0.0
  %v1106 = vmax.f32 %v880, 0.0
  %v1107 = vmax.f32 %v885, 0.0
  %v1108 = vmax.f32 %v890, 0.0
  %v1109 = vmax.f32 %v895, 0.0
  %v1110 = vmax.f32 %v900, 0.0
  %v1111 = vmax.f32 %v905, 0.0
  %v1112 = vmax.f32 %v910, 0.0
  %v1113 = vmax.f32 %v915, 0.0
  %v1114 = vmax.f32 %v920, 0.0
  %v1115 = vmax.f32 %v925, 0.0
  %v1116 = vmax.f32 %v930, 0.0
  %v1117 = vmax.f32 %v935, 0.0
  %v1118 = vmax.f32 %v940, 0.0
  %v1119 = vmax.f32 %v945, 0.0
  %v1120 = vmax.f32 %v950, 0.0
  %v1121 = vmax.f32 %v955, 0.0
  %v1122 = vmax.f32 %v960, 0.0
  %v1123 = vmax.f32 %v965, 0.0
  %v1124 = vmax.f32 %v970, 0.0
  %v1125 = vmax.f32 %v975, 0.0
  %v1126 = vmax.f32 %v980, 0.0
  %v1127 = vmax.f32 %v985, 0.0
  %v1128 = vmax.f32 %v990, 0.0
  %v1129 = vmax.f32 %v995, 0.0
  %v1130 = vmax.f32 %v1000, 0.0
  %v1131 = vmax.f32 %v1005, 0.0
  %v1132 = vmax.f32 %v1010, 0.0
  %v1133 = vmax.f32 %v1015, 0.0
  %v1134 = vmax.f32 %v1020, 0.0
  %v1135 = vmax.f32 %v1025, 0.0
  %v1136 = vmax.f32 %v1030, 0.0
  %v1137 = vmax.f32 %v1035, 0.0
  %v1138 = vmax.f32 %v1040, 0.0
  %v1139 = vmax.f32 %v1045, 0.0
  %v1140 = vmax.f32 %v1050, 0.0
  %v1141 = vmax.f32 %v1055, 0.0
  %v1142 = vmax.f32 %v1060, 0.0
  %v1143 = vmax.f32 %v1065, 0.0
  %v1144 = vmax.f32 %v1070, 0.0
  %v1145 = vmax.f32 %v1075, 0.0
  %v1146 = vmax.f32 %v1080, 0.0
  %v1147 = vld [vmem:[%s3] sm:$0xff]
  %v1148 = vld [vmem:[%s3 + $0x8] sm:$0xff]
  %v1149 = vld [vmem:[%s3 + $0x10] sm:$0xff]
  %v1150 = vld [vmem:[%s3 + $0x18] sm:$0xff]
  %v1151 = vld [vmem:[%s3 + $0x20] sm:$0xff]
  %v1152 = vld [vmem:[%s3 + $0x28] sm:$0xff]
  %v1153 = vld [vmem:[%s3 + $0x30] sm:$0xff]
  %v1154 = vld [vmem:[%s3 + $0x38] sm:$0xff]
  %v1155 = vld [vmem:[%s3 + $0x40] sm:$0xff]
  %v1156 = vld [vmem:[%s3 + $0x48] sm:$0xff]
  %v1157 = vld [vmem:[%s3 + $0x50] sm:$0xff]
  %v1158 = vld [vmem:[%s3 + $0x58] sm:$0xff]
  %v1159 = vld [vmem:[%s3 + $0x60] sm:$0xff]
  %v1160 = vld [vmem:[%s3 + $0x68] sm:$0xff]
  %v1161 = vld [vmem:[%s3 + $0x70] sm:$0xff]
  %v1162 = vld [vmem:[%s3 + $0x78] sm:$0xff]
  %v1163 = vld [vmem:[%s3 + $0x80] sm:$0xff]
  %v1164 = vld [vmem:[%s3 + $0x88] sm:$0xff]
  %v1165 = vld [vmem:[%s3 + $0x90] sm:$0xff]
  %v1166 = vld [vmem:[%s3 + $0x98] sm:$0xff]
  %v1167 = vld [vmem:[%s3 + $0xa0] sm:$0xff]
  %v1168 = vld [vmem:[%s3 + $0xa8] sm:$0xff]
  %v1169 = vld [vmem:[%s3 + $0xb0] sm:$0xff]
  %v1170 = vld [vmem:[%s3 + $0xb8] sm:$0xff]
  %v1171 = vld [vmem:[%s3 + $0xc0] sm:$0xff]
  %v1172 = vld [vmem:[%s3 + $0xc8] sm:$0xff]
  %v1173 = vld [vmem:[%s3 + $0xd0] sm:$0xff]
  %v1174 = vld [vmem:[%s3 + $0xd8] sm:$0xff]
  %v1175 = vld [vmem:[%s3 + $0xe0] sm:$0xff]
  %v1176 = vld [vmem:[%s3 + $0xe8] sm:$0xff]
  %v1177 = vld [vmem:[%s3 + $0xf0] sm:$0xff]
  %v1178 = vld [vmem:[%s3 + $0xf8] sm:$0xff]
  %v1179 = vld [vmem:[%s3 + $0x100] sm:$0xff]
  %v1180 = vld [vmem:[%s3 + $0x108] sm:$0xff]
  %v1181 = vld [vmem:[%s3 + $0x110] sm:$0xff]
  %v1182 = vld [vmem:[%s3 + $0x118] sm:$0xff]
  %v1183 = vld [vmem:[%s3 + $0x120] sm:$0xff]
  %v1184 = vld [vmem:[%s3 + $0x128] sm:$0xff]
  %v1185 = vld [vmem:[%s3 + $0x130] sm:$0xff]
  %v1186 = vld [vmem:[%s3 + $0x138] sm:$0xff]
  %v1187 = vld [vmem:[%s3 + $0x140] sm:$0xff]
  %v1188 = vld [vmem:[%s3 + $0x148] sm:$0xff]
  %v1189 = vld [vmem:[%s3 + $0x150] sm:$0xff]
  %v1190 = vld [vmem:[%s3 + $0x158] sm:$0xff]
  %v1191 = vld [vmem:[%s3 + $0x160] sm:$0xff]
  %v1192 = vld [vmem:[%s3 + $0x168] sm:$0xff]
  %v1193 = vld [vmem:[%s3 + $0x170] sm:$0xff]
  %v1194 = vld [vmem:[%s3 + $0x178] sm:$0xff]
  %v1195 = vld [vmem:[%s3 + $0x180] sm:$0xff]
  %v1196 = vld [vmem:[%s3 + $0x188] sm:$0xff]
  %v1197 = vld [vmem:[%s3 + $0x190] sm:$0xff]
  %v1198 = vld [vmem:[%s3 + $0x198] sm:$0xff]
  %v1199 = vld [vmem:[%s3 + $0x1a0] sm:$0xff]
  %v1200 = vld [vmem:[%s3 + $0x1a8] sm:$0xff]
  %v1201 = vld [vmem:[%s3 + $0x1b0] sm:$0xff]
  %v1202 = vld [vmem:[%s3 + $0x1b8] sm:$0xff]
  %v1203 = vld [vmem:[%s3 + $0x1c0] sm:$0xff]
  %v1204 = vld [vmem:[%s3 + $0x1c8] sm:$0xff]
  %v1205 = vld [vmem:[%s3 + $0x1d0] sm:$0xff]
  %v1206 = vld [vmem:[%s3 + $0x1d8] sm:$0xff]
  %v1207 = vld [vmem:[%s3 + $0x1e0] sm:$0xff]
  %v1208 = vld [vmem:[%s3 + $0x1e8] sm:$0xff]
  %v1209 = vld [vmem:[%s3 + $0x1f0] sm:$0xff]
  %v1210 = vld [vmem:[%s3 + $0x1f8] sm:$0xff]
  %v1211 = vld [vmem:[%s3 + $0x200] sm:$0xff]
  %v1212 = vld [vmem:[%s3 + $0x208] sm:$0xff]
  %v1213 = vld [vmem:[%s3 + $0x210] sm:$0xff]
  %v1214 = vld [vmem:[%s3 + $0x218] sm:$0xff]
  %v1215 = vld [vmem:[%s3 + $0x220] sm:$0xff]
  %v1216 = vld [vmem:[%s3 + $0x228] sm:$0xff]
  %v1217 = vld [vmem:[%s3 + $0x230] sm:$0xff]
  %v1218 = vld [vmem:[%s3 + $0x238] sm:$0xff]
  %v1219 = vld [vmem:[%s3 + $0x240] sm:$0xff]
  %v1220 = vld [vmem:[%s3 + $0x248] sm:$0xff]
  %v1221 = vld [vmem:[%s3 + $0x250] sm:$0xff]
  %v1222 = vld [vmem:[%s3 + $0x258] sm:$0xff]
  %v1223 = vld [vmem:[%s3 + $0x260] sm:$0xff]
  %v1224 = vld [vmem:[%s3 + $0x268] sm:$0xff]
  %v1225 = vld [vmem:[%s3 + $0x270] sm:$0xff]
  %v1226 = vld [vmem:[%s3 + $0x278] sm:$0xff]
  %v1227 = vld [vmem:[%s3 + $0x280] sm:$0xff]
  %v1228 = vld [vmem:[%s3 + $0x288] sm:$0xff]
  %v1229 = vld [vmem:[%s3 + $0x290] sm:$0xff]
  %v1230 = vld [vmem:[%s3 + $0x298] sm:$0xff]
  %v1231 = vld [vmem:[%s3 + $0x2a0] sm:$0xff]
  %v1232 = vld [vmem:[%s3 + $0x2a8] sm:$0xff]
  %v1233 = vld [vmem:[%s3 + $0x2b0] sm:$0xff]
  %v1234 = vld [vmem:[%s3 + $0x2b8] sm:$0xff]
  %v1235 = vld [vmem:[%s3 + $0x2c0] sm:$0xff]
  %v1236 = vld [vmem:[%s3 + $0x2c8] sm:$0xff]
  %v1237 = vld [vmem:[%s3 + $0x2d0] sm:$0xff]
  %v1238 = vld [vmem:[%s3 + $0x2d8] sm:$0xff]
  %v1239 = vld [vmem:[%s3 + $0x2e0] sm:$0xff]
  %v1240 = vld [vmem:[%s3 + $0x2e8] sm:$0xff]
  %v1241 = vld [vmem:[%s3 + $0x2f0] sm:$0xff]
  %v1242 = vld [vmem:[%s3 + $0x2f8] sm:$0xff]
  %v1243 = vld [vmem:[%s3 + $0x300] sm:$0xff]
  %v1244 = vld [vmem:[%s3 + $0x308] sm:$0xff]
  %v1245 = vld [vmem:[%s3 + $0x310] sm:$0xff]
  %v1246 = vld [vmem:[%s3 + $0x318] sm:$0xff]
  %v1247 = vld [vmem:[%s3 + $0x320] sm:$0xff]
  %v1248 = vld [vmem:[%s3 + $0x328] sm:$0xff]
  %v1249 = vld [vmem:[%s3 + $0x330] sm:$0xff]
  %v1250 = vld [vmem:[%s3 + $0x338] sm:$0xff]
  %v1251 = vld [vmem:[%s3 + $0x340] sm:$0xff]
  %v1252 = vld [vmem:[%s3 + $0x348] sm:$0xff]
  %v1253 = vld [vmem:[%s3 + $0x350] sm:$0xff]
  %v1254 = vld [vmem:[%s3 + $0x358] sm:$0xff]
  %v1255 = vld [vmem:[%s3 + $0x360] sm:$0xff]
  %v1256 = vld [vmem:[%s3 + $0x368] sm:$0xff]
  %v1257 = vld [vmem:[%s3 + $0x370] sm:$0xff]
  %v1258 = vld [vmem:[%s3 + $0x378] sm:$0xff]
  %v1259 = vld [vmem:[%s3 + $0x380] sm:$0xff]
  %v1260 = vld [vmem:[%s3 + $0x388] sm:$0xff]
  %v1261 = vld [vmem:[%s3 + $0x390] sm:$0xff]
  %v1262 = vld [vmem:[%s3 + $0x398] sm:$0xff]
  %v1263 = vld [vmem:[%s3 + $0x3a0] sm:$0xff]
  %v1264 = vld [vmem:[%s3 + $0x3a8] sm:$0xff]
  %v1265 = vld [vmem:[%s3 + $0x3b0] sm:$0xff]
  %v1266 = vld [vmem:[%s3 + $0x3b8] sm:$0xff]
  %v1267 = vld [vmem:[%s3 + $0x3c0] sm:$0xff]
  %v1268 = vld [vmem:[%s3 + $0x3c8] sm:$0xff]
  %v1269 = vld [vmem:[%s3 + $0x3d0] sm:$0xff]
  %v1270 = vld [vmem:[%s3 + $0x3d8] sm:$0xff]
  %v1271 = vld [vmem:[%s3 + $0x3e0] sm:$0xff]
  %v1272 = vld [vmem:[%s3 + $0x3e8] sm:$0xff]
  %v1273 = vld [vmem:[%s3 + $0x3f0] sm:$0xff]
  %v1274 = vld [vmem:[%s3 + $0x3f8] sm:$0xff]
  %v1275 = vld [vmem:[%s4] sm:$0xff]
  %v1276 = vld [vmem:[%s4 + $0x8] sm:$0xff]
  %v1277 = vld [vmem:[%s4 + $0x10] sm:$0xff]
  %v1278 = vld [vmem:[%s4 + $0x18] sm:$0xff]
  %v1279 = vld [vmem:[%s4 + $0x20] sm:$0xff]
  %v1280 = vld [vmem:[%s4 + $0x28] sm:$0xff]
  %v1281 = vld [vmem:[%s4 + $0x30] sm:$0xff]
  %v1282 = vld [vmem:[%s4 + $0x38] sm:$0xff]
  %v1283 = vld [vmem:[%s4 + $0x40] sm:$0xff]
  %v1284 = vld [vmem:[%s4 + $0x48] sm:$0xff]
  %v1285 = vld [vmem:[%s4 + $0x50] sm:$0xff]
  %v1286 = vld [vmem:[%s4 + $0x58] sm:$0xff]
  %v1287 = vld [vmem:[%s4 + $0x60] sm:$0xff]
  %v1288 = vld [vmem:[%s4 + $0x68] sm:$0xff]
  %v1289 = vld [vmem:[%s4 + $0x70] sm:$0xff]
  %v1290 = vld [vmem:[%s4 + $0x78] sm:$0xff]
  %v1291 = vld [vmem:[%s4 + $0x80] sm:$0xff]
  %v1292 = vld [vmem:[%s4 + $0x88] sm:$0xff]
  %v1293 = vld [vmem:[%s4 + $0x90] sm:$0xff]
  %v1294 = vld [vmem:[%s4 + $0x98] sm:$0xff]
  %v1295 = vld [vmem:[%s4 + $0xa0] sm:$0xff]
  %v1296 = vld [vmem:[%s4 + $0xa8] sm:$0xff]
  %v1297 = vld [vmem:[%s4 + $0xb0] sm:$0xff]
  %v1298 = vld [vmem:[%s4 + $0xb8] sm:$0xff]
  %v1299 = vld [vmem:[%s4 + $0xc0] sm:$0xff]
  %v1300 = vld [vmem:[%s4 + $0xc8] sm:$0xff]
  %v1301 = vld [vmem:[%s4 + $0xd0] sm:$0xff]
  %v1302 = vld [vmem:[%s4 + $0xd8] sm:$0xff]
  %v1303 = vld [vmem:[%s4 + $0xe0] sm:$0xff]
  %v1304 = vld [vmem:[%s4 + $0xe8] sm:$0xff]
  %v1305 = vld [vmem:[%s4 + $0xf0] sm:$0xff]
  %v1306 = vld [vmem:[%s4 + $0xf8] sm:$0xff]
  %1308 = vset.pattern.permute.xlu0 0
  %1309 = vperm.xlu0 %1308, %v1275
  %v1310 = vpop.permute.xlu0 %1309
  %1313 = vset.pattern.permute.xlu0 0
  %1314 = vperm.xlu0 %1313, %v1276
  %v1315 = vpop.permute.xlu0 %1314
  %1318 = vset.pattern.permute.xlu0 0
  %1319 = vperm.xlu0 %1318, %v1277
  %v1320 = vpop.permute.xlu0 %1319
  %1323 = vset.pattern.permute.xlu0 0
  %1324 = vperm.xlu0 %1323, %v1278
  %v1325 = vpop.permute.xlu0 %1324
  %1328 = vset.pattern.permute.xlu0 0
  %1329 = vperm.xlu0 %1328, %v1279
  %v1330 = vpop.permute.xlu0 %1329
  %1333 = vset.pattern.permute.xlu0 0
  %1334 = vperm.xlu0 %1333, %v1280
  %v1335 = vpop.permute.xlu0 %1334
  %1338 = vset.pattern.permute.xlu0 0
  %1339 = vperm.xlu0 %1338, %v1281
  %v1340 = vpop.permute.xlu0 %1339
  %1343 = vset.pattern.permute.xlu0 0
  %1344 = vperm.xlu0 %1343, %v1282
  %v1345 = vpop.permute.xlu0 %1344
  %1348 = vset.pattern.permute.xlu0 0
  %1349 = vperm.xlu0 %1348, %v1283
  %v1350 = vpop.permute.xlu0 %1349
  %1353 = vset.pattern.permute.xlu0 0
  %1354 = vperm.xlu0 %1353, %v1284
  %v1355 = vpop.permute.xlu0 %1354
  %1358 = vset.pattern.permute.xlu0 0
  %1359 = vperm.xlu0 %1358, %v1285
  %v1360 = vpop.permute.xlu0 %1359
  %1363 = vset.pattern.permute.xlu0 0
  %1364 = vperm.xlu0 %1363, %v1286
  %v1365 = vpop.permute.xlu0 %1364
  %1368 = vset.pattern.permute.xlu0 0
  %1369 = vperm.xlu0 %1368, %v1287
  %v1370 = vpop.permute.xlu0 %1369
  %1373 = vset.pattern.permute.xlu0 0
  %1374 = vperm.xlu0 %1373, %v1288
  %v1375 = vpop.permute.xlu0 %1374
  %1378 = vset.pattern.permute.xlu0 0
  %1379 = vperm.xlu0 %1378, %v1289
  %v1380 = vpop.permute.xlu0 %1379
  %1383 = vset.pattern.permute.xlu0 0
  %1384 = vperm.xlu0 %1383, %v1290
  %v1385 = vpop.permute.xlu0 %1384
  %1388 = vset.pattern.permute.xlu0 0
  %1389 = vperm.xlu0 %1388, %v1291
  %v1390 = vpop.permute.xlu0 %1389
  %1393 = vset.pattern.permute.xlu0 0
  %1394 = vperm.xlu0 %1393, %v1292
  %v1395 = vpop.permute.xlu0 %1394
  %1398 = vset.pattern.permute.xlu0 0
  %1399 = vperm.xlu0 %1398, %v1293
  %v1400 = vpop.permute.xlu0 %1399
  %1403 = vset.pattern.permute.xlu0 0
  %1404 = vperm.xlu0 %1403, %v1294
  %v1405 = vpop.permute.xlu0 %1404
  %1408 = vset.pattern.permute.xlu0 0
  %1409 = vperm.xlu0 %1408, %v1295
  %v1410 = vpop.permute.xlu0 %1409
  %1413 = vset.pattern.permute.xlu0 0
  %1414 = vperm.xlu0 %1413, %v1296
  %v1415 = vpop.permute.xlu0 %1414
  %1418 = vset.pattern.permute.xlu0 0
  %1419 = vperm.xlu0 %1418, %v1297
  %v1420 = vpop.permute.xlu0 %1419
  %1423 = vset.pattern.permute.xlu0 0
  %1424 = vperm.xlu0 %1423, %v1298
  %v1425 = vpop.permute.xlu0 %1424
  %1428 = vset.pattern.permute.xlu0 0
  %1429 = vperm.xlu0 %1428, %v1299
  %v1430 = vpop.permute.xlu0 %1429
  %1433 = vset.pattern.permute.xlu0 0
  %1434 = vperm.xlu0 %1433, %v1300
  %v1435 = vpop.permute.xlu0 %1434
  %1438 = vset.pattern.permute.xlu0 0
  %1439 = vperm.xlu0 %1438, %v1301
  %v1440 = vpop.permute.xlu0 %1439
  %1443 = vset.pattern.permute.xlu0 0
  %1444 = vperm.xlu0 %1443, %v1302
  %v1445 = vpop.permute.xlu0 %1444
  %1448 = vset.pattern.permute.xlu0 0
  %1449 = vperm.xlu0 %1448, %v1303
  %v1450 = vpop.permute.xlu0 %1449
  %1453 = vset.pattern.permute.xlu0 0
  %1454 = vperm.xlu0 %1453, %v1304
  %v1455 = vpop.permute.xlu0 %1454
  %1458 = vset.pattern.permute.xlu0 0
  %1459 = vperm.xlu0 %1458, %v1305
  %v1460 = vpop.permute.xlu0 %1459
  %1463 = vset.pattern.permute.xlu0 0
  %1464 = vperm.xlu0 %1463, %v1306
  %v1465 = vpop.permute.xlu0 %1464
  %1467 = vmatprep.subr.mxu0 0.0
  %1468 = vmatpush1.msra.mxu0 %v1083
  %1469 = vmatprep.subr.mxu0 0.0
  %1470 = vmatpush1.msra.mxu0 %v1084
  %1471 = vmatprep.subr.mxu0 0.0
  %1472 = vmatpush1.msra.mxu0 %v1085
  %1473 = vmatprep.subr.mxu0 0.0
  %1474 = vmatpush1.msra.mxu0 %v1086
  %1475 = vmatprep.subr.mxu0 0.0
  %1476 = vmatpush1.msra.mxu0 %v1087
  %1477 = vmatprep.subr.mxu0 0.0
  %1478 = vmatpush1.msra.mxu0 %v1088
  %1479 = vmatprep.subr.mxu0 0.0
  %1480 = vmatpush1.msra.mxu0 %v1089
  %1481 = vmatprep.subr.mxu0 0.0
  %1482 = vmatpush1.msra.mxu0 %v1090
  %1483 = vmatprep.subr.mxu0 0.0
  %1484 = vmatpush1.msra.mxu0 %v1091
  %1485 = vmatprep.subr.mxu0 0.0
  %1486 = vmatpush1.msra.mxu0 %v1092
  %1487 = vmatprep.subr.mxu0 0.0
  %1488 = vmatpush1.msra.mxu0 %v1093
  %1489 = vmatprep.subr.mxu0 0.0
  %1490 = vmatpush1.msra.mxu0 %v1094
  %1491 = vmatprep.subr.mxu0 0.0
  %1492 = vmatpush1.msra.mxu0 %v1095
  %1493 = vmatprep.subr.mxu0 0.0
  %1494 = vmatpush1.msra.mxu0 %v1096
  %1495 = vmatprep.subr.mxu0 0.0
  %1496 = vmatpush1.msra.mxu0 %v1097
  %1497 = vmatprep.subr.mxu0 0.0
  %1498 = vmatpush1.msra.mxu0 %v1098
  %1499 = vmatprep.subr.mxu0 0.0
  %1500 = vmatpush1.msra.mxu0 %v1099
  %1501 = vmatprep.subr.mxu0 0.0
  %1502 = vmatpush1.msra.mxu0 %v1100
  %1503 = vmatprep.subr.mxu0 0.0
  %1504 = vmatpush1.msra.mxu0 %v1101
  %1505 = vmatprep.subr.mxu0 0.0
  %1506 = vmatpush1.msra.mxu0 %v1102
  %1507 = vmatprep.subr.mxu0 0.0
  %1508 = vmatpush1.msra.mxu0 %v1103
  %1509 = vmatprep.subr.mxu0 0.0
  %1510 = vmatpush1.msra.mxu0 %v1104
  %1511 = vmatprep.subr.mxu0 0.0
  %1512 = vmatpush1.msra.mxu0 %v1105
  %1513 = vmatprep.subr.mxu0 0.0
  %1514 = vmatpush1.msra.mxu0 %v1106
  %1515 = vmatprep.subr.mxu0 0.0
  %1516 = vmatpush1.msra.mxu0 %v1107
  %1517 = vmatprep.subr.mxu0 0.0
  %1518 = vmatpush1.msra.mxu0 %v1108
  %1519 = vmatprep.subr.mxu0 0.0
  %1520 = vmatpush1.msra.mxu0 %v1109
  %1521 = vmatprep.subr.mxu0 0.0
  %1522 = vmatpush1.msra.mxu0 %v1110
  %1523 = vmatprep.subr.mxu0 0.0
  %1524 = vmatpush1.msra.mxu0 %v1111
  %1525 = vmatprep.subr.mxu0 0.0
  %1526 = vmatpush1.msra.mxu0 %v1112
  %1527 = vmatprep.subr.mxu0 0.0
  %1528 = vmatpush1.msra.mxu0 %v1113
  %1529 = vmatprep.subr.mxu0 0.0
  %1530 = vmatpush1.msra.mxu0 %v1114
  %1531 = vmatprep.mubr.f32.mxu0 %v1148
  %1532 = vmatmul.mubr.f32.gmra.mrb[0].mxu0 %v1147
  %v1533 = vpop.f32.mrb[0].mxu0
  %v1534 = vadd.f32 %v1310, %v1533
  %v1535 = vpop.f32.mrb[0].mxu0
  %1536 = vmatprep.mubr.f32.mxu0 %v1152
  %1537 = vmatmul.mubr.f32.gmra.mrb[0].mxu0 %v1151
  %v1538 = vpop.f32.mrb[0].mxu0
  %v1539 = vadd.f32 %v1315, %v1538
  %v1540 = vpop.f32.mrb[0].mxu0
  %1541 = vmatprep.mubr.f32.mxu0 %v1156
  %1542 = vmatmul.mubr.f32.gmra.mrb[0].mxu0 %v1155
  %v1543 = vpop.f32.mrb[0].mxu0
  %v1544 = vadd.f32 %v1320, %v1543
  %v1545 = vpop.f32.mrb[0].mxu0
  %1546 = vmatprep.mubr.f32.mxu0 %v1160
  %1547 = vmatmul.mubr.f32.gmra.mrb[0].mxu0 %v1159
  %v1548 = vpop.f32.mrb[0].mxu0
  %v1549 = vadd.f32 %v1325, %v1548
  %v1550 = vpop.f32.mrb[0].mxu0
  %1551 = vmatprep.mubr.f32.mxu0 %v1164
  %1552 = vmatmul.mubr.f32.gmra.mrb[0].mxu0 %v1163
  %v1553 = vpop.f32.mrb[0].mxu0
  %v1554 = vadd.f32 %v1330, %v1553
  %v1555 = vpop.f32.mrb[0].mxu0
  %1556 = vmatprep.mubr.f32.mxu0 %v1168
  %1557 = vmatmul.mubr.f32.gmra.mrb[0].mxu0 %v1167
  %v1558 = vpop.f32.mrb[0].mxu0
  %v1559 = vadd.f32 %v1335, %v1558
  %v1560 = vpop.f32.mrb[0].mxu0
  %1561 = vmatprep.mubr.f32.mxu0 %v1172
  %1562 = vmatmul.mubr.f32.gmra.mrb[0].mxu0 %v1171
  %v1563 = vpop.f32.mrb[0].mxu0
  %v1564 = vadd.f32 %v1340, %v1563
  %v1565 = vpop.f32.mrb[0].mxu0
  %1566 = vmatprep.mubr.f32.mxu0 %v1176
  %1567 = vmatmul.mubr.f32.gmra.mrb[0].mxu0 %v1175
  %v1568 = vpop.f32.mrb[0].mxu0
  %v1569 = vadd.f32 %v1345, %v1568
  %v1570 = vpop.f32.mrb[0].mxu0
  %1571 = vmatprep.mubr.f32.mxu0 %v1180
  %1572 = vmatmul.mubr.f32.gmra.mrb[0].mxu0 %v1179
  %v1573 = vpop.f32.mrb[0].mxu0
  %v1574 = vadd.f32 %v1350, %v1573
  %v1575 = vpop.f32.mrb[0].mxu0
  %1576 = vmatprep.mubr.f32.mxu0 %v1184
  %1577 = vmatmul.mubr.f32.gmra.mrb[0].mxu0 %v1183
  %v1578 = vpop.f32.mrb[0].mxu0
  %v1579 = vadd.f32 %v1355, %v1578
  %v1580 = vpop.f32.mrb[0].mxu0
  %1581 = vmatprep.mubr.f32.mxu0 %v1188
  %1582 = vmatmul.mubr.f32.gmra.mrb[0].mxu0 %v1187
  %v1583 = vpop.f32.mrb[0].mxu0
  %v1584 = vadd.f32 %v1360, %v1583
  %v1585 = vpop.f32.mrb[0].mxu0
  %1586 = vmatprep.mubr.f32.mxu0 %v1192
  %1587 = vmatmul.mubr.f32.gmra.mrb[0].mxu0 %v1191
  %v1588 = vpop.f32.mrb[0].mxu0
  %v1589 = vadd.f32 %v1365, %v1588
  %v1590 = vpop.f32.mrb[0].mxu0
  %1591 = vmatprep.mubr.f32.mxu0 %v1196
  %1592 = vmatmul.mubr.f32.gmra.mrb[0].mxu0 %v1195
  %v1593 = vpop.f32.mrb[0].mxu0
  %v1594 = vadd.f32 %v1370, %v1593
  %v1595 = vpop.f32.mrb[0].mxu0
  %1596 = vmatprep.mubr.f32.mxu0 %v1200
  %1597 = vmatmul.mubr.f32.gmra.mrb[0].mxu0 %v1199
  %v1598 = vpop.f32.mrb[0].mxu0
  %v1599 = vadd.f32 %v1375, %v1598
  %v1600 = vpop.f32.mrb[0].mxu0
  %1601 = vmatprep.mubr.f32.mxu0 %v1204
  %1602 = vmatmul.mubr.f32.gmra.mrb[0].mxu0 %v1203
  %v1603 = vpop.f32.mrb[0].mxu0
  %v1604 = vadd.f32 %v1380, %v1603
  %v1605 = vpop.f32.mrb[0].mxu0
  %1606 = vmatprep.mubr.f32.mxu0 %v1208
  %1607 = vmatmul.mubr.f32.gmra.mrb[0].mxu0 %v1207
  %v1608 = vpop.f32.mrb[0].mxu0
  %v1609 = vadd.f32 %v1385, %v1608
  %v1610 = vpop.f32.mrb[0].mxu0
  %1611 = vmatprep.mubr.f32.mxu0 %v1212
  %1612 = vmatmul.mubr.f32.gmra.mrb[0].mxu0 %v1211
  %v1613 = vpop.f32.mrb[0].mxu0
  %v1614 = vadd.f32 %v1390, %v1613
  %v1615 = vpop.f32.mrb[0].mxu0
  %1616 = vmatprep.mubr.f32.mxu0 %v1216
  %1617 = vmatmul.mubr.f32.gmra.mrb[0].mxu0 %v1215
  %v1618 = vpop.f32.mrb[0].mxu0
  %v1619 = vadd.f32 %v1395, %v1618
  %v1620 = vpop.f32.mrb[0].mxu0
  %1621 = vmatprep.mubr.f32.mxu0 %v1220
  %1622 = vmatmul.mubr.f32.gmra.mrb[0].mxu0 %v1219
  %v1623 = vpop.f32.mrb[0].mxu0
  %v1624 = vadd.f32 %v1400, %v1623
  %v1625 = vpop.f32.mrb[0].mxu0
  %1626 = vmatprep.mubr.f32.mxu0 %v1224
  %1627 = vmatmul.mubr.f32.gmra.mrb[0].mxu0 %v1223
  %v1628 = vpop.f32.mrb[0].mxu0
  %v1629 = vadd.f32 %v1405, %v1628
  %v1630 = vpop.f32.mrb[0].mxu0
  %1631 = vmatprep.mubr.f32.mxu0 %v1228
  %1632 = vmatmul.mubr.f32.gmra.mrb[0].mxu0 %v1227
  %v1633 = vpop.f32.mrb[0].mxu0
  %v1634 = vadd.f32 %v1410, %v1633
  %v1635 = vpop.f32.mrb[0].mxu0
  %1636 = vmatprep.mubr.f32.mxu0 %v1232
  %1637 = vmatmul.mubr.f32.gmra.mrb[0].mxu0 %v1231
  %v1638 = vpop.f32.mrb[0].mxu0
  %v1639 = vadd.f32 %v1415, %v1638
  %v1640 = vpop.f32.mrb[0].mxu0
  %1641 = vmatprep.mubr.f32.mxu0 %v1236
  %1642 = vmatmul.mubr.f32.gmra.mrb[0].mxu0 %v1235
  %v1643 = vpop.f32.mrb[0].mxu0
  %v1644 = vadd.f32 %v1420, %v1643
  %v1645 = vpop.f32.mrb[0].mxu0
  %1646 = vmatprep.mubr.f32.mxu0 %v1240
  %1647 = vmatmul.mubr.f32.gmra.mrb[0].mxu0 %v1239
  %v1648 = vpop.f32.mrb[0].mxu0
  %v1649 = vadd.f32 %v1425, %v1648
  %v1650 = vpop.f32.mrb[0].mxu0
  %1651 = vmatprep.mubr.f32.mxu0 %v1244
  %1652 = vmatmul.mubr.f32.gmra.mrb[0].mxu0 %v1243
  %v1653 = vpop.f32.mrb[0].mxu0
  %v1654 = vadd.f32 %v1430, %v1653
  %v1655 = vpop.f32.mrb[0].mxu0
  %1656 = vmatprep.mubr.f32.mxu0 %v1248
  %1657 = vmatmul.mubr.f32.gmra.mrb[0].mxu0 %v1247
  %v1658 = vpop.f32.mrb[0].mxu0
  %v1659 = vadd.f32 %v1435, %v1658
  %v1660 = vpop.f32.mrb[0].mxu0
  %1661 = vmatprep.mubr.f32.mxu0 %v1252
  %1662 = vmatmul.mubr.f32.gmra.mrb[0].mxu0 %v1251
  %v1663 = vpop.f32.mrb[0].mxu0
  %v1664 = vadd.f32 %v1440, %v1663
  %v1665 = vpop.f32.mrb[0].mxu0
  %1666 = vmatprep.mubr.f32.mxu0 %v1256
  %1667 = vmatmul.mubr.f32.gmra.mrb[0].mxu0 %v1255
  %v1668 = vpop.f32.mrb[0].mxu0
  %v1669 = vadd.f32 %v1445, %v1668
  %v1670 = vpop.f32.mrb[0].mxu0
  %1671 = vmatprep.mubr.f32.mxu0 %v1260
  %1672 = vmatmul.mubr.f32.gmra.mrb[0].mxu0 %v1259
  %v1673 = vpop.f32.mrb[0].mxu0
  %v1674 = vadd.f32 %v1450, %v1673
  %v1675 = vpop.f32.mrb[0].mxu0
  %1676 = vmatprep.mubr.f32.mxu0 %v1264
  %1677 = vmatmul.mubr.f32.gmra.mrb[0].mxu0 %v1263
  %v1678 = vpop.f32.mrb[0].mxu0
  %v1679 = vadd.f32 %v1455, %v1678
  %v1680 = vpop.f32.mrb[0].mxu0
  %1681 = vmatprep.mubr.f32.mxu0 %v1268
  %1682 = vmatmul.mubr.f32.gmra.mrb[0].mxu0 %v1267
  %v1683 = vpop.f32.mrb[0].mxu0
  %v1684 = vadd.f32 %v1460, %v1683
  %v1685 = vpop.f32.mrb[0].mxu0
  %1686 = vmatprep.mubr.f32.mxu0 %v1272
  %1687 = vmatmul.mubr.f32.gmra.mrb[0].mxu0 %v1271
  %v1688 = vpop.f32.mrb[0].mxu0
  %v1689 = vadd.f32 %v1465, %v1688
  %v1690 = vpop.f32.mrb[0].mxu0
  %1691 = vdwg.mxu0
  %1692 = vmatprep.subr.mxu0 0.0
  %1693 = vmatpush1.msra.mxu0 %v1115
  %1694 = vmatprep.subr.mxu0 0.0
  %1695 = vmatpush1.msra.mxu0 %v1116
  %1696 = vmatprep.subr.mxu0 0.0
  %1697 = vmatpush1.msra.mxu0 %v1117
  %1698 = vmatprep.subr.mxu0 0.0
  %1699 = vmatpush1.msra.mxu0 %v1118
  %1700 = vmatprep.subr.mxu0 0.0
  %1701 = vmatpush1.msra.mxu0 %v1119
  %1702 = vmatprep.subr.mxu0 0.0
  %1703 = vmatpush1.msra.mxu0 %v1120
  %1704 = vmatprep.subr.mxu0 0.0
  %1705 = vmatpush1.msra.mxu0 %v1121
  %1706 = vmatprep.subr.mxu0 0.0
  %1707 = vmatpush1.msra.mxu0 %v1122
  %1708 = vmatprep.subr.mxu0 0.0
  %1709 = vmatpush1.msra.mxu0 %v1123
  %1710 = vmatprep.subr.mxu0 0.0
  %1711 = vmatpush1.msra.mxu0 %v1124
  %1712 = vmatprep.subr.mxu0 0.0
  %1713 = vmatpush1.msra.mxu0 %v1125
  %1714 = vmatprep.subr.mxu0 0.0
  %1715 = vmatpush1.msra.mxu0 %v1126
  %1716 = vmatprep.subr.mxu0 0.0
  %1717 = vmatpush1.msra.mxu0 %v1127
  %1718 = vmatprep.subr.mxu0 0.0
  %1719 = vmatpush1.msra.mxu0 %v1128
  %1720 = vmatprep.subr.mxu0 0.0
  %1721 = vmatpush1.msra.mxu0 %v1129
  %1722 = vmatprep.subr.mxu0 0.0
  %1723 = vmatpush1.msra.mxu0 %v1130
  %1724 = vmatprep.subr.mxu0 0.0
  %1725 = vmatpush1.msra.mxu0 %v1131
  %1726 = vmatprep.subr.mxu0 0.0
  %1727 = vmatpush1.msra.mxu0 %v1132
  %1728 = vmatprep.subr.mxu0 0.0
  %1729 = vmatpush1.msra.mxu0 %v1133
  %1730 = vmatprep.subr.mxu0 0.0
  %1731 = vmatpush1.msra.mxu0 %v1134
  %1732 = vmatprep.subr.mxu0 0.0
  %1733 = vmatpush1.msra.mxu0 %v1135
  %1734 = vmatprep.subr.mxu0 0.0
  %1735 = vmatpush1.msra.mxu0 %v1136
  %1736 = vmatprep.subr.mxu0 0.0
  %1737 = vmatpush1.msra.mxu0 %v1137
  %1738 = vmatprep.subr.mxu0 0.0
  %1739 = vmatpush1.msra.mxu0 %v1138
  %1740 = vmatprep.subr.mxu0 0.0
  %1741 = vmatpush1.msra.mxu0 %v1139
  %1742 = vmatprep.subr.mxu0 0.0
  %1743 = vmatpush1.msra.mxu0 %v1140
  %1744 = vmatprep.subr.mxu0 0.0
  %1745 = vmatpush1.msra.mxu0 %v1141
  %1746 = vmatprep.subr.mxu0 0.0
  %1747 = vmatpush1.msra.mxu0 %v1142
  %1748 = vmatprep.subr.mxu0 0.0
  %1749 = vmatpush1.msra.mxu0 %v1143
  %1750 = vmatprep.subr.mxu0 0.0
  %1751 = vmatpush1.msra.mxu0 %v1144
  %1752 = vmatprep.subr.mxu0 0.0
  %1753 = vmatpush1.msra.mxu0 %v1145
  %1754 = vmatprep.subr.mxu0 0.0
  %1755 = vmatpush1.msra.mxu0 %v1146
  %1756 = vmatprep.mubr.f32.mxu0 %v1150
  %1757 = vmatmul.mubr.f32.gmra.mrb[0].mxu0 %v1149
  %v1758 = vpop.f32.mrb[0].mxu0
  %v1759 = vadd.f32 %v1534, %v1758
  %v1760 = vpop.f32.mrb[0].mxu0
  %1761 = vmatprep.mubr.f32.mxu0 %v1154
  %1762 = vmatmul.mubr.f32.gmra.mrb[0].mxu0 %v1153
  %v1763 = vpop.f32.mrb[0].mxu0
  %v1764 = vadd.f32 %v1539, %v1763
  %v1765 = vpop.f32.mrb[0].mxu0
  %1766 = vmatprep.mubr.f32.mxu0 %v1158
  %1767 = vmatmul.mubr.f32.gmra.mrb[0].mxu0 %v1157
  %v1768 = vpop.f32.mrb[0].mxu0
  %v1769 = vadd.f32 %v1544, %v1768
  %v1770 = vpop.f32.mrb[0].mxu0
  %1771 = vmatprep.mubr.f32.mxu0 %v1162
  %1772 = vmatmul.mubr.f32.gmra.mrb[0].mxu0 %v1161
  %v1773 = vpop.f32.mrb[0].mxu0
  %v1774 = vadd.f32 %v1549, %v1773
  %v1775 = vpop.f32.mrb[0].mxu0
  %1776 = vmatprep.mubr.f32.mxu0 %v1166
  %1777 = vmatmul.mubr.f32.gmra.mrb[0].mxu0 %v1165
  %v1778 = vpop.f32.mrb[0].mxu0
  %v1779 = vadd.f32 %v1554, %v1778
  %v1780 = vpop.f32.mrb[0].mxu0
  %1781 = vmatprep.mubr.f32.mxu0 %v1170
  %1782 = vmatmul.mubr.f32.gmra.mrb[0].mxu0 %v1169
  %v1783 = vpop.f32.mrb[0].mxu0
  %v1784 = vadd.f32 %v1559, %v1783
  %v1785 = vpop.f32.mrb[0].mxu0
  %1786 = vmatprep.mubr.f32.mxu0 %v1174
  %1787 = vmatmul.mubr.f32.gmra.mrb[0].mxu0 %v1173
  %v1788 = vpop.f32.mrb[0].mxu0
  %v1789 = vadd.f32 %v1564, %v1788
  %v1790 = vpop.f32.mrb[0].mxu0
  %1791 = vmatprep.mubr.f32.mxu0 %v1178
  %1792 = vmatmul.mubr.f32.gmra.mrb[0].mxu0 %v1177
  %v1793 = vpop.f32.mrb[0].mxu0
  %v1794 = vadd.f32 %v1569, %v1793
  %v1795 = vpop.f32.mrb[0].mxu0
  %1796 = vmatprep.mubr.f32.mxu0 %v1182
  %1797 = vmatmul.mubr.f32.gmra.mrb[0].mxu0 %v1181
  %v1798 = vpop.f32.mrb[0].mxu0
  %v1799 = vadd.f32 %v1574, %v1798
  %v1800 = vpop.f32.mrb[0].mxu0
  %1801 = vmatprep.mubr.f32.mxu0 %v1186
  %1802 = vmatmul.mubr.f32.gmra.mrb[0].mxu0 %v1185
  %v1803 = vpop.f32.mrb[0].mxu0
  %v1804 = vadd.f32 %v1579, %v1803
  %v1805 = vpop.f32.mrb[0].mxu0
  %1806 = vmatprep.mubr.f32.mxu0 %v1190
  %1807 = vmatmul.mubr.f32.gmra.mrb[0].mxu0 %v1189
  %v1808 = vpop.f32.mrb[0].mxu0
  %v1809 = vadd.f32 %v1584, %v1808
  %v1810 = vpop.f32.mrb[0].mxu0
  %1811 = vmatprep.mubr.f32.mxu0 %v1194
  %1812 = vmatmul.mubr.f32.gmra.mrb[0].mxu0 %v1193
  %v1813 = vpop.f32.mrb[0].mxu0
  %v1814 = vadd.f32 %v1589, %v1813
  %v1815 = vpop.f32.mrb[0].mxu0
  %1816 = vmatprep.mubr.f32.mxu0 %v1198
  %1817 = vmatmul.mubr.f32.gmra.mrb[0].mxu0 %v1197
  %v1818 = vpop.f32.mrb[0].mxu0
  %v1819 = vadd.f32 %v1594, %v1818
  %v1820 = vpop.f32.mrb[0].mxu0
  %1821 = vmatprep.mubr.f32.mxu0 %v1202
  %1822 = vmatmul.mubr.f32.gmra.mrb[0].mxu0 %v1201
  %v1823 = vpop.f32.mrb[0].mxu0
  %v1824 = vadd.f32 %v1599, %v1823
  %v1825 = vpop.f32.mrb[0].mxu0
  %1826 = vmatprep.mubr.f32.mxu0 %v1206
  %1827 = vmatmul.mubr.f32.gmra.mrb[0].mxu0 %v1205
  %v1828 = vpop.f32.mrb[0].mxu0
  %v1829 = vadd.f32 %v1604, %v1828
  %v1830 = vpop.f32.mrb[0].mxu0
  %1831 = vmatprep.mubr.f32.mxu0 %v1210
  %1832 = vmatmul.mubr.f32.gmra.mrb[0].mxu0 %v1209
  %v1833 = vpop.f32.mrb[0].mxu0
  %v1834 = vadd.f32 %v1609, %v1833
  %v1835 = vpop.f32.mrb[0].mxu0
  %1836 = vmatprep.mubr.f32.mxu0 %v1214
  %1837 = vmatmul.mubr.f32.gmra.mrb[0].mxu0 %v1213
  %v1838 = vpop.f32.mrb[0].mxu0
  %v1839 = vadd.f32 %v1614, %v1838
  %v1840 = vpop.f32.mrb[0].mxu0
  %1841 = vmatprep.mubr.f32.mxu0 %v1218
  %1842 = vmatmul.mubr.f32.gmra.mrb[0].mxu0 %v1217
  %v1843 = vpop.f32.mrb[0].mxu0
  %v1844 = vadd.f32 %v1619, %v1843
  %v1845 = vpop.f32.mrb[0].mxu0
  %1846 = vmatprep.mubr.f32.mxu0 %v1222
  %1847 = vmatmul.mubr.f32.gmra.mrb[0].mxu0 %v1221
  %v1848 = vpop.f32.mrb[0].mxu0
  %v1849 = vadd.f32 %v1624, %v1848
  %v1850 = vpop.f32.mrb[0].mxu0
  %1851 = vmatprep.mubr.f32.mxu0 %v1226
  %1852 = vmatmul.mubr.f32.gmra.mrb[0].mxu0 %v1225
  %v1853 = vpop.f32.mrb[0].mxu0
  %v1854 = vadd.f32 %v1629, %v1853
  %v1855 = vpop.f32.mrb[0].mxu0
  %1856 = vmatprep.mubr.f32.mxu0 %v1230
  %1857 = vmatmul.mubr.f32.gmra.mrb[0].mxu0 %v1229
  %v1858 = vpop.f32.mrb[0].mxu0
  %v1859 = vadd.f32 %v1634, %v1858
  %v1860 = vpop.f32.mrb[0].mxu0
  %1861 = vmatprep.mubr.f32.mxu0 %v1234
  %1862 = vmatmul.mubr.f32.gmra.mrb[0].mxu0 %v1233
  %v1863 = vpop.f32.mrb[0].mxu0
  %v1864 = vadd.f32 %v1639, %v1863
  %v1865 = vpop.f32.mrb[0].mxu0
  %1866 = vmatprep.mubr.f32.mxu0 %v1238
  %1867 = vmatmul.mubr.f32.gmra.mrb[0].mxu0 %v1237
  %v1868 = vpop.f32.mrb[0].mxu0
  %v1869 = vadd.f32 %v1644, %v1868
  %v1870 = vpop.f32.mrb[0].mxu0
  %1871 = vmatprep.mubr.f32.mxu0 %v1242
  %1872 = vmatmul.mubr.f32.gmra.mrb[0].mxu0 %v1241
  %v1873 = vpop.f32.mrb[0].mxu0
  %v1874 = vadd.f32 %v1649, %v1873
  %v1875 = vpop.f32.mrb[0].mxu0
  %1876 = vmatprep.mubr.f32.mxu0 %v1246
  %1877 = vmatmul.mubr.f32.gmra.mrb[0].mxu0 %v1245
  %v1878 = vpop.f32.mrb[0].mxu0
  %v1879 = vadd.f32 %v1654, %v1878
  %v1880 = vpop.f32.mrb[0].mxu0
  %1881 = vmatprep.mubr.f32.mxu0 %v1250
  %1882 = vmatmul.mubr.f32.gmra.mrb[0].mxu0 %v1249
  %v1883 = vpop.f32.mrb[0].mxu0
  %v1884 = vadd.f32 %v1659, %v1883
  %v1885 = vpop.f32.mrb[0].mxu0
  %1886 = vmatprep.mubr.f32.mxu0 %v1254
  %1887 = vmatmul.mubr.f32.gmra.mrb[0].mxu0 %v1253
  %v1888 = vpop.f32.mrb[0].mxu0
  %v1889 = vadd.f32 %v1664, %v1888
  %v1890 = vpop.f32.mrb[0].mxu0
  %1891 = vmatprep.mubr.f32.mxu0 %v1258
  %1892 = vmatmul.mubr.f32.gmra.mrb[0].mxu0 %v1257
  %v1893 = vpop.f32.mrb[0].mxu0
  %v1894 = vadd.f32 %v1669, %v1893
  %v1895 = vpop.f32.mrb[0].mxu0
  %1896 = vmatprep.mubr.f32.mxu0 %v1262
  %1897 = vmatmul.mubr.f32.gmra.mrb[0].mxu0 %v1261
  %v1898 = vpop.f32.mrb[0].mxu0
  %v1899 = vadd.f32 %v1674, %v1898
  %v1900 = vpop.f32.mrb[0].mxu0
  %1901 = vmatprep.mubr.f32.mxu0 %v1266
  %1902 = vmatmul.mubr.f32.gmra.mrb[0].mxu0 %v1265
  %v1903 = vpop.f32.mrb[0].mxu0
  %v1904 = vadd.f32 %v1679, %v1903
  %v1905 = vpop.f32.mrb[0].mxu0
  %1906 = vmatprep.mubr.f32.mxu0 %v1270
  %1907 = vmatmul.mubr.f32.gmra.mrb[0].mxu0 %v1269
  %v1908 = vpop.f32.mrb[0].mxu0
  %v1909 = vadd.f32 %v1684, %v1908
  %v1910 = vpop.f32.mrb[0].mxu0
  %1911 = vmatprep.mubr.f32.mxu0 %v1274
  %1912 = vmatmul.mubr.f32.gmra.mrb[0].mxu0 %v1273
  %v1913 = vpop.f32.mrb[0].mxu0
  %v1914 = vadd.f32 %v1689, %v1913
  %v1915 = vpop.f32.mrb[0].mxu0
  %1916 = vdwg.mxu0
  %v1917 = vmax.f32 %v1759, 0.0
  %v1918 = vmax.f32 %v1764, 0.0
  %v1919 = vmax.f32 %v1769, 0.0
  %v1920 = vmax.f32 %v1774, 0.0
  %v1921 = vmax.f32 %v1779, 0.0
  %v1922 = vmax.f32 %v1784, 0.0
  %v1923 = vmax.f32 %v1789, 0.0
  %v1924 = vmax.f32 %v1794, 0.0
  %v1925 = vmax.f32 %v1799, 0.0
  %v1926 = vmax.f32 %v1804, 0.0
  %v1927 = vmax.f32 %v1809, 0.0
  %v1928 = vmax.f32 %v1814, 0.0
  %v1929 = vmax.f32 %v1819, 0.0
  %v1930 = vmax.f32 %v1824, 0.0
  %v1931 = vmax.f32 %v1829, 0.0
  %v1932 = vmax.f32 %v1834, 0.0
  %v1933 = vmax.f32 %v1839, 0.0
  %v1934 = vmax.f32 %v1844, 0.0
  %v1935 = vmax.f32 %v1849, 0.0
  %v1936 = vmax.f32 %v1854, 0.0
  %v1937 = vmax.f32 %v1859, 0.0
  %v1938 = vmax.f32 %v1864, 0.0
  %v1939 = vmax.f32 %v1869, 0.0
  %v1940 = vmax.f32 %v1874, 0.0
  %v1941 = vmax.f32 %v1879, 0.0
  %v1942 = vmax.f32 %v1884, 0.0
  %v1943 = vmax.f32 %v1889, 0.0
  %v1944 = vmax.f32 %v1894, 0.0
  %v1945 = vmax.f32 %v1899, 0.0
  %v1946 = vmax.f32 %v1904, 0.0
  %v1947 = vmax.f32 %v1909, 0.0
  %v1948 = vmax.f32 %v1914, 0.0
  %v1949 = vld [vmem:[%s5] sm:$0xff]
  %v1950 = vld [vmem:[%s5 + $0x8] sm:$0xff]
  %v1951 = vld [vmem:[%s5 + $0x10] sm:$0xff]
  %v1952 = vld [vmem:[%s5 + $0x18] sm:$0xff]
  %v1953 = vld [vmem:[%s5 + $0x20] sm:$0xff]
  %v1954 = vld [vmem:[%s5 + $0x28] sm:$0xff]
  %v1955 = vld [vmem:[%s5 + $0x30] sm:$0xff]
  %v1956 = vld [vmem:[%s5 + $0x38] sm:$0xff]
  %v1957 = vld [vmem:[%s6] sm:$0xff]
  %v1958 = vld [vmem:[%s6 + $0x8] sm:$0xff]
  %v1959 = vld [vmem:[%s6 + $0x10] sm:$0xff]
  %v1960 = vld [vmem:[%s6 + $0x18] sm:$0xff]
  %1962 = vset.pattern.permute.xlu0 0
  %1963 = vperm.xlu0 %1962, %v1957
  %v1964 = vpop.permute.xlu0 %1963
  %1967 = vset.pattern.permute.xlu0 0
  %1968 = vperm.xlu0 %1967, %v1958
  %v1969 = vpop.permute.xlu0 %1968
  %1972 = vset.pattern.permute.xlu0 0
  %1973 = vperm.xlu0 %1972, %v1959
  %v1974 = vpop.permute.xlu0 %1973
  %1977 = vset.pattern.permute.xlu0 0
  %1978 = vperm.xlu0 %1977, %v1960
  %v1979 = vpop.permute.xlu0 %1978
  %1981 = vmatprep.subr.mxu0 0.0
  %1982 = vmatpush1.msra.mxu0 %v1917
  %1983 = vmatprep.subr.mxu0 0.0
  %1984 = vmatpush1.msra.mxu0 %v1918
  %1985 = vmatprep.subr.mxu0 0.0
  %1986 = vmatpush1.msra.mxu0 %v1919
  %1987 = vmatprep.subr.mxu0 0.0
  %1988 = vmatpush1.msra.mxu0 %v1920
  %1989 = vmatprep.subr.mxu0 0.0
  %1990 = vmatpush1.msra.mxu0 %v1921
  %1991 = vmatprep.subr.mxu0 0.0
  %1992 = vmatpush1.msra.mxu0 %v1922
  %1993 = vmatprep.subr.mxu0 0.0
  %1994 = vmatpush1.msra.mxu0 %v1923
  %1995 = vmatprep.subr.mxu0 0.0
  %1996 = vmatpush1.msra.mxu0 %v1924
  %1997 = vmatprep.subr.mxu0 0.0
  %1998 = vmatpush1.msra.mxu0 %v1925
  %1999 = vmatprep.subr.mxu0 0.0
  %2000 = vmatpush1.msra.mxu0 %v1926
  %2001 = vmatprep.subr.mxu0 0.0
  %2002 = vmatpush1.msra.mxu0 %v1927
  %2003 = vmatprep.subr.mxu0 0.0
  %2004 = vmatpush1.msra.mxu0 %v1928
  %2005 = vmatprep.subr.mxu0 0.0
  %2006 = vmatpush1.msra.mxu0 %v1929
  %2007 = vmatprep.subr.mxu0 0.0
  %2008 = vmatpush1.msra.mxu0 %v1930
  %2009 = vmatprep.subr.mxu0 0.0
  %2010 = vmatpush1.msra.mxu0 %v1931
  %2011 = vmatprep.subr.mxu0 0.0
  %2012 = vmatpush1.msra.mxu0 %v1932
  %2013 = vmatprep.subr.mxu0 0.0
  %2014 = vmatpush1.msra.mxu0 %v1933
  %2015 = vmatprep.subr.mxu0 0.0
  %2016 = vmatpush1.msra.mxu0 %v1934
  %2017 = vmatprep.subr.mxu0 0.0
  %2018 = vmatpush1.msra.mxu0 %v1935
  %2019 = vmatprep.subr.mxu0 0.0
  %2020 = vmatpush1.msra.mxu0 %v1936
  %2021 = vmatprep.subr.mxu0 0.0
  %2022 = vmatpush1.msra.mxu0 %v1937
  %2023 = vmatprep.subr.mxu0 0.0
  %2024 = vmatpush1.msra.mxu0 %v1938
  %2025 = vmatprep.subr.mxu0 0.0
  %2026 = vmatpush1.msra.mxu0 %v1939
  %2027 = vmatprep.subr.mxu0 0.0
  %2028 = vmatpush1.msra.mxu0 %v1940
  %2029 = vmatprep.subr.mxu0 0.0
  %2030 = vmatpush1.msra.mxu0 %v1941
  %2031 = vmatprep.subr.mxu0 0.0
  %2032 = vmatpush1.msra.mxu0 %v1942
  %2033 = vmatprep.subr.mxu0 0.0
  %2034 = vmatpush1.msra.mxu0 %v1943
  %2035 = vmatprep.subr.mxu0 0.0
  %2036 = vmatpush1.msra.mxu0 %v1944
  %2037 = vmatprep.subr.mxu0 0.0
  %2038 = vmatpush1.msra.mxu0 %v1945
  %2039 = vmatprep.subr.mxu0 0.0
  %2040 = vmatpush1.msra.mxu0 %v1946
  %2041 = vmatprep.subr.mxu0 0.0
  %2042 = vmatpush1.msra.mxu0 %v1947
  %2043 = vmatprep.subr.mxu0 0.0
  %2044 = vmatpush1.msra.mxu0 %v1948
  %2045 = vmatprep.mubr.f32.mxu0 %v1950
  %2046 = vmatmul.mubr.f32.gmra.mrb[0].mxu0 %v1949
  %v2047 = vpop.f32.mrb[0].mxu0
  %v2048 = vadd.f32 %v1964, %v2047
  %v2049 = vpop.f32.mrb[0].mxu0
  %2050 = vmatprep.mubr.f32.mxu0 %v1952
  %2051 = vmatmul.mubr.f32.gmra.mrb[0].mxu0 %v1951
  %v2052 = vpop.f32.mrb[0].mxu0
  %v2053 = vadd.f32 %v1969, %v2052
  %v2054 = vpop.f32.mrb[0].mxu0
  %2055 = vmatprep.mubr.f32.mxu0 %v1954
  %2056 = vmatmul.mubr.f32.gmra.mrb[0].mxu0 %v1953
  %v2057 = vpop.f32.mrb[0].mxu0
  %v2058 = vadd.f32 %v1974, %v2057
  %v2059 = vpop.f32.mrb[0].mxu0
  %2060 = vmatprep.mubr.f32.mxu0 %v1956
  %2061 = vmatmul.mubr.f32.gmra.mrb[0].mxu0 %v1955
  %v2062 = vpop.f32.mrb[0].mxu0
  %v2063 = vadd.f32 %v1979, %v2062
  %v2064 = vpop.f32.mrb[0].mxu0
  %2065 = vdwg.mxu0
  %v2066 = vld [vmem:[%s7] sm:$0xff]
  %v2067 = vld [vmem:[%s7 + $0x8] sm:$0xff]
  %v2068 = vld [vmem:[%s7 + $0x10] sm:$0xff]
  %v2069 = vld [vmem:[%s7 + $0x18] sm:$0xff]
  %v2070 = vld [vmem:[%s7 + $0x20] sm:$0xff]
  %v2071 = vld [vmem:[%s7 + $0x28] sm:$0xff]
  %v2072 = vld [vmem:[%s7 + $0x30] sm:$0xff]
  %v2073 = vld [vmem:[%s7 + $0x38] sm:$0xff]
  %v2074 = vld [vmem:[%s7 + $0x40] sm:$0xff]
  %v2075 = vld [vmem:[%s7 + $0x48] sm:$0xff]
  %v2076 = vld [vmem:[%s8] sm:$0xff]
  %v2077 = vld [vmem:[%s8 + $0x8] sm:$0xff]
  %v2078 = vld [vmem:[%s8 + $0x10] sm:$0xff]
  %v2079 = vld [vmem:[%s8 + $0x18] sm:$0xff]
  %v2080 = vld [vmem:[%s8 + $0x20] sm:$0xff]
  %v2081 = vld [vmem:[%s8 + $0x28] sm:$0xff]
  %v2082 = vld [vmem:[%s8 + $0x30] sm:$0xff]
  %v2083 = vld [vmem:[%s8 + $0x38] sm:$0xff]
  %v2084 = vld [vmem:[%s8 + $0x40] sm:$0xff]
  %v2085 = vld [vmem:[%s8 + $0x48] sm:$0xff]
  %vm2086 = vcmask 261120
  %v2088 = vsel %vm2086, %v2076, 0
  %v2091 = vsel %vm2086, %v2077, 0
  %v2094 = vsel %vm2086, %v2078, 0
  %v2097 = vsel %vm2086, %v2079, 0
  %v2100 = vsel %vm2086, %v2080, 0
  %v2103 = vsel %vm2086, %v2081, 0
  %v2106 = vsel %vm2086, %v2082, 0
  %v2109 = vsel %vm2086, %v2083, 0
  %v2112 = vsel %vm2086, %v2084, 0
  %v2115 = vsel %vm2086, %v2085, 0
  %2117 = vmatprep.subr.mxu0 0.0
  %2118 = vmatpush1.msra.mxu0 %v2048
  %2119 = vmatprep.subr.mxu0 0.0
  %2120 = vmatpush1.msra.mxu0 %v2053
  %2121 = vmatprep.subr.mxu0 0.0
  %2122 = vmatpush1.msra.mxu0 %v2058
  %2123 = vmatprep.subr.mxu0 0.0
  %2124 = vmatpush1.msra.mxu0 %v2063
  %2125 = vmatprep.subr.mxu0 0.0
  %2126 = vmatpush1.msra.mxu0 0.0
  %2127 = vmatprep.subr.mxu0 0.0
  %2128 = vmatpush1.msra.mxu0 0.0
  %2129 = vmatprep.subr.mxu0 0.0
  %2130 = vmatpush1.msra.mxu0 0.0
  %2131 = vmatprep.subr.mxu0 0.0
  %2132 = vmatpush1.msra.mxu0 0.0
  %2133 = vmatprep.subr.mxu0 0.0
  %2134 = vmatpush1.msra.mxu0 0.0
  %2135 = vmatprep.subr.mxu0 0.0
  %2136 = vmatpush1.msra.mxu0 0.0
  %2137 = vmatprep.subr.mxu0 0.0
  %2138 = vmatpush1.msra.mxu0 0.0
  %2139 = vmatprep.subr.mxu0 0.0
  %2140 = vmatpush1.msra.mxu0 0.0
  %2141 = vmatprep.subr.mxu0 0.0
  %2142 = vmatpush1.msra.mxu0 0.0
  %2143 = vmatprep.subr.mxu0 0.0
  %2144 = vmatpush1.msra.mxu0 0.0
  %2145 = vmatprep.subr.mxu0 0.0
  %2146 = vmatpush1.msra.mxu0 0.0
  %2147 = vmatprep.subr.mxu0 0.0
  %2148 = vmatpush1.msra.mxu0 0.0
  %2149 = vmatprep.subr.mxu0 0.0
  %2150 = vmatpush1.msra.mxu0 0.0
  %2151 = vmatprep.subr.mxu0 0.0
  %2152 = vmatpush1.msra.mxu0 0.0
  %2153 = vmatprep.subr.mxu0 0.0
  %2154 = vmatpush1.msra.mxu0 0.0
  %2155 = vmatprep.subr.mxu0 0.0
  %2156 = vmatpush1.msra.mxu0 0.0
  %2157 = vmatprep.subr.mxu0 0.0
  %2158 = vmatpush1.msra.mxu0 0.0
  %2159 = vmatprep.subr.mxu0 0.0
  %2160 = vmatpush1.msra.mxu0 0.0
  %2161 = vmatprep.subr.mxu0 0.0
  %2162 = vmatpush1.msra.mxu0 0.0
  %2163 = vmatprep.subr.mxu0 0.0
  %2164 = vmatpush1.msra.mxu0 0.0
  %2165 = vmatprep.subr.mxu0 0.0
  %2166 = vmatpush1.msra.mxu0 0.0
  %2167 = vmatprep.subr.mxu0 0.0
  %2168 = vmatpush1.msra.mxu0 0.0
  %2169 = vmatprep.subr.mxu0 0.0
  %2170 = vmatpush1.msra.mxu0 0.0
  %2171 = vmatprep.subr.mxu0 0.0
  %2172 = vmatpush1.msra.mxu0 0.0
  %2173 = vmatprep.subr.mxu0 0.0
  %2174 = vmatpush1.msra.mxu0 0.0
  %2175 = vmatprep.subr.mxu0 0.0
  %2176 = vmatpush1.msra.mxu0 0.0
  %2177 = vmatprep.subr.mxu0 0.0
  %2178 = vmatpush1.msra.mxu0 0.0
  %2179 = vmatprep.subr.mxu0 0.0
  %2180 = vmatpush1.msra.mxu0 0.0
  %2181 = vmatprep.mubr.f32.mxu0 0.0
  %2182 = vmatmul.mubr.f32.gmra.mrb[0].mxu0 %v2088
  %v2183 = vpop.f32.mrb[0].mxu0
  %v2184 = vadd.f32 0.0, %v2183
  %v2185 = vpop.f32.mrb[0].mxu0
  %2186 = vmatprep.mubr.f32.mxu0 0.0
  %2187 = vmatmul.mubr.f32.gmra.mrb[0].mxu0 %v2091
  %v2188 = vpop.f32.mrb[0].mxu0
  %v2189 = vadd.f32 0.0, %v2188
  %v2190 = vpop.f32.mrb[0].mxu0
  %2191 = vmatprep.mubr.f32.mxu0 0.0
  %2192 = vmatmul.mubr.f32.gmra.mrb[0].mxu0 %v2094
  %v2193 = vpop.f32.mrb[0].mxu0
  %v2194 = vadd.f32 0.0, %v2193
  %v2195 = vpop.f32.mrb[0].mxu0
  %2196 = vmatprep.mubr.f32.mxu0 0.0
  %2197 = vmatmul.mubr.f32.gmra.mrb[0].mxu0 %v2097
  %v2198 = vpop.f32.mrb[0].mxu0
  %v2199 = vadd.f32 0.0, %v2198
  %v2200 = vpop.f32.mrb[0].mxu0
  %2201 = vmatprep.mubr.f32.mxu0 0.0
  %2202 = vmatmul.mubr.f32.gmra.mrb[0].mxu0 %v2100
  %v2203 = vpop.f32.mrb[0].mxu0
  %v2204 = vadd.f32 0.0, %v2203
  %v2205 = vpop.f32.mrb[0].mxu0
  %2206 = vmatprep.mubr.f32.mxu0 0.0
  %2207 = vmatmul.mubr.f32.gmra.mrb[0].mxu0 %v2103
  %v2208 = vpop.f32.mrb[0].mxu0
  %v2209 = vadd.f32 0.0, %v2208
  %v2210 = vpop.f32.mrb[0].mxu0
  %2211 = vmatprep.mubr.f32.mxu0 0.0
  %2212 = vmatmul.mubr.f32.gmra.mrb[0].mxu0 %v2106
  %v2213 = vpop.f32.mrb[0].mxu0
  %v2214 = vadd.f32 0.0, %v2213
  %v2215 = vpop.f32.mrb[0].mxu0
  %2216 = vmatprep.mubr.f32.mxu0 0.0
  %2217 = vmatmul.mubr.f32.gmra.mrb[0].mxu0 %v2109
  %v2218 = vpop.f32.mrb[0].mxu0
  %v2219 = vadd.f32 0.0, %v2218
  %v2220 = vpop.f32.mrb[0].mxu0
  %2221 = vmatprep.mubr.f32.mxu0 0.0
  %2222 = vmatmul.mubr.f32.gmra.mrb[0].mxu0 %v2112
  %v2223 = vpop.f32.mrb[0].mxu0
  %v2224 = vadd.f32 0.0, %v2223
  %v2225 = vpop.f32.mrb[0].mxu0
  %2226 = vmatprep.mubr.f32.mxu0 0.0
  %2227 = vmatmul.mubr.f32.gmra.mrb[0].mxu0 %v2115
  %v2228 = vpop.f32.mrb[0].mxu0
  %v2229 = vadd.f32 0.0, %v2228
  %v2230 = vpop.f32.mrb[0].mxu0
  %2231 = vdwg.mxu0
  %v2233 = vsel %vm501, %v2066, 0
  %v2236 = vsel %vm501, %v2067, 0
  %v2239 = vsel %vm501, %v2068, 0
  %v2242 = vsel %vm501, %v2069, 0
  %v2245 = vsel %vm501, %v2070, 0
  %v2248 = vsel %vm501, %v2071, 0
  %v2251 = vsel %vm501, %v2072, 0
  %v2254 = vsel %vm501, %v2073, 0
  %v2257 = vsel %vm501, %v2074, 0
  %v2260 = vsel %vm501, %v2075, 0
  %2262 = vmatprep.subr.mxu0 0.0
  %2263 = vmatpush1.msra.mxu0 %v47
  %2264 = vmatprep.subr.mxu0 0.0
  %2265 = vmatpush1.msra.mxu0 %v48
  %2266 = vmatprep.subr.mxu0 0.0
  %2267 = vmatpush1.msra.mxu0 %v49
  %2268 = vmatprep.subr.mxu0 0.0
  %2269 = vmatpush1.msra.mxu0 %v50
  %2270 = vmatprep.subr.mxu0 0.0
  %2271 = vmatpush1.msra.mxu0 %v51
  %2272 = vmatprep.subr.mxu0 0.0
  %2273 = vmatpush1.msra.mxu0 %v696
  %2274 = vmatprep.subr.mxu0 0.0
  %2275 = vmatpush1.msra.mxu0 0.0
  %2276 = vmatprep.subr.mxu0 0.0
  %2277 = vmatpush1.msra.mxu0 0.0
  %2278 = vmatprep.subr.mxu0 0.0
  %2279 = vmatpush1.msra.mxu0 0.0
  %2280 = vmatprep.subr.mxu0 0.0
  %2281 = vmatpush1.msra.mxu0 0.0
  %2282 = vmatprep.subr.mxu0 0.0
  %2283 = vmatpush1.msra.mxu0 0.0
  %2284 = vmatprep.subr.mxu0 0.0
  %2285 = vmatpush1.msra.mxu0 0.0
  %2286 = vmatprep.subr.mxu0 0.0
  %2287 = vmatpush1.msra.mxu0 0.0
  %2288 = vmatprep.subr.mxu0 0.0
  %2289 = vmatpush1.msra.mxu0 0.0
  %2290 = vmatprep.subr.mxu0 0.0
  %2291 = vmatpush1.msra.mxu0 0.0
  %2292 = vmatprep.subr.mxu0 0.0
  %2293 = vmatpush1.msra.mxu0 0.0
  %2294 = vmatprep.subr.mxu0 0.0
  %2295 = vmatpush1.msra.mxu0 0.0
  %2296 = vmatprep.subr.mxu0 0.0
  %2297 = vmatpush1.msra.mxu0 0.0
  %2298 = vmatprep.subr.mxu0 0.0
  %2299 = vmatpush1.msra.mxu0 0.0
  %2300 = vmatprep.subr.mxu0 0.0
  %2301 = vmatpush1.msra.mxu0 0.0
  %2302 = vmatprep.subr.mxu0 0.0
  %2303 = vmatpush1.msra.mxu0 0.0
  %2304 = vmatprep.subr.mxu0 0.0
  %2305 = vmatpush1.msra.mxu0 0.0
  %2306 = vmatprep.subr.mxu0 0.0
  %2307 = vmatpush1.msra.mxu0 0.0
  %2308 = vmatprep.subr.mxu0 0.0
  %2309 = vmatpush1.msra.mxu0 0.0
  %2310 = vmatprep.subr.mxu0 0.0
  %2311 = vmatpush1.msra.mxu0 0.0
  %2312 = vmatprep.subr.mxu0 0.0
  %2313 = vmatpush1.msra.mxu0 0.0
  %2314 = vmatprep.subr.mxu0 0.0
  %2315 = vmatpush1.msra.mxu0 0.0
  %2316 = vmatprep.subr.mxu0 0.0
  %2317 = vmatpush1.msra.mxu0 0.0
  %2318 = vmatprep.subr.mxu0 0.0
  %2319 = vmatpush1.msra.mxu0 0.0
  %2320 = vmatprep.subr.mxu0 0.0
  %2321 = vmatpush1.msra.mxu0 0.0
  %2322 = vmatprep.subr.mxu0 0.0
  %2323 = vmatpush1.msra.mxu0 0.0
  %2324 = vmatprep.subr.mxu0 0.0
  %2325 = vmatpush1.msra.mxu0 0.0
  %2326 = vmatprep.mubr.f32.mxu0 0.0
  %2327 = vmatmul.mubr.f32.gmra.mrb[0].mxu0 %v2233
  %v2328 = vpop.f32.mrb[0].mxu0
  %v2329 = vadd.f32 %v2184, %v2328
  %v2330 = vpop.f32.mrb[0].mxu0
  %2331 = vmatprep.mubr.f32.mxu0 0.0
  %2332 = vmatmul.mubr.f32.gmra.mrb[0].mxu0 %v2236
  %v2333 = vpop.f32.mrb[0].mxu0
  %v2334 = vadd.f32 %v2189, %v2333
  %v2335 = vpop.f32.mrb[0].mxu0
  %2336 = vmatprep.mubr.f32.mxu0 0.0
  %2337 = vmatmul.mubr.f32.gmra.mrb[0].mxu0 %v2239
  %v2338 = vpop.f32.mrb[0].mxu0
  %v2339 = vadd.f32 %v2194, %v2338
  %v2340 = vpop.f32.mrb[0].mxu0
  %2341 = vmatprep.mubr.f32.mxu0 0.0
  %2342 = vmatmul.mubr.f32.gmra.mrb[0].mxu0 %v2242
  %v2343 = vpop.f32.mrb[0].mxu0
  %v2344 = vadd.f32 %v2199, %v2343
  %v2345 = vpop.f32.mrb[0].mxu0
  %2346 = vmatprep.mubr.f32.mxu0 0.0
  %2347 = vmatmul.mubr.f32.gmra.mrb[0].mxu0 %v2245
  %v2348 = vpop.f32.mrb[0].mxu0
  %v2349 = vadd.f32 %v2204, %v2348
  %v2350 = vpop.f32.mrb[0].mxu0
  %2351 = vmatprep.mubr.f32.mxu0 0.0
  %2352 = vmatmul.mubr.f32.gmra.mrb[0].mxu0 %v2248
  %v2353 = vpop.f32.mrb[0].mxu0
  %v2354 = vadd.f32 %v2209, %v2353
  %v2355 = vpop.f32.mrb[0].mxu0
  %2356 = vmatprep.mubr.f32.mxu0 0.0
  %2357 = vmatmul.mubr.f32.gmra.mrb[0].mxu0 %v2251
  %v2358 = vpop.f32.mrb[0].mxu0
  %v2359 = vadd.f32 %v2214, %v2358
  %v2360 = vpop.f32.mrb[0].mxu0
  %2361 = vmatprep.mubr.f32.mxu0 0.0
  %2362 = vmatmul.mubr.f32.gmra.mrb[0].mxu0 %v2254
  %v2363 = vpop.f32.mrb[0].mxu0
  %v2364 = vadd.f32 %v2219, %v2363
  %v2365 = vpop.f32.mrb[0].mxu0
  %2366 = vmatprep.mubr.f32.mxu0 0.0
  %2367 = vmatmul.mubr.f32.gmra.mrb[0].mxu0 %v2257
  %v2368 = vpop.f32.mrb[0].mxu0
  %v2369 = vadd.f32 %v2224, %v2368
  %v2370 = vpop.f32.mrb[0].mxu0
  %2371 = vmatprep.mubr.f32.mxu0 0.0
  %2372 = vmatmul.mubr.f32.gmra.mrb[0].mxu0 %v2260
  %v2373 = vpop.f32.mrb[0].mxu0
  %v2374 = vadd.f32 %v2229, %v2373
  %v2375 = vpop.f32.mrb[0].mxu0
  %2376 = vdwg.mxu0
  %v2377 = vld [vmem:[%s9] sm:$0xff]
  %v2378 = vld [vmem:[%s9 + $0x8] sm:$0xff]
  %v2379 = vld [vmem:[%s9 + $0x10] sm:$0xff]
  %v2380 = vld [vmem:[%s9 + $0x18] sm:$0xff]
  %v2381 = vld [vmem:[%s9 + $0x20] sm:$0xff]
  %v2382 = vld [vmem:[%s9 + $0x28] sm:$0xff]
  %v2383 = vld [vmem:[%s9 + $0x30] sm:$0xff]
  %v2384 = vld [vmem:[%s9 + $0x38] sm:$0xff]
  %v2385 = vld [vmem:[%s9 + $0x40] sm:$0xff]
  %v2386 = vld [vmem:[%s9 + $0x48] sm:$0xff]
  %2388 = vset.pattern.permute.xlu0 0
  %2389 = vperm.xlu0 %2388, %v2377
  %v2390 = vpop.permute.xlu0 %2389
  %2393 = vset.pattern.permute.xlu0 0
  %2394 = vperm.xlu0 %2393, %v2378
  %v2395 = vpop.permute.xlu0 %2394
  %2398 = vset.pattern.permute.xlu0 0
  %2399 = vperm.xlu0 %2398, %v2379
  %v2400 = vpop.permute.xlu0 %2399
  %2403 = vset.pattern.permute.xlu0 0
  %2404 = vperm.xlu0 %2403, %v2380
  %v2405 = vpop.permute.xlu0 %2404
  %2408 = vset.pattern.permute.xlu0 0
  %2409 = vperm.xlu0 %2408, %v2381
  %v2410 = vpop.permute.xlu0 %2409
  %2413 = vset.pattern.permute.xlu0 0
  %2414 = vperm.xlu0 %2413, %v2382
  %v2415 = vpop.permute.xlu0 %2414
  %2418 = vset.pattern.permute.xlu0 0
  %2419 = vperm.xlu0 %2418, %v2383
  %v2420 = vpop.permute.xlu0 %2419
  %2423 = vset.pattern.permute.xlu0 0
  %2424 = vperm.xlu0 %2423, %v2384
  %v2425 = vpop.permute.xlu0 %2424
  %2428 = vset.pattern.permute.xlu0 0
  %2429 = vperm.xlu0 %2428, %v2385
  %v2430 = vpop.permute.xlu0 %2429
  %2433 = vset.pattern.permute.xlu0 0
  %2434 = vperm.xlu0 %2433, %v2386
  %v2435 = vpop.permute.xlu0 %2434
  %v2437 = vadd.f32 %v2329, %v2390
  %v2438 = vadd.f32 %v2334, %v2395
  %v2439 = vadd.f32 %v2339, %v2400
  %v2440 = vadd.f32 %v2344, %v2405
  %v2441 = vadd.f32 %v2349, %v2410
  %v2442 = vadd.f32 %v2354, %v2415
  %v2443 = vadd.f32 %v2359, %v2420
  %v2444 = vadd.f32 %v2364, %v2425
  %v2445 = vadd.f32 %v2369, %v2430
  %v2446 = vadd.f32 %v2374, %v2435
  %v2447 = vmax.f32 %v2437, 0.0
  %v2448 = vmax.f32 %v2438, 0.0
  %v2449 = vmax.f32 %v2439, 0.0
  %v2450 = vmax.f32 %v2440, 0.0
  %v2451 = vmax.f32 %v2441, 0.0
  %v2452 = vmax.f32 %v2442, 0.0
  %v2453 = vmax.f32 %v2443, 0.0
  %v2454 = vmax.f32 %v2444, 0.0
  %v2455 = vmax.f32 %v2445, 0.0
  %v2456 = vmax.f32 %v2446, 0.0
  %v2457 = vld [vmem:[%s10] sm:$0xff]
  %v2458 = vld [vmem:[%s10 + $0x8] sm:$0xff]
  %v2459 = vld [vmem:[%s10 + $0x10] sm:$0xff]
  %v2460 = vld [vmem:[%s10 + $0x18] sm:$0xff]
  %v2461 = vld [vmem:[%s10 + $0x20] sm:$0xff]
  %v2462 = vld [vmem:[%s11] sm:$0xff]
  %v2463 = vld [vmem:[%s11 + $0x8] sm:$0xff]
  %v2464 = vld [vmem:[%s11 + $0x10] sm:$0xff]
  %v2465 = vld [vmem:[%s11 + $0x18] sm:$0xff]
  %v2466 = vld [vmem:[%s11 + $0x20] sm:$0xff]
  %2468 = vset.pattern.permute.xlu0 0
  %2469 = vperm.xlu0 %2468, %v2462
  %v2470 = vpop.permute.xlu0 %2469
  %2473 = vset.pattern.permute.xlu0 0
  %2474 = vperm.xlu0 %2473, %v2463
  %v2475 = vpop.permute.xlu0 %2474
  %2478 = vset.pattern.permute.xlu0 0
  %2479 = vperm.xlu0 %2478, %v2464
  %v2480 = vpop.permute.xlu0 %2479
  %2483 = vset.pattern.permute.xlu0 0
  %2484 = vperm.xlu0 %2483, %v2465
  %v2485 = vpop.permute.xlu0 %2484
  %2488 = vset.pattern.permute.xlu0 0
  %2489 = vperm.xlu0 %2488, %v2466
  %v2490 = vpop.permute.xlu0 %2489
  %vm2492 = vcmask 654336
  %v2494 = vsel %vm2492, %v2457, 0
  %v2497 = vsel %vm2492, %v2458, 0
  %v2500 = vsel %vm2492, %v2459, 0
  %v2503 = vsel %vm2492, %v2460, 0
  %v2506 = vsel %vm2492, %v2461, 0
  %2508 = vmatprep.subr.mxu0 0.0
  %2509 = vmatpush1.msra.mxu0 %v2447
  %2510 = vmatprep.subr.mxu0 0.0
  %2511 = vmatpush1.msra.mxu0 %v2448
  %2512 = vmatprep.subr.mxu0 0.0
  %2513 = vmatpush1.msra.mxu0 %v2449
  %2514 = vmatprep.subr.mxu0 0.0
  %2515 = vmatpush1.msra.mxu0 %v2450
  %2516 = vmatprep.subr.mxu0 0.0
  %2517 = vmatpush1.msra.mxu0 %v2451
  %2518 = vmatprep.subr.mxu0 0.0
  %2519 = vmatpush1.msra.mxu0 %v2452
  %2520 = vmatprep.subr.mxu0 0.0
  %2521 = vmatpush1.msra.mxu0 %v2453
  %2522 = vmatprep.subr.mxu0 0.0
  %2523 = vmatpush1.msra.mxu0 %v2454
  %2524 = vmatprep.subr.mxu0 0.0
  %2525 = vmatpush1.msra.mxu0 %v2455
  %2526 = vmatprep.subr.mxu0 0.0
  %2527 = vmatpush1.msra.mxu0 %v2456
  %2528 = vmatprep.subr.mxu0 0.0
  %2529 = vmatpush1.msra.mxu0 0.0
  %2530 = vmatprep.subr.mxu0 0.0
  %2531 = vmatpush1.msra.mxu0 0.0
  %2532 = vmatprep.subr.mxu0 0.0
  %2533 = vmatpush1.msra.mxu0 0.0
  %2534 = vmatprep.subr.mxu0 0.0
  %2535 = vmatpush1.msra.mxu0 0.0
  %2536 = vmatprep.subr.mxu0 0.0
  %2537 = vmatpush1.msra.mxu0 0.0
  %2538 = vmatprep.subr.mxu0 0.0
  %2539 = vmatpush1.msra.mxu0 0.0
  %2540 = vmatprep.subr.mxu0 0.0
  %2541 = vmatpush1.msra.mxu0 0.0
  %2542 = vmatprep.subr.mxu0 0.0
  %2543 = vmatpush1.msra.mxu0 0.0
  %2544 = vmatprep.subr.mxu0 0.0
  %2545 = vmatpush1.msra.mxu0 0.0
  %2546 = vmatprep.subr.mxu0 0.0
  %2547 = vmatpush1.msra.mxu0 0.0
  %2548 = vmatprep.subr.mxu0 0.0
  %2549 = vmatpush1.msra.mxu0 0.0
  %2550 = vmatprep.subr.mxu0 0.0
  %2551 = vmatpush1.msra.mxu0 0.0
  %2552 = vmatprep.subr.mxu0 0.0
  %2553 = vmatpush1.msra.mxu0 0.0
  %2554 = vmatprep.subr.mxu0 0.0
  %2555 = vmatpush1.msra.mxu0 0.0
  %2556 = vmatprep.subr.mxu0 0.0
  %2557 = vmatpush1.msra.mxu0 0.0
  %2558 = vmatprep.subr.mxu0 0.0
  %2559 = vmatpush1.msra.mxu0 0.0
  %2560 = vmatprep.subr.mxu0 0.0
  %2561 = vmatpush1.msra.mxu0 0.0
  %2562 = vmatprep.subr.mxu0 0.0
  %2563 = vmatpush1.msra.mxu0 0.0
  %2564 = vmatprep.subr.mxu0 0.0
  %2565 = vmatpush1.msra.mxu0 0.0
  %2566 = vmatprep.subr.mxu0 0.0
  %2567 = vmatpush1.msra.mxu0 0.0
  %2568 = vmatprep.subr.mxu0 0.0
  %2569 = vmatpush1.msra.mxu0 0.0
  %2570 = vmatprep.subr.mxu0 0.0
  %2571 = vmatpush1.msra.mxu0 0.0
  %2572 = vmatprep.mubr.f32.mxu0 0.0
  %2573 = vmatmul.mubr.f32.gmra.mrb[0].mxu0 %v2494
  %v2574 = vpop.f32.mrb[0].mxu0
  %v2575 = vadd.f32 %v2470, %v2574
  %v2576 = vpop.f32.mrb[0].mxu0
  %2577 = vmatprep.mubr.f32.mxu0 0.0
  %2578 = vmatmul.mubr.f32.gmra.mrb[0].mxu0 %v2497
  %v2579 = vpop.f32.mrb[0].mxu0
  %v2580 = vadd.f32 %v2475, %v2579
  %v2581 = vpop.f32.mrb[0].mxu0
  %2582 = vmatprep.mubr.f32.mxu0 0.0
  %2583 = vmatmul.mubr.f32.gmra.mrb[0].mxu0 %v2500
  %v2584 = vpop.f32.mrb[0].mxu0
  %v2585 = vadd.f32 %v2480, %v2584
  %v2586 = vpop.f32.mrb[0].mxu0
  %2587 = vmatprep.mubr.f32.mxu0 0.0
  %2588 = vmatmul.mubr.f32.gmra.mrb[0].mxu0 %v2503
  %v2589 = vpop.f32.mrb[0].mxu0
  %v2590 = vadd.f32 %v2485, %v2589
  %v2591 = vpop.f32.mrb[0].mxu0
  %2592 = vmatprep.mubr.f32.mxu0 0.0
  %2593 = vmatmul.mubr.f32.gmra.mrb[0].mxu0 %v2506
  %v2594 = vpop.f32.mrb[0].mxu0
  %v2595 = vadd.f32 %v2490, %v2594
  %v2596 = vpop.f32.mrb[0].mxu0
  %2597 = vdwg.mxu0
  %v2598 = vmax.f32 %v2575, 0.0
  %v2599 = vmax.f32 %v2580, 0.0
  %v2600 = vmax.f32 %v2585, 0.0
  %v2601 = vmax.f32 %v2590, 0.0
  %v2602 = vmax.f32 %v2595, 0.0
  %v2603 = vld [vmem:[%s12] sm:$0xff]
  %v2604 = vld [vmem:[%s12 + $0x8] sm:$0xff]
  %v2605 = vld [vmem:[%s12 + $0x10] sm:$0xff]
  %v2606 = vld [vmem:[%s13] sm:$0xff]
  %v2607 = vld [vmem:[%s13 + $0x8] sm:$0xff]
  %v2608 = vld [vmem:[%s13 + $0x10] sm:$0xff]
  %2610 = vset.pattern.permute.xlu0 0
  %2611 = vperm.xlu0 %2610, %v2606
  %v2612 = vpop.permute.xlu0 %2611
  %2615 = vset.pattern.permute.xlu0 0
  %2616 = vperm.xlu0 %2615, %v2607
  %v2617 = vpop.permute.xlu0 %2616
  %2620 = vset.pattern.permute.xlu0 0
  %2621 = vperm.xlu0 %2620, %v2608
  %v2622 = vpop.permute.xlu0 %2621
  %vm2624 = vcmask 326656
  %v2626 = vsel %vm2624, %v2603, 0
  %v2629 = vsel %vm2624, %v2604, 0
  %v2632 = vsel %vm2624, %v2605, 0
  %2634 = vmatprep.subr.mxu0 0.0
  %2635 = vmatpush1.msra.mxu0 %v2598
  %2636 = vmatprep.subr.mxu0 0.0
  %2637 = vmatpush1.msra.mxu0 %v2599
  %2638 = vmatprep.subr.mxu0 0.0
  %2639 = vmatpush1.msra.mxu0 %v2600
  %2640 = vmatprep.subr.mxu0 0.0
  %2641 = vmatpush1.msra.mxu0 %v2601
  %2642 = vmatprep.subr.mxu0 0.0
  %2643 = vmatpush1.msra.mxu0 %v2602
  %2644 = vmatprep.subr.mxu0 0.0
  %2645 = vmatpush1.msra.mxu0 0.0
  %2646 = vmatprep.subr.mxu0 0.0
  %2647 = vmatpush1.msra.mxu0 0.0
  %2648 = vmatprep.subr.mxu0 0.0
  %2649 = vmatpush1.msra.mxu0 0.0
  %2650 = vmatprep.subr.mxu0 0.0
  %2651 = vmatpush1.msra.mxu0 0.0
  %2652 = vmatprep.subr.mxu0 0.0
  %2653 = vmatpush1.msra.mxu0 0.0
  %2654 = vmatprep.subr.mxu0 0.0
  %2655 = vmatpush1.msra.mxu0 0.0
  %2656 = vmatprep.subr.mxu0 0.0
  %2657 = vmatpush1.msra.mxu0 0.0
  %2658 = vmatprep.subr.mxu0 0.0
  %2659 = vmatpush1.msra.mxu0 0.0
  %2660 = vmatprep.subr.mxu0 0.0
  %2661 = vmatpush1.msra.mxu0 0.0
  %2662 = vmatprep.subr.mxu0 0.0
  %2663 = vmatpush1.msra.mxu0 0.0
  %2664 = vmatprep.subr.mxu0 0.0
  %2665 = vmatpush1.msra.mxu0 0.0
  %2666 = vmatprep.subr.mxu0 0.0
  %2667 = vmatpush1.msra.mxu0 0.0
  %2668 = vmatprep.subr.mxu0 0.0
  %2669 = vmatpush1.msra.mxu0 0.0
  %2670 = vmatprep.subr.mxu0 0.0
  %2671 = vmatpush1.msra.mxu0 0.0
  %2672 = vmatprep.subr.mxu0 0.0
  %2673 = vmatpush1.msra.mxu0 0.0
  %2674 = vmatprep.subr.mxu0 0.0
  %2675 = vmatpush1.msra.mxu0 0.0
  %2676 = vmatprep.subr.mxu0 0.0
  %2677 = vmatpush1.msra.mxu0 0.0
  %2678 = vmatprep.subr.mxu0 0.0
  %2679 = vmatpush1.msra.mxu0 0.0
  %2680 = vmatprep.subr.mxu0 0.0
  %2681 = vmatpush1.msra.mxu0 0.0
  %2682 = vmatprep.subr.mxu0 0.0
  %2683 = vmatpush1.msra.mxu0 0.0
  %2684 = vmatprep.subr.mxu0 0.0
  %2685 = vmatpush1.msra.mxu0 0.0
  %2686 = vmatprep.subr.mxu0 0.0
  %2687 = vmatpush1.msra.mxu0 0.0
  %2688 = vmatprep.subr.mxu0 0.0
  %2689 = vmatpush1.msra.mxu0 0.0
  %2690 = vmatprep.subr.mxu0 0.0
  %2691 = vmatpush1.msra.mxu0 0.0
  %2692 = vmatprep.subr.mxu0 0.0
  %2693 = vmatpush1.msra.mxu0 0.0
  %2694 = vmatprep.subr.mxu0 0.0
  %2695 = vmatpush1.msra.mxu0 0.0
  %2696 = vmatprep.subr.mxu0 0.0
  %2697 = vmatpush1.msra.mxu0 0.0
  %2698 = vmatprep.mubr.f32.mxu0 0.0
  %2699 = vmatmul.mubr.f32.gmra.mrb[0].mxu0 %v2626
  %v2700 = vpop.f32.mrb[0].mxu0
  %v2701 = vadd.f32 %v2612, %v2700
  %v2702 = vpop.f32.mrb[0].mxu0
  %2703 = vmatprep.mubr.f32.mxu0 0.0
  %2704 = vmatmul.mubr.f32.gmra.mrb[0].mxu0 %v2629
  %v2705 = vpop.f32.mrb[0].mxu0
  %v2706 = vadd.f32 %v2617, %v2705
  %v2707 = vpop.f32.mrb[0].mxu0
  %2708 = vmatprep.mubr.f32.mxu0 0.0
  %2709 = vmatmul.mubr.f32.gmra.mrb[0].mxu0 %v2632
  %v2710 = vpop.f32.mrb[0].mxu0
  %v2711 = vadd.f32 %v2622, %v2710
  %v2712 = vpop.f32.mrb[0].mxu0
  %2713 = vdwg.mxu0
  %2714 = vst [vmem:[%s14] sm:$0xff] %v2701
  %2715 = vst [vmem:[%s14 + $0x8] sm:$0xff] %v2706
  %2716 = vst [vmem:[%s14 + $0x10] sm:$0xff] %v2711
  // Predicated region
  $region58: #{decoder_forward.1} parent=0 // pred_check
    _
  $region59: #{decoder_forward.1} parent=0 // pred_check_branch
    %2718 = sbr.rel (0) target = $region61
  $region60: #{decoder_forward.1} parent=0 // pred_region
    _
  $region61: #{decoder_forward.1} parent=0 // pred_fallthru
    _
  // Predicated region
  $region62: #{decoder_forward.1} parent=0 // pred_check
    _
  $region63: #{decoder_forward.1} parent=0 // pred_check_branch
    %2720 = sbr.rel (0) target = $region65
  $region64: #{decoder_forward.1} parent=0 // pred_region
    _
  $region65: #{decoder_forward.1} parent=0 // pred_fallthru
    _

</llo_original>
